<compile_context>
chip_gen: v6e
topology: v6e:2x2x1
jax: 0.10.0
libtpu: 0.0.40
codegen_flags: <defaults>
</compile_context>

<pallas_src>
import jax
import jax.numpy as jnp
from jax.experimental import pallas as pl
from jax.experimental.pallas import tpu as pltpu

# ---------------- model config (small, consistent with the module) ----------
VOCAB = 50
EMB = 16          # embedding_dim
HID = 32          # hidden_dim
OUT = 1           # output_dim
N_LAYERS = 2
BIDIR = True
B = 2             # batch
T = 8             # max sequence length
BP = 8            # batch padded to one full sublane set
G4 = 4 * HID      # per-direction gate width (128 lanes)
# dropout=0.0 (eval-mode forward); see TODO in kernel.

# row offsets inside the bf16 recurrent-weight slab (all multiples of 8)
_A_WHH0 = 0                   # (H, 8H)  [Whh0_f^T | Whh0_b^T]   (gate cols pre-scaled)
_A_W1 = HID                   # (2H, 8H) layer-1 input weights: rows[:H] fwd, rows[H:] bwd
_A_WHH1 = 3 * HID             # (H, 8H)  [Whh1_f^T | Whh1_b^T]
_A_ROWS = 4 * HID             # 128 rows x 256 cols (bf16)

# rows inside the f32 projected-embedding slab
_PB_B1 = 64                   # row 64 holds the layer-1 bias (gate cols pre-scaled)
_PB_ROWS = _PB_B1 + 8         # 72 rows x 256 cols (f32); rows[:VOCAB] = emb @ Wih0 + b0


def _lstm_classifier_kernel(ids_ref, len_ref, wrec_ref, projb_ref, fc_ref,
                            out_ref, xc_ref, l0_ref, mask_ref):
    H, G, Bp, Tk = HID, G4, BP, T
    f32 = jnp.float32

    # ---- per-step validity masks: built once, lane-broadcast, shared by both layers
    row_iota = jax.lax.broadcasted_iota(jnp.int32, (Bp, H), 0)
    len_bc = jnp.zeros((Bp, H), jnp.int32)            # row b = lengths[b] (0 for pad rows)
    for b in range(B):
        len_bc = jnp.where(row_iota == b, len_ref[b], len_bc)
    for s in range(Tk):
        m_f = (len_bc > s).astype(f32)                # fwd valid at t = s
        m_b = (len_bc > (Tk - 1 - s)).astype(f32)     # bwd valid at t = T-1-s
        mask_ref[s * 2 * Bp:(s + 1) * 2 * Bp, :] = jnp.concatenate([m_f, m_b], axis=0)

    # ---- layer-0 input path: embedding gather directly in pre-projected gate space
    xc_ref[...] = jnp.zeros_like(xc_ref)              # padded batch rows stay finite (no bias)
    for t in range(Tk):
        for b in range(B):
            tok = ids_ref[b, t]                       # SMEM scalar
            xc_ref[pl.ds(t * Bp + b, 1), :] = projb_ref[pl.ds(tok, 1), :]

    def run_layer(whh_b16, collect_l0):
        # h/c rows[:Bp] = forward states, rows[Bp:] = backward states
        h = jnp.zeros((2 * Bp, H), f32)
        c = jnp.zeros((2 * Bp, H), f32)
        for s in range(Tk):                           # fully unrolled (T = 8)
            tf, tb = s, Tk - 1 - s
            rec = jnp.dot(h.astype(jnp.bfloat16), whh_b16,
                          preferred_element_type=f32)                     # (2Bp, 2G)
            gates = jnp.concatenate(
                [rec[:Bp, :G] + xc_ref[tf * Bp:(tf + 1) * Bp, 0:G],
                 rec[Bp:, G:] + xc_ref[tb * Bp:(tb + 1) * Bp, G:2 * G]],
                axis=0)                                                   # (2Bp, G)
            # single EUP pass: i/f/o columns carry a baked-in 0.5 pre-scale,
            # so sigmoid(x) = 0.5 + 0.5 * tanh(x/2) and g = tanh(x) directly.
            th = jnp.tanh(gates)
            i = 0.5 * th[:, 0:H] + 0.5
            f = 0.5 * th[:, H:2 * H] + 0.5
            g = th[:, 2 * H:3 * H]
            o = 0.5 * th[:, 3 * H:4 * H] + 0.5
            c_new = f * c + i * g
            h_new = o * jnp.tanh(c_new)
            # packed-sequence semantics: arithmetic blend with precomputed mask
            m = mask_ref[s * 2 * Bp:(s + 1) * 2 * Bp, :]                  # (2Bp, H)
            h_out = m * h_new                          # zeroed on padding
            h = h_out + (1.0 - m) * h                  # state frozen on padding
            c = m * c_new + (1.0 - m) * c
            if collect_l0:
                l0_ref[tf * Bp:(tf + 1) * Bp, 0:H] = h_out[:Bp, :]
                l0_ref[tb * Bp:(tb + 1) * Bp, H:2 * H] = h_out[Bp:, :]
        return h

    # ---- layer 0 ----
    run_layer(wrec_ref[_A_WHH0:_A_WHH0 + H, :], True)

    # ---- layer-1 input path: single fused (T*Bp, 2H) @ (2H, 2G) matmul ----
    # TODO(synk): inter-layer dropout treated as 0 (eval-mode forward).
    xc_ref[...] = (jnp.dot(l0_ref[...].astype(jnp.bfloat16),
                           wrec_ref[_A_W1:_A_W1 + 2 * H, :],
                           preferred_element_type=f32)
                   + projb_ref[_PB_B1:_PB_B1 + 1, :])

    # ---- layer 1 ----
    h1 = run_layer(wrec_ref[_A_WHH1:_A_WHH1 + H, :], False)

    # ---- FC + sigmoid on final hidden [h_fwd | h_bwd] (runs once) ----
    logits = (jnp.dot(h1[:Bp, :], fc_ref[0:H, 0:1], preferred_element_type=f32)
              + jnp.dot(h1[Bp:, :], fc_ref[H:2 * H, 0:1], preferred_element_type=f32)
              + fc_ref[0:1, 1:2])                                         # (Bp, OUT)
    out_ref[...] = jax.nn.sigmoid(logits)


def prepare_params(params):
    """One-time host-side packing. Runs OUTSIDE jit (not per-call work)."""
    (w0f, h0f, bi0f, bh0f) = params["lstm"][0]   # layer 0 forward
    (w0b, h0b, bi0b, bh0b) = params["lstm"][1]   # layer 0 backward
    (w1f, h1f, bi1f, bh1f) = params["lstm"][2]   # layer 1 forward
    (w1b, h1b, bi1b, bh1b) = params["lstm"][3]   # layer 1 backward

    # gate-column pre-scale: 0.5 on i, f, o; 1.0 on g (PyTorch gate order i,f,g,o)
    per_dir = jnp.concatenate([jnp.full((2 * HID,), 0.5, jnp.float32),
                               jnp.ones((HID,), jnp.float32),
                               jnp.full((HID,), 0.5, jnp.float32)])
    scale = jnp.concatenate([per_dir, per_dir])[None, :]          # (1, 8H)

    # bf16 recurrent / layer-1-input weight slab (128, 256)
    whh0 = jnp.concatenate([h0f.T, h0b.T], axis=1) * scale        # (H, 8H)
    w1 = jnp.concatenate([w1f.T, w1b.T], axis=1) * scale          # (2H, 8H)
    whh1 = jnp.concatenate([h1f.T, h1b.T], axis=1) * scale        # (H, 8H)
    wrec = jnp.concatenate([whh0, w1, whh1], axis=0).astype(jnp.bfloat16)

    # f32 slab: embedding table pre-projected into layer-0 gate space (+ bias),
    # plus the layer-1 bias row.
    wih0 = jnp.concatenate([w0f.T, w0b.T], axis=1)                # (E, 8H)
    b0 = jnp.concatenate([bi0f + bh0f, bi0b + bh0b])[None, :]
    proj0 = (params["embedding"] @ wih0 + b0) * scale             # (VOCAB, 8H)
    b1 = (jnp.concatenate([bi1f + bh1f, bi1b + bh1b])[None, :] * scale)[0]
    projb = jnp.zeros((_PB_ROWS, 8 * HID), jnp.float32)
    projb = projb.at[:VOCAB].set(proj0).at[_PB_B1].set(b1)

    fc = jnp.zeros((2 * HID, 8), jnp.float32)
    fc = fc.at[:, 0].set(params["fc_w"][0]).at[0, 1].set(params["fc_b"][0])
    return wrec, projb, fc


@jax.jit
def text_classifier_lstm_forward(x_ids, lengths, wrec, projb, fc):
    """x_ids: (B, T) int32 token ids; lengths: (B,) int32. Returns (B,) float32."""
    vmem = pl.BlockSpec(memory_space=pltpu.MemorySpace.VMEM)
    smem = pl.BlockSpec(memory_space=pltpu.MemorySpace.SMEM)
    out = pl.pallas_call(
        _lstm_classifier_kernel,
        out_shape=jax.ShapeDtypeStruct((BP, OUT), jnp.float32),
        in_specs=[smem, smem, vmem, vmem, vmem],
        out_specs=vmem,
        scratch_shapes=[
            pltpu.VMEM((T * BP, 8 * HID), jnp.float32),   # per-token gate preacts (both layers)
            pltpu.VMEM((T * BP, 2 * HID), jnp.float32),   # layer-0 outputs [fwd | bwd] on lanes
            pltpu.VMEM((T * 2 * BP, HID), jnp.float32),   # per-step validity masks
        ],
    )(x_ids.astype(jnp.int32), lengths.astype(jnp.int32), wrec, projb, fc)
    return out[:B, 0]                                            # sig_out.squeeze(1)


def make_params(seed=0):
    key = jax.random.PRNGKey(seed)
    keys = iter(jax.random.split(key, 64))

    def u(shape, scale):
        return jax.random.uniform(next(keys), shape, jnp.float32, -scale, scale)

    params = {}
    params["embedding"] = u((VOCAB, EMB), 1.0)                   # pretrained_embedding
    k = 1.0 / jnp.sqrt(HID)
    lstm = []
    num_dirs = 2 if BIDIR else 1
    for layer in range(N_LAYERS):
        in_dim = EMB if layer == 0 else HID * num_dirs
        for _direction in range(num_dirs):
            wih = u((4 * HID, in_dim), k)
            whh = u((4 * HID, HID), k)
            bih = u((4 * HID,), k)
            bhh = u((4 * HID,), k)
            lstm.append((wih, whh, bih, bhh))
    params["lstm"] = lstm
    kf = 1.0 / jnp.sqrt(HID * num_dirs)
    params["fc_w"] = u((OUT, HID * num_dirs), kf)
    params["fc_b"] = u((OUT,), kf)
    return params


if __name__ == "__main__":
    params = make_params(seed=0)
    wrec, projb, fc = prepare_params(params)        # one-time pack, outside jit

    key = jax.random.PRNGKey(0)
    x_ids = jax.random.randint(key, (B, T), 0, VOCAB, dtype=jnp.int32)
    lengths = jnp.array([T, 5], dtype=jnp.int32)     # variable lengths (unsorted ok)

    out = text_classifier_lstm_forward(x_ids, lengths, wrec, projb, fc)
    jax.block_until_ready(out)
    assert out.shape == (B,) and out.dtype == jnp.float32
    assert bool(jnp.all(jnp.isfinite(out)))
    print("KERNEL_OK")
</pallas_src>

<mosaic_0001>
module attributes {stable_mosaic.version = 11 : i64} {
  func.func @_lstm_classifier_kernel(%arg0: memref<2x8xi32, #tpu.memory_space<smem>>, %arg1: memref<2xi32, #tpu.memory_space<smem>>, %arg2: memref<128x256xbf16, #tpu.memory_space<vmem>>, %arg3: memref<72x256xf32, #tpu.memory_space<vmem>>, %arg4: memref<64x8xf32, #tpu.memory_space<vmem>>, %arg5: memref<8x1xf32, #tpu.memory_space<vmem>>, %arg6: memref<64x256xf32, #tpu.memory_space<vmem>>, %arg7: memref<64x64xf32, #tpu.memory_space<vmem>>, %arg8: memref<128x32xf32, #tpu.memory_space<vmem>>) attributes {dimension_semantics = [], scalar_prefetch = 0 : i64, scratch_operands = 3 : i64, tpu.core_type = #tpu.core_type<tc>} {
    %0 = tpu.iota {dimensions = array<i32: 0>} : vector<8x32xi32>
    %c0_i32 = arith.constant 0 : i32
    %1 = vector.broadcast %c0_i32 : i32 to vector<8x32xi32>
    %c0_i32_0 = arith.constant 0 : i32
    %2 = vector.broadcast %c0_i32_0 : i32 to vector<8x32xi32>
    %3 = arith.cmpi eq, %0, %2 : vector<8x32xi32>
    %c0 = arith.constant 0 : index
    %4 = memref.load %arg1[%c0] : memref<2xi32, #tpu.memory_space<smem>>
    %5 = vector.broadcast %4 : i32 to vector<8x32xi32>
    %6 = arith.select %3, %5, %1 : vector<8x32xi1>, vector<8x32xi32>
    %c1_i32 = arith.constant 1 : i32
    %7 = vector.broadcast %c1_i32 : i32 to vector<8x32xi32>
    %8 = arith.cmpi eq, %0, %7 : vector<8x32xi32>
    %c1 = arith.constant 1 : index
    %9 = memref.load %arg1[%c1] : memref<2xi32, #tpu.memory_space<smem>>
    %10 = vector.broadcast %9 : i32 to vector<8x32xi32>
    %11 = arith.select %8, %10, %6 : vector<8x32xi1>, vector<8x32xi32>
    %c0_i32_1 = arith.constant 0 : i32
    %12 = vector.broadcast %c0_i32_1 : i32 to vector<8x32xi32>
    %13 = arith.cmpi sgt, %11, %12 : vector<8x32xi32>
    %14 = arith.extui %13 : vector<8x32xi1> to vector<8x32xi32>
    %15 = arith.sitofp %14 : vector<8x32xi32> to vector<8x32xf32>
    %c7_i32 = arith.constant 7 : i32
    %16 = vector.broadcast %c7_i32 : i32 to vector<8x32xi32>
    %17 = arith.cmpi sgt, %11, %16 : vector<8x32xi32>
    %18 = arith.extui %17 : vector<8x32xi1> to vector<8x32xi32>
    %19 = arith.sitofp %18 : vector<8x32xi32> to vector<8x32xf32>
    %20 = tpu.concatenate %15, %19 in 0 : vector<8x32xf32>, vector<8x32xf32> -> vector<16x32xf32>
    %c0_2 = arith.constant 0 : index
    %c0_3 = arith.constant 0 : index
    %21 = vector.load %arg8[%c0_2, %c0_3] : memref<128x32xf32, #tpu.memory_space<vmem>>, vector<16x32xf32>
    tpu.vector_store %arg8[%c0_2, %c0_3], %20 {strides = array<i32>} : memref<128x32xf32, #tpu.memory_space<vmem>>, vector<16x32xf32>,
    %c1_i32_4 = arith.constant 1 : i32
    %22 = vector.broadcast %c1_i32_4 : i32 to vector<8x32xi32>
    %23 = arith.cmpi sgt, %11, %22 : vector<8x32xi32>
    %24 = arith.extui %23 : vector<8x32xi1> to vector<8x32xi32>
    %25 = arith.sitofp %24 : vector<8x32xi32> to vector<8x32xf32>
    %c6_i32 = arith.constant 6 : i32
    %26 = vector.broadcast %c6_i32 : i32 to vector<8x32xi32>
    %27 = arith.cmpi sgt, %11, %26 : vector<8x32xi32>
    %28 = arith.extui %27 : vector<8x32xi1> to vector<8x32xi32>
    %29 = arith.sitofp %28 : vector<8x32xi32> to vector<8x32xf32>
    %30 = tpu.concatenate %25, %29 in 0 : vector<8x32xf32>, vector<8x32xf32> -> vector<16x32xf32>
    %c16 = arith.constant 16 : index
    %c0_5 = arith.constant 0 : index
    %31 = vector.load %arg8[%c16, %c0_5] : memref<128x32xf32, #tpu.memory_space<vmem>>, vector<16x32xf32>
    tpu.vector_store %arg8[%c16, %c0_5], %30 {strides = array<i32>} : memref<128x32xf32, #tpu.memory_space<vmem>>, vector<16x32xf32>,
    %c2_i32 = arith.constant 2 : i32
    %32 = vector.broadcast %c2_i32 : i32 to vector<8x32xi32>
    %33 = arith.cmpi sgt, %11, %32 : vector<8x32xi32>
    %34 = arith.extui %33 : vector<8x32xi1> to vector<8x32xi32>
    %35 = arith.sitofp %34 : vector<8x32xi32> to vector<8x32xf32>
    %c5_i32 = arith.constant 5 : i32
    %36 = vector.broadcast %c5_i32 : i32 to vector<8x32xi32>
    %37 = arith.cmpi sgt, %11, %36 : vector<8x32xi32>
    %38 = arith.extui %37 : vector<8x32xi1> to vector<8x32xi32>
    %39 = arith.sitofp %38 : vector<8x32xi32> to vector<8x32xf32>
    %40 = tpu.concatenate %35, %39 in 0 : vector<8x32xf32>, vector<8x32xf32> -> vector<16x32xf32>
    %c32 = arith.constant 32 : index
    %c0_6 = arith.constant 0 : index
    %41 = vector.load %arg8[%c32, %c0_6] : memref<128x32xf32, #tpu.memory_space<vmem>>, vector<16x32xf32>
    tpu.vector_store %arg8[%c32, %c0_6], %40 {strides = array<i32>} : memref<128x32xf32, #tpu.memory_space<vmem>>, vector<16x32xf32>,
    %c3_i32 = arith.constant 3 : i32
    %42 = vector.broadcast %c3_i32 : i32 to vector<8x32xi32>
    %43 = arith.cmpi sgt, %11, %42 : vector<8x32xi32>
    %44 = arith.extui %43 : vector<8x32xi1> to vector<8x32xi32>
    %45 = arith.sitofp %44 : vector<8x32xi32> to vector<8x32xf32>
    %c4_i32 = arith.constant 4 : i32
    %46 = vector.broadcast %c4_i32 : i32 to vector<8x32xi32>
    %47 = arith.cmpi sgt, %11, %46 : vector<8x32xi32>
    %48 = arith.extui %47 : vector<8x32xi1> to vector<8x32xi32>
    %49 = arith.sitofp %48 : vector<8x32xi32> to vector<8x32xf32>
    %50 = tpu.concatenate %45, %49 in 0 : vector<8x32xf32>, vector<8x32xf32> -> vector<16x32xf32>
    %c48 = arith.constant 48 : index
    %c0_7 = arith.constant 0 : index
    %51 = vector.load %arg8[%c48, %c0_7] : memref<128x32xf32, #tpu.memory_space<vmem>>, vector<16x32xf32>
    tpu.vector_store %arg8[%c48, %c0_7], %50 {strides = array<i32>} : memref<128x32xf32, #tpu.memory_space<vmem>>, vector<16x32xf32>,
    %c4_i32_8 = arith.constant 4 : i32
    %52 = vector.broadcast %c4_i32_8 : i32 to vector<8x32xi32>
    %53 = arith.cmpi sgt, %11, %52 : vector<8x32xi32>
    %54 = arith.extui %53 : vector<8x32xi1> to vector<8x32xi32>
    %55 = arith.sitofp %54 : vector<8x32xi32> to vector<8x32xf32>
    %c3_i32_9 = arith.constant 3 : i32
    %56 = vector.broadcast %c3_i32_9 : i32 to vector<8x32xi32>
    %57 = arith.cmpi sgt, %11, %56 : vector<8x32xi32>
    %58 = arith.extui %57 : vector<8x32xi1> to vector<8x32xi32>
    %59 = arith.sitofp %58 : vector<8x32xi32> to vector<8x32xf32>
    %60 = tpu.concatenate %55, %59 in 0 : vector<8x32xf32>, vector<8x32xf32> -> vector<16x32xf32>
    %c64 = arith.constant 64 : index
    %c0_10 = arith.constant 0 : index
    %61 = vector.load %arg8[%c64, %c0_10] : memref<128x32xf32, #tpu.memory_space<vmem>>, vector<16x32xf32>
    tpu.vector_store %arg8[%c64, %c0_10], %60 {strides = array<i32>} : memref<128x32xf32, #tpu.memory_space<vmem>>, vector<16x32xf32>,
    %c5_i32_11 = arith.constant 5 : i32
    %62 = vector.broadcast %c5_i32_11 : i32 to vector<8x32xi32>
    %63 = arith.cmpi sgt, %11, %62 : vector<8x32xi32>
    %64 = arith.extui %63 : vector<8x32xi1> to vector<8x32xi32>
    %65 = arith.sitofp %64 : vector<8x32xi32> to vector<8x32xf32>
    %c2_i32_12 = arith.constant 2 : i32
    %66 = vector.broadcast %c2_i32_12 : i32 to vector<8x32xi32>
    %67 = arith.cmpi sgt, %11, %66 : vector<8x32xi32>
    %68 = arith.extui %67 : vector<8x32xi1> to vector<8x32xi32>
    %69 = arith.sitofp %68 : vector<8x32xi32> to vector<8x32xf32>
    %70 = tpu.concatenate %65, %69 in 0 : vector<8x32xf32>, vector<8x32xf32> -> vector<16x32xf32>
    %c80 = arith.constant 80 : index
    %c0_13 = arith.constant 0 : index
    %71 = vector.load %arg8[%c80, %c0_13] : memref<128x32xf32, #tpu.memory_space<vmem>>, vector<16x32xf32>
    tpu.vector_store %arg8[%c80, %c0_13], %70 {strides = array<i32>} : memref<128x32xf32, #tpu.memory_space<vmem>>, vector<16x32xf32>,
    %c6_i32_14 = arith.constant 6 : i32
    %72 = vector.broadcast %c6_i32_14 : i32 to vector<8x32xi32>
    %73 = arith.cmpi sgt, %11, %72 : vector<8x32xi32>
    %74 = arith.extui %73 : vector<8x32xi1> to vector<8x32xi32>
    %75 = arith.sitofp %74 : vector<8x32xi32> to vector<8x32xf32>
    %c1_i32_15 = arith.constant 1 : i32
    %76 = vector.broadcast %c1_i32_15 : i32 to vector<8x32xi32>
    %77 = arith.cmpi sgt, %11, %76 : vector<8x32xi32>
    %78 = arith.extui %77 : vector<8x32xi1> to vector<8x32xi32>
    %79 = arith.sitofp %78 : vector<8x32xi32> to vector<8x32xf32>
    %80 = tpu.concatenate %75, %79 in 0 : vector<8x32xf32>, vector<8x32xf32> -> vector<16x32xf32>
    %c96 = arith.constant 96 : index
    %c0_16 = arith.constant 0 : index
    %81 = vector.load %arg8[%c96, %c0_16] : memref<128x32xf32, #tpu.memory_space<vmem>>, vector<16x32xf32>
    tpu.vector_store %arg8[%c96, %c0_16], %80 {strides = array<i32>} : memref<128x32xf32, #tpu.memory_space<vmem>>, vector<16x32xf32>,
    %c7_i32_17 = arith.constant 7 : i32
    %82 = vector.broadcast %c7_i32_17 : i32 to vector<8x32xi32>
    %83 = arith.cmpi sgt, %11, %82 : vector<8x32xi32>
    %84 = arith.extui %83 : vector<8x32xi1> to vector<8x32xi32>
    %85 = arith.sitofp %84 : vector<8x32xi32> to vector<8x32xf32>
    %c0_i32_18 = arith.constant 0 : i32
    %86 = vector.broadcast %c0_i32_18 : i32 to vector<8x32xi32>
    %87 = arith.cmpi sgt, %11, %86 : vector<8x32xi32>
    %88 = arith.extui %87 : vector<8x32xi1> to vector<8x32xi32>
    %89 = arith.sitofp %88 : vector<8x32xi32> to vector<8x32xf32>
    %90 = tpu.concatenate %85, %89 in 0 : vector<8x32xf32>, vector<8x32xf32> -> vector<16x32xf32>
    %c112 = arith.constant 112 : index
    %c0_19 = arith.constant 0 : index
    %91 = vector.load %arg8[%c112, %c0_19] : memref<128x32xf32, #tpu.memory_space<vmem>>, vector<16x32xf32>
    tpu.vector_store %arg8[%c112, %c0_19], %90 {strides = array<i32>} : memref<128x32xf32, #tpu.memory_space<vmem>>, vector<16x32xf32>,
    %cst = arith.constant 0.000000e+00 : f32
    %92 = vector.broadcast %cst : f32 to vector<64x256xf32>
    %c0_20 = arith.constant 0 : index
    %c0_21 = arith.constant 0 : index
    %93 = vector.load %arg6[%c0_20, %c0_21] : memref<64x256xf32, #tpu.memory_space<vmem>>, vector<64x256xf32>
    tpu.vector_store %arg6[%c0_20, %c0_21], %92 {strides = array<i32>} : memref<64x256xf32, #tpu.memory_space<vmem>>, vector<64x256xf32>,
    %c0_22 = arith.constant 0 : index
    %c0_23 = arith.constant 0 : index
    %94 = memref.load %arg0[%c0_22, %c0_23] : memref<2x8xi32, #tpu.memory_space<smem>>
    %95 = arith.index_cast %94 : i32 to index
    %c0_24 = arith.constant 0 : index
    %96 = vector.load %arg3[%95, %c0_24] : memref<72x256xf32, #tpu.memory_space<vmem>>, vector<1x256xf32>
    %c0_25 = arith.constant 0 : index
    %c0_26 = arith.constant 0 : index
    %97 = vector.load %arg6[%c0_25, %c0_26] : memref<64x256xf32, #tpu.memory_space<vmem>>, vector<1x256xf32>
    tpu.vector_store %arg6[%c0_25, %c0_26], %96 {strides = array<i32>} : memref<64x256xf32, #tpu.memory_space<vmem>>, vector<1x256xf32>,
    %c1_27 = arith.constant 1 : index
    %c0_28 = arith.constant 0 : index
    %98 = memref.load %arg0[%c1_27, %c0_28] : memref<2x8xi32, #tpu.memory_space<smem>>
    %99 = arith.index_cast %98 : i32 to index
    %c0_29 = arith.constant 0 : index
    %100 = vector.load %arg3[%99, %c0_29] : memref<72x256xf32, #tpu.memory_space<vmem>>, vector<1x256xf32>
    %c1_30 = arith.constant 1 : index
    %c0_31 = arith.constant 0 : index
    %101 = vector.load %arg6[%c1_30, %c0_31] : memref<64x256xf32, #tpu.memory_space<vmem>>, vector<1x256xf32>
    tpu.vector_store %arg6[%c1_30, %c0_31], %100 {strides = array<i32>} : memref<64x256xf32, #tpu.memory_space<vmem>>, vector<1x256xf32>,
    %c0_32 = arith.constant 0 : index
    %c1_33 = arith.constant 1 : index
    %102 = memref.load %arg0[%c0_32, %c1_33] : memref<2x8xi32, #tpu.memory_space<smem>>
    %103 = arith.index_cast %102 : i32 to index
    %c0_34 = arith.constant 0 : index
    %104 = vector.load %arg3[%103, %c0_34] : memref<72x256xf32, #tpu.memory_space<vmem>>, vector<1x256xf32>
    %c8 = arith.constant 8 : index
    %c0_35 = arith.constant 0 : index
    %105 = vector.load %arg6[%c8, %c0_35] : memref<64x256xf32, #tpu.memory_space<vmem>>, vector<1x256xf32>
    tpu.vector_store %arg6[%c8, %c0_35], %104 {strides = array<i32>} : memref<64x256xf32, #tpu.memory_space<vmem>>, vector<1x256xf32>,
    %c1_36 = arith.constant 1 : index
    %c1_37 = arith.constant 1 : index
    %106 = memref.load %arg0[%c1_36, %c1_37] : memref<2x8xi32, #tpu.memory_space<smem>>
    %107 = arith.index_cast %106 : i32 to index
    %c0_38 = arith.constant 0 : index
    %108 = vector.load %arg3[%107, %c0_38] : memref<72x256xf32, #tpu.memory_space<vmem>>, vector<1x256xf32>
    %c9 = arith.constant 9 : index
    %c0_39 = arith.constant 0 : index
    %109 = vector.load %arg6[%c9, %c0_39] : memref<64x256xf32, #tpu.memory_space<vmem>>, vector<1x256xf32>
    tpu.vector_store %arg6[%c9, %c0_39], %108 {strides = array<i32>} : memref<64x256xf32, #tpu.memory_space<vmem>>, vector<1x256xf32>,
    %c0_40 = arith.constant 0 : index
    %c2 = arith.constant 2 : index
    %110 = memref.load %arg0[%c0_40, %c2] : memref<2x8xi32, #tpu.memory_space<smem>>
    %111 = arith.index_cast %110 : i32 to index
    %c0_41 = arith.constant 0 : index
    %112 = vector.load %arg3[%111, %c0_41] : memref<72x256xf32, #tpu.memory_space<vmem>>, vector<1x256xf32>
    %c16_42 = arith.constant 16 : index
    %c0_43 = arith.constant 0 : index
    %113 = vector.load %arg6[%c16_42, %c0_43] : memref<64x256xf32, #tpu.memory_space<vmem>>, vector<1x256xf32>
    tpu.vector_store %arg6[%c16_42, %c0_43], %112 {strides = array<i32>} : memref<64x256xf32, #tpu.memory_space<vmem>>, vector<1x256xf32>,
    %c1_44 = arith.constant 1 : index
    %c2_45 = arith.constant 2 : index
    %114 = memref.load %arg0[%c1_44, %c2_45] : memref<2x8xi32, #tpu.memory_space<smem>>
    %115 = arith.index_cast %114 : i32 to index
    %c0_46 = arith.constant 0 : index
    %116 = vector.load %arg3[%115, %c0_46] : memref<72x256xf32, #tpu.memory_space<vmem>>, vector<1x256xf32>
    %c17 = arith.constant 17 : index
    %c0_47 = arith.constant 0 : index
    %117 = vector.load %arg6[%c17, %c0_47] : memref<64x256xf32, #tpu.memory_space<vmem>>, vector<1x256xf32>
    tpu.vector_store %arg6[%c17, %c0_47], %116 {strides = array<i32>} : memref<64x256xf32, #tpu.memory_space<vmem>>, vector<1x256xf32>,
    %c0_48 = arith.constant 0 : index
    %c3 = arith.constant 3 : index
    %118 = memref.load %arg0[%c0_48, %c3] : memref<2x8xi32, #tpu.memory_space<smem>>
    %119 = arith.index_cast %118 : i32 to index
    %c0_49 = arith.constant 0 : index
    %120 = vector.load %arg3[%119, %c0_49] : memref<72x256xf32, #tpu.memory_space<vmem>>, vector<1x256xf32>
    %c24 = arith.constant 24 : index
    %c0_50 = arith.constant 0 : index
    %121 = vector.load %arg6[%c24, %c0_50] : memref<64x256xf32, #tpu.memory_space<vmem>>, vector<1x256xf32>
    tpu.vector_store %arg6[%c24, %c0_50], %120 {strides = array<i32>} : memref<64x256xf32, #tpu.memory_space<vmem>>, vector<1x256xf32>,
    %c1_51 = arith.constant 1 : index
    %c3_52 = arith.constant 3 : index
    %122 = memref.load %arg0[%c1_51, %c3_52] : memref<2x8xi32, #tpu.memory_space<smem>>
    %123 = arith.index_cast %122 : i32 to index
    %c0_53 = arith.constant 0 : index
    %124 = vector.load %arg3[%123, %c0_53] : memref<72x256xf32, #tpu.memory_space<vmem>>, vector<1x256xf32>
    %c25 = arith.constant 25 : index
    %c0_54 = arith.constant 0 : index
    %125 = vector.load %arg6[%c25, %c0_54] : memref<64x256xf32, #tpu.memory_space<vmem>>, vector<1x256xf32>
    tpu.vector_store %arg6[%c25, %c0_54], %124 {strides = array<i32>} : memref<64x256xf32, #tpu.memory_space<vmem>>, vector<1x256xf32>,
    %c0_55 = arith.constant 0 : index
    %c4 = arith.constant 4 : index
    %126 = memref.load %arg0[%c0_55, %c4] : memref<2x8xi32, #tpu.memory_space<smem>>
    %127 = arith.index_cast %126 : i32 to index
    %c0_56 = arith.constant 0 : index
    %128 = vector.load %arg3[%127, %c0_56] : memref<72x256xf32, #tpu.memory_space<vmem>>, vector<1x256xf32>
    %c32_57 = arith.constant 32 : index
    %c0_58 = arith.constant 0 : index
    %129 = vector.load %arg6[%c32_57, %c0_58] : memref<64x256xf32, #tpu.memory_space<vmem>>, vector<1x256xf32>
    tpu.vector_store %arg6[%c32_57, %c0_58], %128 {strides = array<i32>} : memref<64x256xf32, #tpu.memory_space<vmem>>, vector<1x256xf32>,
    %c1_59 = arith.constant 1 : index
    %c4_60 = arith.constant 4 : index
    %130 = memref.load %arg0[%c1_59, %c4_60] : memref<2x8xi32, #tpu.memory_space<smem>>
    %131 = arith.index_cast %130 : i32 to index
    %c0_61 = arith.constant 0 : index
    %132 = vector.load %arg3[%131, %c0_61] : memref<72x256xf32, #tpu.memory_space<vmem>>, vector<1x256xf32>
    %c33 = arith.constant 33 : index
    %c0_62 = arith.constant 0 : index
    %133 = vector.load %arg6[%c33, %c0_62] : memref<64x256xf32, #tpu.memory_space<vmem>>, vector<1x256xf32>
    tpu.vector_store %arg6[%c33, %c0_62], %132 {strides = array<i32>} : memref<64x256xf32, #tpu.memory_space<vmem>>, vector<1x256xf32>,
    %c0_63 = arith.constant 0 : index
    %c5 = arith.constant 5 : index
    %134 = memref.load %arg0[%c0_63, %c5] : memref<2x8xi32, #tpu.memory_space<smem>>
    %135 = arith.index_cast %134 : i32 to index
    %c0_64 = arith.constant 0 : index
    %136 = vector.load %arg3[%135, %c0_64] : memref<72x256xf32, #tpu.memory_space<vmem>>, vector<1x256xf32>
    %c40 = arith.constant 40 : index
    %c0_65 = arith.constant 0 : index
    %137 = vector.load %arg6[%c40, %c0_65] : memref<64x256xf32, #tpu.memory_space<vmem>>, vector<1x256xf32>
    tpu.vector_store %arg6[%c40, %c0_65], %136 {strides = array<i32>} : memref<64x256xf32, #tpu.memory_space<vmem>>, vector<1x256xf32>,
    %c1_66 = arith.constant 1 : index
    %c5_67 = arith.constant 5 : index
    %138 = memref.load %arg0[%c1_66, %c5_67] : memref<2x8xi32, #tpu.memory_space<smem>>
    %139 = arith.index_cast %138 : i32 to index
    %c0_68 = arith.constant 0 : index
    %140 = vector.load %arg3[%139, %c0_68] : memref<72x256xf32, #tpu.memory_space<vmem>>, vector<1x256xf32>
    %c41 = arith.constant 41 : index
    %c0_69 = arith.constant 0 : index
    %141 = vector.load %arg6[%c41, %c0_69] : memref<64x256xf32, #tpu.memory_space<vmem>>, vector<1x256xf32>
    tpu.vector_store %arg6[%c41, %c0_69], %140 {strides = array<i32>} : memref<64x256xf32, #tpu.memory_space<vmem>>, vector<1x256xf32>,
    %c0_70 = arith.constant 0 : index
    %c6 = arith.constant 6 : index
    %142 = memref.load %arg0[%c0_70, %c6] : memref<2x8xi32, #tpu.memory_space<smem>>
    %143 = arith.index_cast %142 : i32 to index
    %c0_71 = arith.constant 0 : index
    %144 = vector.load %arg3[%143, %c0_71] : memref<72x256xf32, #tpu.memory_space<vmem>>, vector<1x256xf32>
    %c48_72 = arith.constant 48 : index
    %c0_73 = arith.constant 0 : index
    %145 = vector.load %arg6[%c48_72, %c0_73] : memref<64x256xf32, #tpu.memory_space<vmem>>, vector<1x256xf32>
    tpu.vector_store %arg6[%c48_72, %c0_73], %144 {strides = array<i32>} : memref<64x256xf32, #tpu.memory_space<vmem>>, vector<1x256xf32>,
    %c1_74 = arith.constant 1 : index
    %c6_75 = arith.constant 6 : index
    %146 = memref.load %arg0[%c1_74, %c6_75] : memref<2x8xi32, #tpu.memory_space<smem>>
    %147 = arith.index_cast %146 : i32 to index
    %c0_76 = arith.constant 0 : index
    %148 = vector.load %arg3[%147, %c0_76] : memref<72x256xf32, #tpu.memory_space<vmem>>, vector<1x256xf32>
    %c49 = arith.constant 49 : index
    %c0_77 = arith.constant 0 : index
    %149 = vector.load %arg6[%c49, %c0_77] : memref<64x256xf32, #tpu.memory_space<vmem>>, vector<1x256xf32>
    tpu.vector_store %arg6[%c49, %c0_77], %148 {strides = array<i32>} : memref<64x256xf32, #tpu.memory_space<vmem>>, vector<1x256xf32>,
    %c0_78 = arith.constant 0 : index
    %c7 = arith.constant 7 : index
    %150 = memref.load %arg0[%c0_78, %c7] : memref<2x8xi32, #tpu.memory_space<smem>>
    %151 = arith.index_cast %150 : i32 to index
    %c0_79 = arith.constant 0 : index
    %152 = vector.load %arg3[%151, %c0_79] : memref<72x256xf32, #tpu.memory_space<vmem>>, vector<1x256xf32>
    %c56 = arith.constant 56 : index
    %c0_80 = arith.constant 0 : index
    %153 = vector.load %arg6[%c56, %c0_80] : memref<64x256xf32, #tpu.memory_space<vmem>>, vector<1x256xf32>
    tpu.vector_store %arg6[%c56, %c0_80], %152 {strides = array<i32>} : memref<64x256xf32, #tpu.memory_space<vmem>>, vector<1x256xf32>,
    %c1_81 = arith.constant 1 : index
    %c7_82 = arith.constant 7 : index
    %154 = memref.load %arg0[%c1_81, %c7_82] : memref<2x8xi32, #tpu.memory_space<smem>>
    %155 = arith.index_cast %154 : i32 to index
    %c0_83 = arith.constant 0 : index
    %156 = vector.load %arg3[%155, %c0_83] : memref<72x256xf32, #tpu.memory_space<vmem>>, vector<1x256xf32>
    %c57 = arith.constant 57 : index
    %c0_84 = arith.constant 0 : index
    %157 = vector.load %arg6[%c57, %c0_84] : memref<64x256xf32, #tpu.memory_space<vmem>>, vector<1x256xf32>
    tpu.vector_store %arg6[%c57, %c0_84], %156 {strides = array<i32>} : memref<64x256xf32, #tpu.memory_space<vmem>>, vector<1x256xf32>,
    %c0_85 = arith.constant 0 : index
    %c0_86 = arith.constant 0 : index
    %158 = vector.load %arg2[%c0_85, %c0_86] : memref<128x256xbf16, #tpu.memory_space<vmem>>, vector<32x256xbf16>
    %cst_87 = arith.constant 0.000000e+00 : f32
    %159 = vector.broadcast %cst_87 : f32 to vector<16x32xf32>
    %cst_88 = arith.constant 0.000000e+00 : f32
    %160 = vector.broadcast %cst_88 : f32 to vector<16x32xf32>
    %161 = arith.truncf %159 : vector<16x32xf32> to vector<16x32xbf16>
    %cst_89 = arith.constant dense<0.000000e+00> : vector<16x256xf32>
    %162 = tpu.matmul %161, %158, %cst_89 {dimension_numbers = #tpu.dot_dimension_numbers<[1], [0], [0], [1], [0, 0, 1, 1], [], []>} : vector<16x32xbf16>, vector<32x256xbf16>, vector<16x256xf32> -> vector<16x256xf32>
    %163 = vector.extract_strided_slice %162 {offsets = [0, 0], sizes = [8, 128], strides = [1, 1]} : vector<16x256xf32> to vector<8x128xf32>
    %c0_90 = arith.constant 0 : index
    %c0_91 = arith.constant 0 : index
    %164 = vector.load %arg6[%c0_90, %c0_91] : memref<64x256xf32, #tpu.memory_space<vmem>>, vector<8x128xf32>
    %165 = arith.addf %163, %164 : vector<8x128xf32>
    %166 = vector.extract_strided_slice %162 {offsets = [8, 128], sizes = [8, 128], strides = [1, 1]} : vector<16x256xf32> to vector<8x128xf32>
    %c56_92 = arith.constant 56 : index
    %c128 = arith.constant 128 : index
    %167 = vector.load %arg6[%c56_92, %c128] : memref<64x256xf32, #tpu.memory_space<vmem>>, vector<8x128xf32>
    %168 = arith.addf %166, %167 : vector<8x128xf32>
    %169 = tpu.concatenate %165, %168 in 0 : vector<8x128xf32>, vector<8x128xf32> -> vector<16x128xf32>
    %170 = math.tanh %169 : vector<16x128xf32>
    %171 = vector.extract_strided_slice %170 {offsets = [0, 0], sizes = [16, 32], strides = [1, 1]} : vector<16x128xf32> to vector<16x32xf32>
    %cst_93 = arith.constant 5.000000e-01 : f32
    %172 = vector.broadcast %cst_93 : f32 to vector<16x32xf32>
    %173 = arith.mulf %172, %171 : vector<16x32xf32>
    %cst_94 = arith.constant 5.000000e-01 : f32
    %174 = vector.broadcast %cst_94 : f32 to vector<16x32xf32>
    %175 = arith.addf %173, %174 : vector<16x32xf32>
    %176 = vector.extract_strided_slice %170 {offsets = [0, 32], sizes = [16, 32], strides = [1, 1]} : vector<16x128xf32> to vector<16x32xf32>
    %cst_95 = arith.constant 5.000000e-01 : f32
    %177 = vector.broadcast %cst_95 : f32 to vector<16x32xf32>
    %178 = arith.mulf %177, %176 : vector<16x32xf32>
    %cst_96 = arith.constant 5.000000e-01 : f32
    %179 = vector.broadcast %cst_96 : f32 to vector<16x32xf32>
    %180 = arith.addf %178, %179 : vector<16x32xf32>
    %181 = vector.extract_strided_slice %170 {offsets = [0, 64], sizes = [16, 32], strides = [1, 1]} : vector<16x128xf32> to vector<16x32xf32>
    %182 = vector.extract_strided_slice %170 {offsets = [0, 96], sizes = [16, 32], strides = [1, 1]} : vector<16x128xf32> to vector<16x32xf32>
    %cst_97 = arith.constant 5.000000e-01 : f32
    %183 = vector.broadcast %cst_97 : f32 to vector<16x32xf32>
    %184 = arith.mulf %183, %182 : vector<16x32xf32>
    %cst_98 = arith.constant 5.000000e-01 : f32
    %185 = vector.broadcast %cst_98 : f32 to vector<16x32xf32>
    %186 = arith.addf %184, %185 : vector<16x32xf32>
    %187 = arith.mulf %180, %160 : vector<16x32xf32>
    %188 = arith.mulf %175, %181 : vector<16x32xf32>
    %189 = arith.addf %187, %188 : vector<16x32xf32>
    %190 = math.tanh %189 : vector<16x32xf32>
    %191 = arith.mulf %186, %190 : vector<16x32xf32>
    %c0_99 = arith.constant 0 : index
    %c0_100 = arith.constant 0 : index
    %192 = vector.load %arg8[%c0_99, %c0_100] : memref<128x32xf32, #tpu.memory_space<vmem>>, vector<16x32xf32>
    %193 = arith.mulf %192, %191 : vector<16x32xf32>
    %cst_101 = arith.constant 1.000000e+00 : f32
    %194 = vector.broadcast %cst_101 : f32 to vector<16x32xf32>
    %195 = arith.subf %194, %192 : vector<16x32xf32>
    %196 = arith.mulf %195, %159 : vector<16x32xf32>
    %197 = arith.addf %193, %196 : vector<16x32xf32>
    %198 = arith.mulf %192, %189 : vector<16x32xf32>
    %cst_102 = arith.constant 1.000000e+00 : f32
    %199 = vector.broadcast %cst_102 : f32 to vector<16x32xf32>
    %200 = arith.subf %199, %192 : vector<16x32xf32>
    %201 = arith.mulf %200, %160 : vector<16x32xf32>
    %202 = arith.addf %198, %201 : vector<16x32xf32>
    %203 = vector.extract_strided_slice %193 {offsets = [0, 0], sizes = [8, 32], strides = [1, 1]} : vector<16x32xf32> to vector<8x32xf32>
    %c0_103 = arith.constant 0 : index
    %c0_104 = arith.constant 0 : index
    %204 = vector.load %arg7[%c0_103, %c0_104] : memref<64x64xf32, #tpu.memory_space<vmem>>, vector<8x32xf32>
    tpu.vector_store %arg7[%c0_103, %c0_104], %203 {strides = array<i32>} : memref<64x64xf32, #tpu.memory_space<vmem>>, vector<8x32xf32>,
    %205 = vector.extract_strided_slice %193 {offsets = [8, 0], sizes = [8, 32], strides = [1, 1]} : vector<16x32xf32> to vector<8x32xf32>
    %c56_105 = arith.constant 56 : index
    %c32_106 = arith.constant 32 : index
    %206 = vector.load %arg7[%c56_105, %c32_106] : memref<64x64xf32, #tpu.memory_space<vmem>>, vector<8x32xf32>
    tpu.vector_store %arg7[%c56_105, %c32_106], %205 {strides = array<i32>} : memref<64x64xf32, #tpu.memory_space<vmem>>, vector<8x32xf32>,
    %207 = arith.truncf %197 : vector<16x32xf32> to vector<16x32xbf16>
    %cst_107 = arith.constant dense<0.000000e+00> : vector<16x256xf32>
    %208 = tpu.matmul %207, %158, %cst_107 {dimension_numbers = #tpu.dot_dimension_numbers<[1], [0], [0], [1], [0, 0, 1, 1], [], []>} : vector<16x32xbf16>, vector<32x256xbf16>, vector<16x256xf32> -> vector<16x256xf32>
    %209 = vector.extract_strided_slice %208 {offsets = [0, 0], sizes = [8, 128], strides = [1, 1]} : vector<16x256xf32> to vector<8x128xf32>
    %c8_108 = arith.constant 8 : index
    %c0_109 = arith.constant 0 : index
    %210 = vector.load %arg6[%c8_108, %c0_109] : memref<64x256xf32, #tpu.memory_space<vmem>>, vector<8x128xf32>
    %211 = arith.addf %209, %210 : vector<8x128xf32>
    %212 = vector.extract_strided_slice %208 {offsets = [8, 128], sizes = [8, 128], strides = [1, 1]} : vector<16x256xf32> to vector<8x128xf32>
    %c48_110 = arith.constant 48 : index
    %c128_111 = arith.constant 128 : index
    %213 = vector.load %arg6[%c48_110, %c128_111] : memref<64x256xf32, #tpu.memory_space<vmem>>, vector<8x128xf32>
    %214 = arith.addf %212, %213 : vector<8x128xf32>
    %215 = tpu.concatenate %211, %214 in 0 : vector<8x128xf32>, vector<8x128xf32> -> vector<16x128xf32>
    %216 = math.tanh %215 : vector<16x128xf32>
    %217 = vector.extract_strided_slice %216 {offsets = [0, 0], sizes = [16, 32], strides = [1, 1]} : vector<16x128xf32> to vector<16x32xf32>
    %cst_112 = arith.constant 5.000000e-01 : f32
    %218 = vector.broadcast %cst_112 : f32 to vector<16x32xf32>
    %219 = arith.mulf %218, %217 : vector<16x32xf32>
    %cst_113 = arith.constant 5.000000e-01 : f32
    %220 = vector.broadcast %cst_113 : f32 to vector<16x32xf32>
    %221 = arith.addf %219, %220 : vector<16x32xf32>
    %222 = vector.extract_strided_slice %216 {offsets = [0, 32], sizes = [16, 32], strides = [1, 1]} : vector<16x128xf32> to vector<16x32xf32>
    %cst_114 = arith.constant 5.000000e-01 : f32
    %223 = vector.broadcast %cst_114 : f32 to vector<16x32xf32>
    %224 = arith.mulf %223, %222 : vector<16x32xf32>
    %cst_115 = arith.constant 5.000000e-01 : f32
    %225 = vector.broadcast %cst_115 : f32 to vector<16x32xf32>
    %226 = arith.addf %224, %225 : vector<16x32xf32>
    %227 = vector.extract_strided_slice %216 {offsets = [0, 64], sizes = [16, 32], strides = [1, 1]} : vector<16x128xf32> to vector<16x32xf32>
    %228 = vector.extract_strided_slice %216 {offsets = [0, 96], sizes = [16, 32], strides = [1, 1]} : vector<16x128xf32> to vector<16x32xf32>
    %cst_116 = arith.constant 5.000000e-01 : f32
    %229 = vector.broadcast %cst_116 : f32 to vector<16x32xf32>
    %230 = arith.mulf %229, %228 : vector<16x32xf32>
    %cst_117 = arith.constant 5.000000e-01 : f32
    %231 = vector.broadcast %cst_117 : f32 to vector<16x32xf32>
    %232 = arith.addf %230, %231 : vector<16x32xf32>
    %233 = arith.mulf %226, %202 : vector<16x32xf32>
    %234 = arith.mulf %221, %227 : vector<16x32xf32>
    %235 = arith.addf %233, %234 : vector<16x32xf32>
    %236 = math.tanh %235 : vector<16x32xf32>
    %237 = arith.mulf %232, %236 : vector<16x32xf32>
    %c16_118 = arith.constant 16 : index
    %c0_119 = arith.constant 0 : index
    %238 = vector.load %arg8[%c16_118, %c0_119] : memref<128x32xf32, #tpu.memory_space<vmem>>, vector<16x32xf32>
    %239 = arith.mulf %238, %237 : vector<16x32xf32>
    %cst_120 = arith.constant 1.000000e+00 : f32
    %240 = vector.broadcast %cst_120 : f32 to vector<16x32xf32>
    %241 = arith.subf %240, %238 : vector<16x32xf32>
    %242 = arith.mulf %241, %197 : vector<16x32xf32>
    %243 = arith.addf %239, %242 : vector<16x32xf32>
    %244 = arith.mulf %238, %235 : vector<16x32xf32>
    %cst_121 = arith.constant 1.000000e+00 : f32
    %245 = vector.broadcast %cst_121 : f32 to vector<16x32xf32>
    %246 = arith.subf %245, %238 : vector<16x32xf32>
    %247 = arith.mulf %246, %202 : vector<16x32xf32>
    %248 = arith.addf %244, %247 : vector<16x32xf32>
    %249 = vector.extract_strided_slice %239 {offsets = [0, 0], sizes = [8, 32], strides = [1, 1]} : vector<16x32xf32> to vector<8x32xf32>
    %c8_122 = arith.constant 8 : index
    %c0_123 = arith.constant 0 : index
    %250 = vector.load %arg7[%c8_122, %c0_123] : memref<64x64xf32, #tpu.memory_space<vmem>>, vector<8x32xf32>
    tpu.vector_store %arg7[%c8_122, %c0_123], %249 {strides = array<i32>} : memref<64x64xf32, #tpu.memory_space<vmem>>, vector<8x32xf32>,
    %251 = vector.extract_strided_slice %239 {offsets = [8, 0], sizes = [8, 32], strides = [1, 1]} : vector<16x32xf32> to vector<8x32xf32>
    %c48_124 = arith.constant 48 : index
    %c32_125 = arith.constant 32 : index
    %252 = vector.load %arg7[%c48_124, %c32_125] : memref<64x64xf32, #tpu.memory_space<vmem>>, vector<8x32xf32>
    tpu.vector_store %arg7[%c48_124, %c32_125], %251 {strides = array<i32>} : memref<64x64xf32, #tpu.memory_space<vmem>>, vector<8x32xf32>,
    %253 = arith.truncf %243 : vector<16x32xf32> to vector<16x32xbf16>
    %cst_126 = arith.constant dense<0.000000e+00> : vector<16x256xf32>
    %254 = tpu.matmul %253, %158, %cst_126 {dimension_numbers = #tpu.dot_dimension_numbers<[1], [0], [0], [1], [0, 0, 1, 1], [], []>} : vector<16x32xbf16>, vector<32x256xbf16>, vector<16x256xf32> -> vector<16x256xf32>
    %255 = vector.extract_strided_slice %254 {offsets = [0, 0], sizes = [8, 128], strides = [1, 1]} : vector<16x256xf32> to vector<8x128xf32>
    %c16_127 = arith.constant 16 : index
    %c0_128 = arith.constant 0 : index
    %256 = vector.load %arg6[%c16_127, %c0_128] : memref<64x256xf32, #tpu.memory_space<vmem>>, vector<8x128xf32>
    %257 = arith.addf %255, %256 : vector<8x128xf32>
    %258 = vector.extract_strided_slice %254 {offsets = [8, 128], sizes = [8, 128], strides = [1, 1]} : vector<16x256xf32> to vector<8x128xf32>
    %c40_129 = arith.constant 40 : index
    %c128_130 = arith.constant 128 : index
    %259 = vector.load %arg6[%c40_129, %c128_130] : memref<64x256xf32, #tpu.memory_space<vmem>>, vector<8x128xf32>
    %260 = arith.addf %258, %259 : vector<8x128xf32>
    %261 = tpu.concatenate %257, %260 in 0 : vector<8x128xf32>, vector<8x128xf32> -> vector<16x128xf32>
    %262 = math.tanh %261 : vector<16x128xf32>
    %263 = vector.extract_strided_slice %262 {offsets = [0, 0], sizes = [16, 32], strides = [1, 1]} : vector<16x128xf32> to vector<16x32xf32>
    %cst_131 = arith.constant 5.000000e-01 : f32
    %264 = vector.broadcast %cst_131 : f32 to vector<16x32xf32>
    %265 = arith.mulf %264, %263 : vector<16x32xf32>
    %cst_132 = arith.constant 5.000000e-01 : f32
    %266 = vector.broadcast %cst_132 : f32 to vector<16x32xf32>
    %267 = arith.addf %265, %266 : vector<16x32xf32>
    %268 = vector.extract_strided_slice %262 {offsets = [0, 32], sizes = [16, 32], strides = [1, 1]} : vector<16x128xf32> to vector<16x32xf32>
    %cst_133 = arith.constant 5.000000e-01 : f32
    %269 = vector.broadcast %cst_133 : f32 to vector<16x32xf32>
    %270 = arith.mulf %269, %268 : vector<16x32xf32>
    %cst_134 = arith.constant 5.000000e-01 : f32
    %271 = vector.broadcast %cst_134 : f32 to vector<16x32xf32>
    %272 = arith.addf %270, %271 : vector<16x32xf32>
    %273 = vector.extract_strided_slice %262 {offsets = [0, 64], sizes = [16, 32], strides = [1, 1]} : vector<16x128xf32> to vector<16x32xf32>
    %274 = vector.extract_strided_slice %262 {offsets = [0, 96], sizes = [16, 32], strides = [1, 1]} : vector<16x128xf32> to vector<16x32xf32>
    %cst_135 = arith.constant 5.000000e-01 : f32
    %275 = vector.broadcast %cst_135 : f32 to vector<16x32xf32>
    %276 = arith.mulf %275, %274 : vector<16x32xf32>
    %cst_136 = arith.constant 5.000000e-01 : f32
    %277 = vector.broadcast %cst_136 : f32 to vector<16x32xf32>
    %278 = arith.addf %276, %277 : vector<16x32xf32>
    %279 = arith.mulf %272, %248 : vector<16x32xf32>
    %280 = arith.mulf %267, %273 : vector<16x32xf32>
    %281 = arith.addf %279, %280 : vector<16x32xf32>
    %282 = math.tanh %281 : vector<16x32xf32>
    %283 = arith.mulf %278, %282 : vector<16x32xf32>
    %c32_137 = arith.constant 32 : index
    %c0_138 = arith.constant 0 : index
    %284 = vector.load %arg8[%c32_137, %c0_138] : memref<128x32xf32, #tpu.memory_space<vmem>>, vector<16x32xf32>
    %285 = arith.mulf %284, %283 : vector<16x32xf32>
    %cst_139 = arith.constant 1.000000e+00 : f32
    %286 = vector.broadcast %cst_139 : f32 to vector<16x32xf32>
    %287 = arith.subf %286, %284 : vector<16x32xf32>
    %288 = arith.mulf %287, %243 : vector<16x32xf32>
    %289 = arith.addf %285, %288 : vector<16x32xf32>
    %290 = arith.mulf %284, %281 : vector<16x32xf32>
    %cst_140 = arith.constant 1.000000e+00 : f32
    %291 = vector.broadcast %cst_140 : f32 to vector<16x32xf32>
    %292 = arith.subf %291, %284 : vector<16x32xf32>
    %293 = arith.mulf %292, %248 : vector<16x32xf32>
    %294 = arith.addf %290, %293 : vector<16x32xf32>
    %295 = vector.extract_strided_slice %285 {offsets = [0, 0], sizes = [8, 32], strides = [1, 1]} : vector<16x32xf32> to vector<8x32xf32>
    %c16_141 = arith.constant 16 : index
    %c0_142 = arith.constant 0 : index
    %296 = vector.load %arg7[%c16_141, %c0_142] : memref<64x64xf32, #tpu.memory_space<vmem>>, vector<8x32xf32>
    tpu.vector_store %arg7[%c16_141, %c0_142], %295 {strides = array<i32>} : memref<64x64xf32, #tpu.memory_space<vmem>>, vector<8x32xf32>,
    %297 = vector.extract_strided_slice %285 {offsets = [8, 0], sizes = [8, 32], strides = [1, 1]} : vector<16x32xf32> to vector<8x32xf32>
    %c40_143 = arith.constant 40 : index
    %c32_144 = arith.constant 32 : index
    %298 = vector.load %arg7[%c40_143, %c32_144] : memref<64x64xf32, #tpu.memory_space<vmem>>, vector<8x32xf32>
    tpu.vector_store %arg7[%c40_143, %c32_144], %297 {strides = array<i32>} : memref<64x64xf32, #tpu.memory_space<vmem>>, vector<8x32xf32>,
    %299 = arith.truncf %289 : vector<16x32xf32> to vector<16x32xbf16>
    %cst_145 = arith.constant dense<0.000000e+00> : vector<16x256xf32>
    %300 = tpu.matmul %299, %158, %cst_145 {dimension_numbers = #tpu.dot_dimension_numbers<[1], [0], [0], [1], [0, 0, 1, 1], [], []>} : vector<16x32xbf16>, vector<32x256xbf16>, vector<16x256xf32> -> vector<16x256xf32>
    %301 = vector.extract_strided_slice %300 {offsets = [0, 0], sizes = [8, 128], strides = [1, 1]} : vector<16x256xf32> to vector<8x128xf32>
    %c24_146 = arith.constant 24 : index
    %c0_147 = arith.constant 0 : index
    %302 = vector.load %arg6[%c24_146, %c0_147] : memref<64x256xf32, #tpu.memory_space<vmem>>, vector<8x128xf32>
    %303 = arith.addf %301, %302 : vector<8x128xf32>
    %304 = vector.extract_strided_slice %300 {offsets = [8, 128], sizes = [8, 128], strides = [1, 1]} : vector<16x256xf32> to vector<8x128xf32>
    %c32_148 = arith.constant 32 : index
    %c128_149 = arith.constant 128 : index
    %305 = vector.load %arg6[%c32_148, %c128_149] : memref<64x256xf32, #tpu.memory_space<vmem>>, vector<8x128xf32>
    %306 = arith.addf %304, %305 : vector<8x128xf32>
    %307 = tpu.concatenate %303, %306 in 0 : vector<8x128xf32>, vector<8x128xf32> -> vector<16x128xf32>
    %308 = math.tanh %307 : vector<16x128xf32>
    %309 = vector.extract_strided_slice %308 {offsets = [0, 0], sizes = [16, 32], strides = [1, 1]} : vector<16x128xf32> to vector<16x32xf32>
    %cst_150 = arith.constant 5.000000e-01 : f32
    %310 = vector.broadcast %cst_150 : f32 to vector<16x32xf32>
    %311 = arith.mulf %310, %309 : vector<16x32xf32>
    %cst_151 = arith.constant 5.000000e-01 : f32
    %312 = vector.broadcast %cst_151 : f32 to vector<16x32xf32>
    %313 = arith.addf %311, %312 : vector<16x32xf32>
    %314 = vector.extract_strided_slice %308 {offsets = [0, 32], sizes = [16, 32], strides = [1, 1]} : vector<16x128xf32> to vector<16x32xf32>
    %cst_152 = arith.constant 5.000000e-01 : f32
    %315 = vector.broadcast %cst_152 : f32 to vector<16x32xf32>
    %316 = arith.mulf %315, %314 : vector<16x32xf32>
    %cst_153 = arith.constant 5.000000e-01 : f32
    %317 = vector.broadcast %cst_153 : f32 to vector<16x32xf32>
    %318 = arith.addf %316, %317 : vector<16x32xf32>
    %319 = vector.extract_strided_slice %308 {offsets = [0, 64], sizes = [16, 32], strides = [1, 1]} : vector<16x128xf32> to vector<16x32xf32>
    %320 = vector.extract_strided_slice %308 {offsets = [0, 96], sizes = [16, 32], strides = [1, 1]} : vector<16x128xf32> to vector<16x32xf32>
    %cst_154 = arith.constant 5.000000e-01 : f32
    %321 = vector.broadcast %cst_154 : f32 to vector<16x32xf32>
    %322 = arith.mulf %321, %320 : vector<16x32xf32>
    %cst_155 = arith.constant 5.000000e-01 : f32
    %323 = vector.broadcast %cst_155 : f32 to vector<16x32xf32>
    %324 = arith.addf %322, %323 : vector<16x32xf32>
    %325 = arith.mulf %318, %294 : vector<16x32xf32>
    %326 = arith.mulf %313, %319 : vector<16x32xf32>
    %327 = arith.addf %325, %326 : vector<16x32xf32>
    %328 = math.tanh %327 : vector<16x32xf32>
    %329 = arith.mulf %324, %328 : vector<16x32xf32>
    %c48_156 = arith.constant 48 : index
    %c0_157 = arith.constant 0 : index
    %330 = vector.load %arg8[%c48_156, %c0_157] : memref<128x32xf32, #tpu.memory_space<vmem>>, vector<16x32xf32>
    %331 = arith.mulf %330, %329 : vector<16x32xf32>
    %cst_158 = arith.constant 1.000000e+00 : f32
    %332 = vector.broadcast %cst_158 : f32 to vector<16x32xf32>
    %333 = arith.subf %332, %330 : vector<16x32xf32>
    %334 = arith.mulf %333, %289 : vector<16x32xf32>
    %335 = arith.addf %331, %334 : vector<16x32xf32>
    %336 = arith.mulf %330, %327 : vector<16x32xf32>
    %cst_159 = arith.constant 1.000000e+00 : f32
    %337 = vector.broadcast %cst_159 : f32 to vector<16x32xf32>
    %338 = arith.subf %337, %330 : vector<16x32xf32>
    %339 = arith.mulf %338, %294 : vector<16x32xf32>
    %340 = arith.addf %336, %339 : vector<16x32xf32>
    %341 = vector.extract_strided_slice %331 {offsets = [0, 0], sizes = [8, 32], strides = [1, 1]} : vector<16x32xf32> to vector<8x32xf32>
    %c24_160 = arith.constant 24 : index
    %c0_161 = arith.constant 0 : index
    %342 = vector.load %arg7[%c24_160, %c0_161] : memref<64x64xf32, #tpu.memory_space<vmem>>, vector<8x32xf32>
    tpu.vector_store %arg7[%c24_160, %c0_161], %341 {strides = array<i32>} : memref<64x64xf32, #tpu.memory_space<vmem>>, vector<8x32xf32>,
    %343 = vector.extract_strided_slice %331 {offsets = [8, 0], sizes = [8, 32], strides = [1, 1]} : vector<16x32xf32> to vector<8x32xf32>
    %c32_162 = arith.constant 32 : index
    %c32_163 = arith.constant 32 : index
    %344 = vector.load %arg7[%c32_162, %c32_163] : memref<64x64xf32, #tpu.memory_space<vmem>>, vector<8x32xf32>
    tpu.vector_store %arg7[%c32_162, %c32_163], %343 {strides = array<i32>} : memref<64x64xf32, #tpu.memory_space<vmem>>, vector<8x32xf32>,
    %345 = arith.truncf %335 : vector<16x32xf32> to vector<16x32xbf16>
    %cst_164 = arith.constant dense<0.000000e+00> : vector<16x256xf32>
    %346 = tpu.matmul %345, %158, %cst_164 {dimension_numbers = #tpu.dot_dimension_numbers<[1], [0], [0], [1], [0, 0, 1, 1], [], []>} : vector<16x32xbf16>, vector<32x256xbf16>, vector<16x256xf32> -> vector<16x256xf32>
    %347 = vector.extract_strided_slice %346 {offsets = [0, 0], sizes = [8, 128], strides = [1, 1]} : vector<16x256xf32> to vector<8x128xf32>
    %c32_165 = arith.constant 32 : index
    %c0_166 = arith.constant 0 : index
    %348 = vector.load %arg6[%c32_165, %c0_166] : memref<64x256xf32, #tpu.memory_space<vmem>>, vector<8x128xf32>
    %349 = arith.addf %347, %348 : vector<8x128xf32>
    %350 = vector.extract_strided_slice %346 {offsets = [8, 128], sizes = [8, 128], strides = [1, 1]} : vector<16x256xf32> to vector<8x128xf32>
    %c24_167 = arith.constant 24 : index
    %c128_168 = arith.constant 128 : index
    %351 = vector.load %arg6[%c24_167, %c128_168] : memref<64x256xf32, #tpu.memory_space<vmem>>, vector<8x128xf32>
    %352 = arith.addf %350, %351 : vector<8x128xf32>
    %353 = tpu.concatenate %349, %352 in 0 : vector<8x128xf32>, vector<8x128xf32> -> vector<16x128xf32>
    %354 = math.tanh %353 : vector<16x128xf32>
    %355 = vector.extract_strided_slice %354 {offsets = [0, 0], sizes = [16, 32], strides = [1, 1]} : vector<16x128xf32> to vector<16x32xf32>
    %cst_169 = arith.constant 5.000000e-01 : f32
    %356 = vector.broadcast %cst_169 : f32 to vector<16x32xf32>
    %357 = arith.mulf %356, %355 : vector<16x32xf32>
    %cst_170 = arith.constant 5.000000e-01 : f32
    %358 = vector.broadcast %cst_170 : f32 to vector<16x32xf32>
    %359 = arith.addf %357, %358 : vector<16x32xf32>
    %360 = vector.extract_strided_slice %354 {offsets = [0, 32], sizes = [16, 32], strides = [1, 1]} : vector<16x128xf32> to vector<16x32xf32>
    %cst_171 = arith.constant 5.000000e-01 : f32
    %361 = vector.broadcast %cst_171 : f32 to vector<16x32xf32>
    %362 = arith.mulf %361, %360 : vector<16x32xf32>
    %cst_172 = arith.constant 5.000000e-01 : f32
    %363 = vector.broadcast %cst_172 : f32 to vector<16x32xf32>
    %364 = arith.addf %362, %363 : vector<16x32xf32>
    %365 = vector.extract_strided_slice %354 {offsets = [0, 64], sizes = [16, 32], strides = [1, 1]} : vector<16x128xf32> to vector<16x32xf32>
    %366 = vector.extract_strided_slice %354 {offsets = [0, 96], sizes = [16, 32], strides = [1, 1]} : vector<16x128xf32> to vector<16x32xf32>
    %cst_173 = arith.constant 5.000000e-01 : f32
    %367 = vector.broadcast %cst_173 : f32 to vector<16x32xf32>
    %368 = arith.mulf %367, %366 : vector<16x32xf32>
    %cst_174 = arith.constant 5.000000e-01 : f32
    %369 = vector.broadcast %cst_174 : f32 to vector<16x32xf32>
    %370 = arith.addf %368, %369 : vector<16x32xf32>
    %371 = arith.mulf %364, %340 : vector<16x32xf32>
    %372 = arith.mulf %359, %365 : vector<16x32xf32>
    %373 = arith.addf %371, %372 : vector<16x32xf32>
    %374 = math.tanh %373 : vector<16x32xf32>
    %375 = arith.mulf %370, %374 : vector<16x32xf32>
    %c64_175 = arith.constant 64 : index
    %c0_176 = arith.constant 0 : index
    %376 = vector.load %arg8[%c64_175, %c0_176] : memref<128x32xf32, #tpu.memory_space<vmem>>, vector<16x32xf32>
    %377 = arith.mulf %376, %375 : vector<16x32xf32>
    %cst_177 = arith.constant 1.000000e+00 : f32
    %378 = vector.broadcast %cst_177 : f32 to vector<16x32xf32>
    %379 = arith.subf %378, %376 : vector<16x32xf32>
    %380 = arith.mulf %379, %335 : vector<16x32xf32>
    %381 = arith.addf %377, %380 : vector<16x32xf32>
    %382 = arith.mulf %376, %373 : vector<16x32xf32>
    %cst_178 = arith.constant 1.000000e+00 : f32
    %383 = vector.broadcast %cst_178 : f32 to vector<16x32xf32>
    %384 = arith.subf %383, %376 : vector<16x32xf32>
    %385 = arith.mulf %384, %340 : vector<16x32xf32>
    %386 = arith.addf %382, %385 : vector<16x32xf32>
    %387 = vector.extract_strided_slice %377 {offsets = [0, 0], sizes = [8, 32], strides = [1, 1]} : vector<16x32xf32> to vector<8x32xf32>
    %c32_179 = arith.constant 32 : index
    %c0_180 = arith.constant 0 : index
    %388 = vector.load %arg7[%c32_179, %c0_180] : memref<64x64xf32, #tpu.memory_space<vmem>>, vector<8x32xf32>
    tpu.vector_store %arg7[%c32_179, %c0_180], %387 {strides = array<i32>} : memref<64x64xf32, #tpu.memory_space<vmem>>, vector<8x32xf32>,
    %389 = vector.extract_strided_slice %377 {offsets = [8, 0], sizes = [8, 32], strides = [1, 1]} : vector<16x32xf32> to vector<8x32xf32>
    %c24_181 = arith.constant 24 : index
    %c32_182 = arith.constant 32 : index
    %390 = vector.load %arg7[%c24_181, %c32_182] : memref<64x64xf32, #tpu.memory_space<vmem>>, vector<8x32xf32>
    tpu.vector_store %arg7[%c24_181, %c32_182], %389 {strides = array<i32>} : memref<64x64xf32, #tpu.memory_space<vmem>>, vector<8x32xf32>,
    %391 = arith.truncf %381 : vector<16x32xf32> to vector<16x32xbf16>
    %cst_183 = arith.constant dense<0.000000e+00> : vector<16x256xf32>
    %392 = tpu.matmul %391, %158, %cst_183 {dimension_numbers = #tpu.dot_dimension_numbers<[1], [0], [0], [1], [0, 0, 1, 1], [], []>} : vector<16x32xbf16>, vector<32x256xbf16>, vector<16x256xf32> -> vector<16x256xf32>
    %393 = vector.extract_strided_slice %392 {offsets = [0, 0], sizes = [8, 128], strides = [1, 1]} : vector<16x256xf32> to vector<8x128xf32>
    %c40_184 = arith.constant 40 : index
    %c0_185 = arith.constant 0 : index
    %394 = vector.load %arg6[%c40_184, %c0_185] : memref<64x256xf32, #tpu.memory_space<vmem>>, vector<8x128xf32>
    %395 = arith.addf %393, %394 : vector<8x128xf32>
    %396 = vector.extract_strided_slice %392 {offsets = [8, 128], sizes = [8, 128], strides = [1, 1]} : vector<16x256xf32> to vector<8x128xf32>
    %c16_186 = arith.constant 16 : index
    %c128_187 = arith.constant 128 : index
    %397 = vector.load %arg6[%c16_186, %c128_187] : memref<64x256xf32, #tpu.memory_space<vmem>>, vector<8x128xf32>
    %398 = arith.addf %396, %397 : vector<8x128xf32>
    %399 = tpu.concatenate %395, %398 in 0 : vector<8x128xf32>, vector<8x128xf32> -> vector<16x128xf32>
    %400 = math.tanh %399 : vector<16x128xf32>
    %401 = vector.extract_strided_slice %400 {offsets = [0, 0], sizes = [16, 32], strides = [1, 1]} : vector<16x128xf32> to vector<16x32xf32>
    %cst_188 = arith.constant 5.000000e-01 : f32
    %402 = vector.broadcast %cst_188 : f32 to vector<16x32xf32>
    %403 = arith.mulf %402, %401 : vector<16x32xf32>
    %cst_189 = arith.constant 5.000000e-01 : f32
    %404 = vector.broadcast %cst_189 : f32 to vector<16x32xf32>
    %405 = arith.addf %403, %404 : vector<16x32xf32>
    %406 = vector.extract_strided_slice %400 {offsets = [0, 32], sizes = [16, 32], strides = [1, 1]} : vector<16x128xf32> to vector<16x32xf32>
    %cst_190 = arith.constant 5.000000e-01 : f32
    %407 = vector.broadcast %cst_190 : f32 to vector<16x32xf32>
    %408 = arith.mulf %407, %406 : vector<16x32xf32>
    %cst_191 = arith.constant 5.000000e-01 : f32
    %409 = vector.broadcast %cst_191 : f32 to vector<16x32xf32>
    %410 = arith.addf %408, %409 : vector<16x32xf32>
    %411 = vector.extract_strided_slice %400 {offsets = [0, 64], sizes = [16, 32], strides = [1, 1]} : vector<16x128xf32> to vector<16x32xf32>
    %412 = vector.extract_strided_slice %400 {offsets = [0, 96], sizes = [16, 32], strides = [1, 1]} : vector<16x128xf32> to vector<16x32xf32>
    %cst_192 = arith.constant 5.000000e-01 : f32
    %413 = vector.broadcast %cst_192 : f32 to vector<16x32xf32>
    %414 = arith.mulf %413, %412 : vector<16x32xf32>
    %cst_193 = arith.constant 5.000000e-01 : f32
    %415 = vector.broadcast %cst_193 : f32 to vector<16x32xf32>
    %416 = arith.addf %414, %415 : vector<16x32xf32>
    %417 = arith.mulf %410, %386 : vector<16x32xf32>
    %418 = arith.mulf %405, %411 : vector<16x32xf32>
    %419 = arith.addf %417, %418 : vector<16x32xf32>
    %420 = math.tanh %419 : vector<16x32xf32>
    %421 = arith.mulf %416, %420 : vector<16x32xf32>
    %c80_194 = arith.constant 80 : index
    %c0_195 = arith.constant 0 : index
    %422 = vector.load %arg8[%c80_194, %c0_195] : memref<128x32xf32, #tpu.memory_space<vmem>>, vector<16x32xf32>
    %423 = arith.mulf %422, %421 : vector<16x32xf32>
    %cst_196 = arith.constant 1.000000e+00 : f32
    %424 = vector.broadcast %cst_196 : f32 to vector<16x32xf32>
    %425 = arith.subf %424, %422 : vector<16x32xf32>
    %426 = arith.mulf %425, %381 : vector<16x32xf32>
    %427 = arith.addf %423, %426 : vector<16x32xf32>
    %428 = arith.mulf %422, %419 : vector<16x32xf32>
    %cst_197 = arith.constant 1.000000e+00 : f32
    %429 = vector.broadcast %cst_197 : f32 to vector<16x32xf32>
    %430 = arith.subf %429, %422 : vector<16x32xf32>
    %431 = arith.mulf %430, %386 : vector<16x32xf32>
    %432 = arith.addf %428, %431 : vector<16x32xf32>
    %433 = vector.extract_strided_slice %423 {offsets = [0, 0], sizes = [8, 32], strides = [1, 1]} : vector<16x32xf32> to vector<8x32xf32>
    %c40_198 = arith.constant 40 : index
    %c0_199 = arith.constant 0 : index
    %434 = vector.load %arg7[%c40_198, %c0_199] : memref<64x64xf32, #tpu.memory_space<vmem>>, vector<8x32xf32>
    tpu.vector_store %arg7[%c40_198, %c0_199], %433 {strides = array<i32>} : memref<64x64xf32, #tpu.memory_space<vmem>>, vector<8x32xf32>,
    %435 = vector.extract_strided_slice %423 {offsets = [8, 0], sizes = [8, 32], strides = [1, 1]} : vector<16x32xf32> to vector<8x32xf32>
    %c16_200 = arith.constant 16 : index
    %c32_201 = arith.constant 32 : index
    %436 = vector.load %arg7[%c16_200, %c32_201] : memref<64x64xf32, #tpu.memory_space<vmem>>, vector<8x32xf32>
    tpu.vector_store %arg7[%c16_200, %c32_201], %435 {strides = array<i32>} : memref<64x64xf32, #tpu.memory_space<vmem>>, vector<8x32xf32>,
    %437 = arith.truncf %427 : vector<16x32xf32> to vector<16x32xbf16>
    %cst_202 = arith.constant dense<0.000000e+00> : vector<16x256xf32>
    %438 = tpu.matmul %437, %158, %cst_202 {dimension_numbers = #tpu.dot_dimension_numbers<[1], [0], [0], [1], [0, 0, 1, 1], [], []>} : vector<16x32xbf16>, vector<32x256xbf16>, vector<16x256xf32> -> vector<16x256xf32>
    %439 = vector.extract_strided_slice %438 {offsets = [0, 0], sizes = [8, 128], strides = [1, 1]} : vector<16x256xf32> to vector<8x128xf32>
    %c48_203 = arith.constant 48 : index
    %c0_204 = arith.constant 0 : index
    %440 = vector.load %arg6[%c48_203, %c0_204] : memref<64x256xf32, #tpu.memory_space<vmem>>, vector<8x128xf32>
    %441 = arith.addf %439, %440 : vector<8x128xf32>
    %442 = vector.extract_strided_slice %438 {offsets = [8, 128], sizes = [8, 128], strides = [1, 1]} : vector<16x256xf32> to vector<8x128xf32>
    %c8_205 = arith.constant 8 : index
    %c128_206 = arith.constant 128 : index
    %443 = vector.load %arg6[%c8_205, %c128_206] : memref<64x256xf32, #tpu.memory_space<vmem>>, vector<8x128xf32>
    %444 = arith.addf %442, %443 : vector<8x128xf32>
    %445 = tpu.concatenate %441, %444 in 0 : vector<8x128xf32>, vector<8x128xf32> -> vector<16x128xf32>
    %446 = math.tanh %445 : vector<16x128xf32>
    %447 = vector.extract_strided_slice %446 {offsets = [0, 0], sizes = [16, 32], strides = [1, 1]} : vector<16x128xf32> to vector<16x32xf32>
    %cst_207 = arith.constant 5.000000e-01 : f32
    %448 = vector.broadcast %cst_207 : f32 to vector<16x32xf32>
    %449 = arith.mulf %448, %447 : vector<16x32xf32>
    %cst_208 = arith.constant 5.000000e-01 : f32
    %450 = vector.broadcast %cst_208 : f32 to vector<16x32xf32>
    %451 = arith.addf %449, %450 : vector<16x32xf32>
    %452 = vector.extract_strided_slice %446 {offsets = [0, 32], sizes = [16, 32], strides = [1, 1]} : vector<16x128xf32> to vector<16x32xf32>
    %cst_209 = arith.constant 5.000000e-01 : f32
    %453 = vector.broadcast %cst_209 : f32 to vector<16x32xf32>
    %454 = arith.mulf %453, %452 : vector<16x32xf32>
    %cst_210 = arith.constant 5.000000e-01 : f32
    %455 = vector.broadcast %cst_210 : f32 to vector<16x32xf32>
    %456 = arith.addf %454, %455 : vector<16x32xf32>
    %457 = vector.extract_strided_slice %446 {offsets = [0, 64], sizes = [16, 32], strides = [1, 1]} : vector<16x128xf32> to vector<16x32xf32>
    %458 = vector.extract_strided_slice %446 {offsets = [0, 96], sizes = [16, 32], strides = [1, 1]} : vector<16x128xf32> to vector<16x32xf32>
    %cst_211 = arith.constant 5.000000e-01 : f32
    %459 = vector.broadcast %cst_211 : f32 to vector<16x32xf32>
    %460 = arith.mulf %459, %458 : vector<16x32xf32>
    %cst_212 = arith.constant 5.000000e-01 : f32
    %461 = vector.broadcast %cst_212 : f32 to vector<16x32xf32>
    %462 = arith.addf %460, %461 : vector<16x32xf32>
    %463 = arith.mulf %456, %432 : vector<16x32xf32>
    %464 = arith.mulf %451, %457 : vector<16x32xf32>
    %465 = arith.addf %463, %464 : vector<16x32xf32>
    %466 = math.tanh %465 : vector<16x32xf32>
    %467 = arith.mulf %462, %466 : vector<16x32xf32>
    %c96_213 = arith.constant 96 : index
    %c0_214 = arith.constant 0 : index
    %468 = vector.load %arg8[%c96_213, %c0_214] : memref<128x32xf32, #tpu.memory_space<vmem>>, vector<16x32xf32>
    %469 = arith.mulf %468, %467 : vector<16x32xf32>
    %cst_215 = arith.constant 1.000000e+00 : f32
    %470 = vector.broadcast %cst_215 : f32 to vector<16x32xf32>
    %471 = arith.subf %470, %468 : vector<16x32xf32>
    %472 = arith.mulf %471, %427 : vector<16x32xf32>
    %473 = arith.addf %469, %472 : vector<16x32xf32>
    %474 = arith.mulf %468, %465 : vector<16x32xf32>
    %cst_216 = arith.constant 1.000000e+00 : f32
    %475 = vector.broadcast %cst_216 : f32 to vector<16x32xf32>
    %476 = arith.subf %475, %468 : vector<16x32xf32>
    %477 = arith.mulf %476, %432 : vector<16x32xf32>
    %478 = arith.addf %474, %477 : vector<16x32xf32>
    %479 = vector.extract_strided_slice %469 {offsets = [0, 0], sizes = [8, 32], strides = [1, 1]} : vector<16x32xf32> to vector<8x32xf32>
    %c48_217 = arith.constant 48 : index
    %c0_218 = arith.constant 0 : index
    %480 = vector.load %arg7[%c48_217, %c0_218] : memref<64x64xf32, #tpu.memory_space<vmem>>, vector<8x32xf32>
    tpu.vector_store %arg7[%c48_217, %c0_218], %479 {strides = array<i32>} : memref<64x64xf32, #tpu.memory_space<vmem>>, vector<8x32xf32>,
    %481 = vector.extract_strided_slice %469 {offsets = [8, 0], sizes = [8, 32], strides = [1, 1]} : vector<16x32xf32> to vector<8x32xf32>
    %c8_219 = arith.constant 8 : index
    %c32_220 = arith.constant 32 : index
    %482 = vector.load %arg7[%c8_219, %c32_220] : memref<64x64xf32, #tpu.memory_space<vmem>>, vector<8x32xf32>
    tpu.vector_store %arg7[%c8_219, %c32_220], %481 {strides = array<i32>} : memref<64x64xf32, #tpu.memory_space<vmem>>, vector<8x32xf32>,
    %483 = arith.truncf %473 : vector<16x32xf32> to vector<16x32xbf16>
    %cst_221 = arith.constant dense<0.000000e+00> : vector<16x256xf32>
    %484 = tpu.matmul %483, %158, %cst_221 {dimension_numbers = #tpu.dot_dimension_numbers<[1], [0], [0], [1], [0, 0, 1, 1], [], []>} : vector<16x32xbf16>, vector<32x256xbf16>, vector<16x256xf32> -> vector<16x256xf32>
    %485 = vector.extract_strided_slice %484 {offsets = [0, 0], sizes = [8, 128], strides = [1, 1]} : vector<16x256xf32> to vector<8x128xf32>
    %c56_222 = arith.constant 56 : index
    %c0_223 = arith.constant 0 : index
    %486 = vector.load %arg6[%c56_222, %c0_223] : memref<64x256xf32, #tpu.memory_space<vmem>>, vector<8x128xf32>
    %487 = arith.addf %485, %486 : vector<8x128xf32>
    %488 = vector.extract_strided_slice %484 {offsets = [8, 128], sizes = [8, 128], strides = [1, 1]} : vector<16x256xf32> to vector<8x128xf32>
    %c0_224 = arith.constant 0 : index
    %c128_225 = arith.constant 128 : index
    %489 = vector.load %arg6[%c0_224, %c128_225] : memref<64x256xf32, #tpu.memory_space<vmem>>, vector<8x128xf32>
    %490 = arith.addf %488, %489 : vector<8x128xf32>
    %491 = tpu.concatenate %487, %490 in 0 : vector<8x128xf32>, vector<8x128xf32> -> vector<16x128xf32>
    %492 = math.tanh %491 : vector<16x128xf32>
    %493 = vector.extract_strided_slice %492 {offsets = [0, 0], sizes = [16, 32], strides = [1, 1]} : vector<16x128xf32> to vector<16x32xf32>
    %cst_226 = arith.constant 5.000000e-01 : f32
    %494 = vector.broadcast %cst_226 : f32 to vector<16x32xf32>
    %495 = arith.mulf %494, %493 : vector<16x32xf32>
    %cst_227 = arith.constant 5.000000e-01 : f32
    %496 = vector.broadcast %cst_227 : f32 to vector<16x32xf32>
    %497 = arith.addf %495, %496 : vector<16x32xf32>
    %498 = vector.extract_strided_slice %492 {offsets = [0, 32], sizes = [16, 32], strides = [1, 1]} : vector<16x128xf32> to vector<16x32xf32>
    %cst_228 = arith.constant 5.000000e-01 : f32
    %499 = vector.broadcast %cst_228 : f32 to vector<16x32xf32>
    %500 = arith.mulf %499, %498 : vector<16x32xf32>
    %cst_229 = arith.constant 5.000000e-01 : f32
    %501 = vector.broadcast %cst_229 : f32 to vector<16x32xf32>
    %502 = arith.addf %500, %501 : vector<16x32xf32>
    %503 = vector.extract_strided_slice %492 {offsets = [0, 64], sizes = [16, 32], strides = [1, 1]} : vector<16x128xf32> to vector<16x32xf32>
    %504 = vector.extract_strided_slice %492 {offsets = [0, 96], sizes = [16, 32], strides = [1, 1]} : vector<16x128xf32> to vector<16x32xf32>
    %cst_230 = arith.constant 5.000000e-01 : f32
    %505 = vector.broadcast %cst_230 : f32 to vector<16x32xf32>
    %506 = arith.mulf %505, %504 : vector<16x32xf32>
    %cst_231 = arith.constant 5.000000e-01 : f32
    %507 = vector.broadcast %cst_231 : f32 to vector<16x32xf32>
    %508 = arith.addf %506, %507 : vector<16x32xf32>
    %509 = arith.mulf %502, %478 : vector<16x32xf32>
    %510 = arith.mulf %497, %503 : vector<16x32xf32>
    %511 = arith.addf %509, %510 : vector<16x32xf32>
    %512 = math.tanh %511 : vector<16x32xf32>
    %513 = arith.mulf %508, %512 : vector<16x32xf32>
    %c112_232 = arith.constant 112 : index
    %c0_233 = arith.constant 0 : index
    %514 = vector.load %arg8[%c112_232, %c0_233] : memref<128x32xf32, #tpu.memory_space<vmem>>, vector<16x32xf32>
    %515 = arith.mulf %514, %513 : vector<16x32xf32>
    %516 = vector.extract_strided_slice %515 {offsets = [0, 0], sizes = [8, 32], strides = [1, 1]} : vector<16x32xf32> to vector<8x32xf32>
    %c56_234 = arith.constant 56 : index
    %c0_235 = arith.constant 0 : index
    %517 = vector.load %arg7[%c56_234, %c0_235] : memref<64x64xf32, #tpu.memory_space<vmem>>, vector<8x32xf32>
    tpu.vector_store %arg7[%c56_234, %c0_235], %516 {strides = array<i32>} : memref<64x64xf32, #tpu.memory_space<vmem>>, vector<8x32xf32>,
    %518 = vector.extract_strided_slice %515 {offsets = [8, 0], sizes = [8, 32], strides = [1, 1]} : vector<16x32xf32> to vector<8x32xf32>
    %c0_236 = arith.constant 0 : index
    %c32_237 = arith.constant 32 : index
    %519 = vector.load %arg7[%c0_236, %c32_237] : memref<64x64xf32, #tpu.memory_space<vmem>>, vector<8x32xf32>
    tpu.vector_store %arg7[%c0_236, %c32_237], %518 {strides = array<i32>} : memref<64x64xf32, #tpu.memory_space<vmem>>, vector<8x32xf32>,
    %c0_238 = arith.constant 0 : index
    %c0_239 = arith.constant 0 : index
    %520 = vector.load %arg7[%c0_238, %c0_239] : memref<64x64xf32, #tpu.memory_space<vmem>>, vector<64x64xf32>
    %521 = arith.truncf %520 : vector<64x64xf32> to vector<64x64xbf16>
    %c32_240 = arith.constant 32 : index
    %c0_241 = arith.constant 0 : index
    %522 = vector.load %arg2[%c32_240, %c0_241] : memref<128x256xbf16, #tpu.memory_space<vmem>>, vector<64x256xbf16>
    %cst_242 = arith.constant dense<0.000000e+00> : vector<64x256xf32>
    %523 = tpu.matmul %521, %522, %cst_242 {dimension_numbers = #tpu.dot_dimension_numbers<[1], [0], [0], [1], [0, 0, 1, 1], [], []>} : vector<64x64xbf16>, vector<64x256xbf16>, vector<64x256xf32> -> vector<64x256xf32>
    %c64_243 = arith.constant 64 : index
    %c0_244 = arith.constant 0 : index
    %524 = vector.load %arg3[%c64_243, %c0_244] : memref<72x256xf32, #tpu.memory_space<vmem>>, vector<1x256xf32>
    %525 = vector.broadcast %524 : vector<1x256xf32> to vector<64x256xf32>
    %526 = arith.addf %523, %525 : vector<64x256xf32>
    %c0_245 = arith.constant 0 : index
    %c0_246 = arith.constant 0 : index
    %527 = vector.load %arg6[%c0_245, %c0_246] : memref<64x256xf32, #tpu.memory_space<vmem>>, vector<64x256xf32>
    tpu.vector_store %arg6[%c0_245, %c0_246], %526 {strides = array<i32>} : memref<64x256xf32, #tpu.memory_space<vmem>>, vector<64x256xf32>,
    %c96_247 = arith.constant 96 : index
    %c0_248 = arith.constant 0 : index
    %528 = vector.load %arg2[%c96_247, %c0_248] : memref<128x256xbf16, #tpu.memory_space<vmem>>, vector<32x256xbf16>
    %cst_249 = arith.constant 0.000000e+00 : f32
    %529 = vector.broadcast %cst_249 : f32 to vector<16x32xf32>
    %cst_250 = arith.constant 0.000000e+00 : f32
    %530 = vector.broadcast %cst_250 : f32 to vector<16x32xf32>
    %531 = arith.truncf %529 : vector<16x32xf32> to vector<16x32xbf16>
    %cst_251 = arith.constant dense<0.000000e+00> : vector<16x256xf32>
    %532 = tpu.matmul %531, %528, %cst_251 {dimension_numbers = #tpu.dot_dimension_numbers<[1], [0], [0], [1], [0, 0, 1, 1], [], []>} : vector<16x32xbf16>, vector<32x256xbf16>, vector<16x256xf32> -> vector<16x256xf32>
    %533 = vector.extract_strided_slice %532 {offsets = [0, 0], sizes = [8, 128], strides = [1, 1]} : vector<16x256xf32> to vector<8x128xf32>
    %c0_252 = arith.constant 0 : index
    %c0_253 = arith.constant 0 : index
    %534 = vector.load %arg6[%c0_252, %c0_253] : memref<64x256xf32, #tpu.memory_space<vmem>>, vector<8x128xf32>
    %535 = arith.addf %533, %534 : vector<8x128xf32>
    %536 = vector.extract_strided_slice %532 {offsets = [8, 128], sizes = [8, 128], strides = [1, 1]} : vector<16x256xf32> to vector<8x128xf32>
    %c56_254 = arith.constant 56 : index
    %c128_255 = arith.constant 128 : index
    %537 = vector.load %arg6[%c56_254, %c128_255] : memref<64x256xf32, #tpu.memory_space<vmem>>, vector<8x128xf32>
    %538 = arith.addf %536, %537 : vector<8x128xf32>
    %539 = tpu.concatenate %535, %538 in 0 : vector<8x128xf32>, vector<8x128xf32> -> vector<16x128xf32>
    %540 = math.tanh %539 : vector<16x128xf32>
    %541 = vector.extract_strided_slice %540 {offsets = [0, 0], sizes = [16, 32], strides = [1, 1]} : vector<16x128xf32> to vector<16x32xf32>
    %cst_256 = arith.constant 5.000000e-01 : f32
    %542 = vector.broadcast %cst_256 : f32 to vector<16x32xf32>
    %543 = arith.mulf %542, %541 : vector<16x32xf32>
    %cst_257 = arith.constant 5.000000e-01 : f32
    %544 = vector.broadcast %cst_257 : f32 to vector<16x32xf32>
    %545 = arith.addf %543, %544 : vector<16x32xf32>
    %546 = vector.extract_strided_slice %540 {offsets = [0, 32], sizes = [16, 32], strides = [1, 1]} : vector<16x128xf32> to vector<16x32xf32>
    %cst_258 = arith.constant 5.000000e-01 : f32
    %547 = vector.broadcast %cst_258 : f32 to vector<16x32xf32>
    %548 = arith.mulf %547, %546 : vector<16x32xf32>
    %cst_259 = arith.constant 5.000000e-01 : f32
    %549 = vector.broadcast %cst_259 : f32 to vector<16x32xf32>
    %550 = arith.addf %548, %549 : vector<16x32xf32>
    %551 = vector.extract_strided_slice %540 {offsets = [0, 64], sizes = [16, 32], strides = [1, 1]} : vector<16x128xf32> to vector<16x32xf32>
    %552 = vector.extract_strided_slice %540 {offsets = [0, 96], sizes = [16, 32], strides = [1, 1]} : vector<16x128xf32> to vector<16x32xf32>
    %cst_260 = arith.constant 5.000000e-01 : f32
    %553 = vector.broadcast %cst_260 : f32 to vector<16x32xf32>
    %554 = arith.mulf %553, %552 : vector<16x32xf32>
    %cst_261 = arith.constant 5.000000e-01 : f32
    %555 = vector.broadcast %cst_261 : f32 to vector<16x32xf32>
    %556 = arith.addf %554, %555 : vector<16x32xf32>
    %557 = arith.mulf %550, %530 : vector<16x32xf32>
    %558 = arith.mulf %545, %551 : vector<16x32xf32>
    %559 = arith.addf %557, %558 : vector<16x32xf32>
    %560 = math.tanh %559 : vector<16x32xf32>
    %561 = arith.mulf %556, %560 : vector<16x32xf32>
    %c0_262 = arith.constant 0 : index
    %c0_263 = arith.constant 0 : index
    %562 = vector.load %arg8[%c0_262, %c0_263] : memref<128x32xf32, #tpu.memory_space<vmem>>, vector<16x32xf32>
    %563 = arith.mulf %562, %561 : vector<16x32xf32>
    %cst_264 = arith.constant 1.000000e+00 : f32
    %564 = vector.broadcast %cst_264 : f32 to vector<16x32xf32>
    %565 = arith.subf %564, %562 : vector<16x32xf32>
    %566 = arith.mulf %565, %529 : vector<16x32xf32>
    %567 = arith.addf %563, %566 : vector<16x32xf32>
    %568 = arith.mulf %562, %559 : vector<16x32xf32>
    %cst_265 = arith.constant 1.000000e+00 : f32
    %569 = vector.broadcast %cst_265 : f32 to vector<16x32xf32>
    %570 = arith.subf %569, %562 : vector<16x32xf32>
    %571 = arith.mulf %570, %530 : vector<16x32xf32>
    %572 = arith.addf %568, %571 : vector<16x32xf32>
    %573 = arith.truncf %567 : vector<16x32xf32> to vector<16x32xbf16>
    %cst_266 = arith.constant dense<0.000000e+00> : vector<16x256xf32>
    %574 = tpu.matmul %573, %528, %cst_266 {dimension_numbers = #tpu.dot_dimension_numbers<[1], [0], [0], [1], [0, 0, 1, 1], [], []>} : vector<16x32xbf16>, vector<32x256xbf16>, vector<16x256xf32> -> vector<16x256xf32>
    %575 = vector.extract_strided_slice %574 {offsets = [0, 0], sizes = [8, 128], strides = [1, 1]} : vector<16x256xf32> to vector<8x128xf32>
    %c8_267 = arith.constant 8 : index
    %c0_268 = arith.constant 0 : index
    %576 = vector.load %arg6[%c8_267, %c0_268] : memref<64x256xf32, #tpu.memory_space<vmem>>, vector<8x128xf32>
    %577 = arith.addf %575, %576 : vector<8x128xf32>
    %578 = vector.extract_strided_slice %574 {offsets = [8, 128], sizes = [8, 128], strides = [1, 1]} : vector<16x256xf32> to vector<8x128xf32>
    %c48_269 = arith.constant 48 : index
    %c128_270 = arith.constant 128 : index
    %579 = vector.load %arg6[%c48_269, %c128_270] : memref<64x256xf32, #tpu.memory_space<vmem>>, vector<8x128xf32>
    %580 = arith.addf %578, %579 : vector<8x128xf32>
    %581 = tpu.concatenate %577, %580 in 0 : vector<8x128xf32>, vector<8x128xf32> -> vector<16x128xf32>
    %582 = math.tanh %581 : vector<16x128xf32>
    %583 = vector.extract_strided_slice %582 {offsets = [0, 0], sizes = [16, 32], strides = [1, 1]} : vector<16x128xf32> to vector<16x32xf32>
    %cst_271 = arith.constant 5.000000e-01 : f32
    %584 = vector.broadcast %cst_271 : f32 to vector<16x32xf32>
    %585 = arith.mulf %584, %583 : vector<16x32xf32>
    %cst_272 = arith.constant 5.000000e-01 : f32
    %586 = vector.broadcast %cst_272 : f32 to vector<16x32xf32>
    %587 = arith.addf %585, %586 : vector<16x32xf32>
    %588 = vector.extract_strided_slice %582 {offsets = [0, 32], sizes = [16, 32], strides = [1, 1]} : vector<16x128xf32> to vector<16x32xf32>
    %cst_273 = arith.constant 5.000000e-01 : f32
    %589 = vector.broadcast %cst_273 : f32 to vector<16x32xf32>
    %590 = arith.mulf %589, %588 : vector<16x32xf32>
    %cst_274 = arith.constant 5.000000e-01 : f32
    %591 = vector.broadcast %cst_274 : f32 to vector<16x32xf32>
    %592 = arith.addf %590, %591 : vector<16x32xf32>
    %593 = vector.extract_strided_slice %582 {offsets = [0, 64], sizes = [16, 32], strides = [1, 1]} : vector<16x128xf32> to vector<16x32xf32>
    %594 = vector.extract_strided_slice %582 {offsets = [0, 96], sizes = [16, 32], strides = [1, 1]} : vector<16x128xf32> to vector<16x32xf32>
    %cst_275 = arith.constant 5.000000e-01 : f32
    %595 = vector.broadcast %cst_275 : f32 to vector<16x32xf32>
    %596 = arith.mulf %595, %594 : vector<16x32xf32>
    %cst_276 = arith.constant 5.000000e-01 : f32
    %597 = vector.broadcast %cst_276 : f32 to vector<16x32xf32>
    %598 = arith.addf %596, %597 : vector<16x32xf32>
    %599 = arith.mulf %592, %572 : vector<16x32xf32>
    %600 = arith.mulf %587, %593 : vector<16x32xf32>
    %601 = arith.addf %599, %600 : vector<16x32xf32>
    %602 = math.tanh %601 : vector<16x32xf32>
    %603 = arith.mulf %598, %602 : vector<16x32xf32>
    %c16_277 = arith.constant 16 : index
    %c0_278 = arith.constant 0 : index
    %604 = vector.load %arg8[%c16_277, %c0_278] : memref<128x32xf32, #tpu.memory_space<vmem>>, vector<16x32xf32>
    %605 = arith.mulf %604, %603 : vector<16x32xf32>
    %cst_279 = arith.constant 1.000000e+00 : f32
    %606 = vector.broadcast %cst_279 : f32 to vector<16x32xf32>
    %607 = arith.subf %606, %604 : vector<16x32xf32>
    %608 = arith.mulf %607, %567 : vector<16x32xf32>
    %609 = arith.addf %605, %608 : vector<16x32xf32>
    %610 = arith.mulf %604, %601 : vector<16x32xf32>
    %cst_280 = arith.constant 1.000000e+00 : f32
    %611 = vector.broadcast %cst_280 : f32 to vector<16x32xf32>
    %612 = arith.subf %611, %604 : vector<16x32xf32>
    %613 = arith.mulf %612, %572 : vector<16x32xf32>
    %614 = arith.addf %610, %613 : vector<16x32xf32>
    %615 = arith.truncf %609 : vector<16x32xf32> to vector<16x32xbf16>
    %cst_281 = arith.constant dense<0.000000e+00> : vector<16x256xf32>
    %616 = tpu.matmul %615, %528, %cst_281 {dimension_numbers = #tpu.dot_dimension_numbers<[1], [0], [0], [1], [0, 0, 1, 1], [], []>} : vector<16x32xbf16>, vector<32x256xbf16>, vector<16x256xf32> -> vector<16x256xf32>
    %617 = vector.extract_strided_slice %616 {offsets = [0, 0], sizes = [8, 128], strides = [1, 1]} : vector<16x256xf32> to vector<8x128xf32>
    %c16_282 = arith.constant 16 : index
    %c0_283 = arith.constant 0 : index
    %618 = vector.load %arg6[%c16_282, %c0_283] : memref<64x256xf32, #tpu.memory_space<vmem>>, vector<8x128xf32>
    %619 = arith.addf %617, %618 : vector<8x128xf32>
    %620 = vector.extract_strided_slice %616 {offsets = [8, 128], sizes = [8, 128], strides = [1, 1]} : vector<16x256xf32> to vector<8x128xf32>
    %c40_284 = arith.constant 40 : index
    %c128_285 = arith.constant 128 : index
    %621 = vector.load %arg6[%c40_284, %c128_285] : memref<64x256xf32, #tpu.memory_space<vmem>>, vector<8x128xf32>
    %622 = arith.addf %620, %621 : vector<8x128xf32>
    %623 = tpu.concatenate %619, %622 in 0 : vector<8x128xf32>, vector<8x128xf32> -> vector<16x128xf32>
    %624 = math.tanh %623 : vector<16x128xf32>
    %625 = vector.extract_strided_slice %624 {offsets = [0, 0], sizes = [16, 32], strides = [1, 1]} : vector<16x128xf32> to vector<16x32xf32>
    %cst_286 = arith.constant 5.000000e-01 : f32
    %626 = vector.broadcast %cst_286 : f32 to vector<16x32xf32>
    %627 = arith.mulf %626, %625 : vector<16x32xf32>
    %cst_287 = arith.constant 5.000000e-01 : f32
    %628 = vector.broadcast %cst_287 : f32 to vector<16x32xf32>
    %629 = arith.addf %627, %628 : vector<16x32xf32>
    %630 = vector.extract_strided_slice %624 {offsets = [0, 32], sizes = [16, 32], strides = [1, 1]} : vector<16x128xf32> to vector<16x32xf32>
    %cst_288 = arith.constant 5.000000e-01 : f32
    %631 = vector.broadcast %cst_288 : f32 to vector<16x32xf32>
    %632 = arith.mulf %631, %630 : vector<16x32xf32>
    %cst_289 = arith.constant 5.000000e-01 : f32
    %633 = vector.broadcast %cst_289 : f32 to vector<16x32xf32>
    %634 = arith.addf %632, %633 : vector<16x32xf32>
    %635 = vector.extract_strided_slice %624 {offsets = [0, 64], sizes = [16, 32], strides = [1, 1]} : vector<16x128xf32> to vector<16x32xf32>
    %636 = vector.extract_strided_slice %624 {offsets = [0, 96], sizes = [16, 32], strides = [1, 1]} : vector<16x128xf32> to vector<16x32xf32>
    %cst_290 = arith.constant 5.000000e-01 : f32
    %637 = vector.broadcast %cst_290 : f32 to vector<16x32xf32>
    %638 = arith.mulf %637, %636 : vector<16x32xf32>
    %cst_291 = arith.constant 5.000000e-01 : f32
    %639 = vector.broadcast %cst_291 : f32 to vector<16x32xf32>
    %640 = arith.addf %638, %639 : vector<16x32xf32>
    %641 = arith.mulf %634, %614 : vector<16x32xf32>
    %642 = arith.mulf %629, %635 : vector<16x32xf32>
    %643 = arith.addf %641, %642 : vector<16x32xf32>
    %644 = math.tanh %643 : vector<16x32xf32>
    %645 = arith.mulf %640, %644 : vector<16x32xf32>
    %c32_292 = arith.constant 32 : index
    %c0_293 = arith.constant 0 : index
    %646 = vector.load %arg8[%c32_292, %c0_293] : memref<128x32xf32, #tpu.memory_space<vmem>>, vector<16x32xf32>
    %647 = arith.mulf %646, %645 : vector<16x32xf32>
    %cst_294 = arith.constant 1.000000e+00 : f32
    %648 = vector.broadcast %cst_294 : f32 to vector<16x32xf32>
    %649 = arith.subf %648, %646 : vector<16x32xf32>
    %650 = arith.mulf %649, %609 : vector<16x32xf32>
    %651 = arith.addf %647, %650 : vector<16x32xf32>
    %652 = arith.mulf %646, %643 : vector<16x32xf32>
    %cst_295 = arith.constant 1.000000e+00 : f32
    %653 = vector.broadcast %cst_295 : f32 to vector<16x32xf32>
    %654 = arith.subf %653, %646 : vector<16x32xf32>
    %655 = arith.mulf %654, %614 : vector<16x32xf32>
    %656 = arith.addf %652, %655 : vector<16x32xf32>
    %657 = arith.truncf %651 : vector<16x32xf32> to vector<16x32xbf16>
    %cst_296 = arith.constant dense<0.000000e+00> : vector<16x256xf32>
    %658 = tpu.matmul %657, %528, %cst_296 {dimension_numbers = #tpu.dot_dimension_numbers<[1], [0], [0], [1], [0, 0, 1, 1], [], []>} : vector<16x32xbf16>, vector<32x256xbf16>, vector<16x256xf32> -> vector<16x256xf32>
    %659 = vector.extract_strided_slice %658 {offsets = [0, 0], sizes = [8, 128], strides = [1, 1]} : vector<16x256xf32> to vector<8x128xf32>
    %c24_297 = arith.constant 24 : index
    %c0_298 = arith.constant 0 : index
    %660 = vector.load %arg6[%c24_297, %c0_298] : memref<64x256xf32, #tpu.memory_space<vmem>>, vector<8x128xf32>
    %661 = arith.addf %659, %660 : vector<8x128xf32>
    %662 = vector.extract_strided_slice %658 {offsets = [8, 128], sizes = [8, 128], strides = [1, 1]} : vector<16x256xf32> to vector<8x128xf32>
    %c32_299 = arith.constant 32 : index
    %c128_300 = arith.constant 128 : index
    %663 = vector.load %arg6[%c32_299, %c128_300] : memref<64x256xf32, #tpu.memory_space<vmem>>, vector<8x128xf32>
    %664 = arith.addf %662, %663 : vector<8x128xf32>
    %665 = tpu.concatenate %661, %664 in 0 : vector<8x128xf32>, vector<8x128xf32> -> vector<16x128xf32>
    %666 = math.tanh %665 : vector<16x128xf32>
    %667 = vector.extract_strided_slice %666 {offsets = [0, 0], sizes = [16, 32], strides = [1, 1]} : vector<16x128xf32> to vector<16x32xf32>
    %cst_301 = arith.constant 5.000000e-01 : f32
    %668 = vector.broadcast %cst_301 : f32 to vector<16x32xf32>
    %669 = arith.mulf %668, %667 : vector<16x32xf32>
    %cst_302 = arith.constant 5.000000e-01 : f32
    %670 = vector.broadcast %cst_302 : f32 to vector<16x32xf32>
    %671 = arith.addf %669, %670 : vector<16x32xf32>
    %672 = vector.extract_strided_slice %666 {offsets = [0, 32], sizes = [16, 32], strides = [1, 1]} : vector<16x128xf32> to vector<16x32xf32>
    %cst_303 = arith.constant 5.000000e-01 : f32
    %673 = vector.broadcast %cst_303 : f32 to vector<16x32xf32>
    %674 = arith.mulf %673, %672 : vector<16x32xf32>
    %cst_304 = arith.constant 5.000000e-01 : f32
    %675 = vector.broadcast %cst_304 : f32 to vector<16x32xf32>
    %676 = arith.addf %674, %675 : vector<16x32xf32>
    %677 = vector.extract_strided_slice %666 {offsets = [0, 64], sizes = [16, 32], strides = [1, 1]} : vector<16x128xf32> to vector<16x32xf32>
    %678 = vector.extract_strided_slice %666 {offsets = [0, 96], sizes = [16, 32], strides = [1, 1]} : vector<16x128xf32> to vector<16x32xf32>
    %cst_305 = arith.constant 5.000000e-01 : f32
    %679 = vector.broadcast %cst_305 : f32 to vector<16x32xf32>
    %680 = arith.mulf %679, %678 : vector<16x32xf32>
    %cst_306 = arith.constant 5.000000e-01 : f32
    %681 = vector.broadcast %cst_306 : f32 to vector<16x32xf32>
    %682 = arith.addf %680, %681 : vector<16x32xf32>
    %683 = arith.mulf %676, %656 : vector<16x32xf32>
    %684 = arith.mulf %671, %677 : vector<16x32xf32>
    %685 = arith.addf %683, %684 : vector<16x32xf32>
    %686 = math.tanh %685 : vector<16x32xf32>
    %687 = arith.mulf %682, %686 : vector<16x32xf32>
    %c48_307 = arith.constant 48 : index
    %c0_308 = arith.constant 0 : index
    %688 = vector.load %arg8[%c48_307, %c0_308] : memref<128x32xf32, #tpu.memory_space<vmem>>, vector<16x32xf32>
    %689 = arith.mulf %688, %687 : vector<16x32xf32>
    %cst_309 = arith.constant 1.000000e+00 : f32
    %690 = vector.broadcast %cst_309 : f32 to vector<16x32xf32>
    %691 = arith.subf %690, %688 : vector<16x32xf32>
    %692 = arith.mulf %691, %651 : vector<16x32xf32>
    %693 = arith.addf %689, %692 : vector<16x32xf32>
    %694 = arith.mulf %688, %685 : vector<16x32xf32>
    %cst_310 = arith.constant 1.000000e+00 : f32
    %695 = vector.broadcast %cst_310 : f32 to vector<16x32xf32>
    %696 = arith.subf %695, %688 : vector<16x32xf32>
    %697 = arith.mulf %696, %656 : vector<16x32xf32>
    %698 = arith.addf %694, %697 : vector<16x32xf32>
    %699 = arith.truncf %693 : vector<16x32xf32> to vector<16x32xbf16>
    %cst_311 = arith.constant dense<0.000000e+00> : vector<16x256xf32>
    %700 = tpu.matmul %699, %528, %cst_311 {dimension_numbers = #tpu.dot_dimension_numbers<[1], [0], [0], [1], [0, 0, 1, 1], [], []>} : vector<16x32xbf16>, vector<32x256xbf16>, vector<16x256xf32> -> vector<16x256xf32>
    %701 = vector.extract_strided_slice %700 {offsets = [0, 0], sizes = [8, 128], strides = [1, 1]} : vector<16x256xf32> to vector<8x128xf32>
    %c32_312 = arith.constant 32 : index
    %c0_313 = arith.constant 0 : index
    %702 = vector.load %arg6[%c32_312, %c0_313] : memref<64x256xf32, #tpu.memory_space<vmem>>, vector<8x128xf32>
    %703 = arith.addf %701, %702 : vector<8x128xf32>
    %704 = vector.extract_strided_slice %700 {offsets = [8, 128], sizes = [8, 128], strides = [1, 1]} : vector<16x256xf32> to vector<8x128xf32>
    %c24_314 = arith.constant 24 : index
    %c128_315 = arith.constant 128 : index
    %705 = vector.load %arg6[%c24_314, %c128_315] : memref<64x256xf32, #tpu.memory_space<vmem>>, vector<8x128xf32>
    %706 = arith.addf %704, %705 : vector<8x128xf32>
    %707 = tpu.concatenate %703, %706 in 0 : vector<8x128xf32>, vector<8x128xf32> -> vector<16x128xf32>
    %708 = math.tanh %707 : vector<16x128xf32>
    %709 = vector.extract_strided_slice %708 {offsets = [0, 0], sizes = [16, 32], strides = [1, 1]} : vector<16x128xf32> to vector<16x32xf32>
    %cst_316 = arith.constant 5.000000e-01 : f32
    %710 = vector.broadcast %cst_316 : f32 to vector<16x32xf32>
    %711 = arith.mulf %710, %709 : vector<16x32xf32>
    %cst_317 = arith.constant 5.000000e-01 : f32
    %712 = vector.broadcast %cst_317 : f32 to vector<16x32xf32>
    %713 = arith.addf %711, %712 : vector<16x32xf32>
    %714 = vector.extract_strided_slice %708 {offsets = [0, 32], sizes = [16, 32], strides = [1, 1]} : vector<16x128xf32> to vector<16x32xf32>
    %cst_318 = arith.constant 5.000000e-01 : f32
    %715 = vector.broadcast %cst_318 : f32 to vector<16x32xf32>
    %716 = arith.mulf %715, %714 : vector<16x32xf32>
    %cst_319 = arith.constant 5.000000e-01 : f32
    %717 = vector.broadcast %cst_319 : f32 to vector<16x32xf32>
    %718 = arith.addf %716, %717 : vector<16x32xf32>
    %719 = vector.extract_strided_slice %708 {offsets = [0, 64], sizes = [16, 32], strides = [1, 1]} : vector<16x128xf32> to vector<16x32xf32>
    %720 = vector.extract_strided_slice %708 {offsets = [0, 96], sizes = [16, 32], strides = [1, 1]} : vector<16x128xf32> to vector<16x32xf32>
    %cst_320 = arith.constant 5.000000e-01 : f32
    %721 = vector.broadcast %cst_320 : f32 to vector<16x32xf32>
    %722 = arith.mulf %721, %720 : vector<16x32xf32>
    %cst_321 = arith.constant 5.000000e-01 : f32
    %723 = vector.broadcast %cst_321 : f32 to vector<16x32xf32>
    %724 = arith.addf %722, %723 : vector<16x32xf32>
    %725 = arith.mulf %718, %698 : vector<16x32xf32>
    %726 = arith.mulf %713, %719 : vector<16x32xf32>
    %727 = arith.addf %725, %726 : vector<16x32xf32>
    %728 = math.tanh %727 : vector<16x32xf32>
    %729 = arith.mulf %724, %728 : vector<16x32xf32>
    %c64_322 = arith.constant 64 : index
    %c0_323 = arith.constant 0 : index
    %730 = vector.load %arg8[%c64_322, %c0_323] : memref<128x32xf32, #tpu.memory_space<vmem>>, vector<16x32xf32>
    %731 = arith.mulf %730, %729 : vector<16x32xf32>
    %cst_324 = arith.constant 1.000000e+00 : f32
    %732 = vector.broadcast %cst_324 : f32 to vector<16x32xf32>
    %733 = arith.subf %732, %730 : vector<16x32xf32>
    %734 = arith.mulf %733, %693 : vector<16x32xf32>
    %735 = arith.addf %731, %734 : vector<16x32xf32>
    %736 = arith.mulf %730, %727 : vector<16x32xf32>
    %cst_325 = arith.constant 1.000000e+00 : f32
    %737 = vector.broadcast %cst_325 : f32 to vector<16x32xf32>
    %738 = arith.subf %737, %730 : vector<16x32xf32>
    %739 = arith.mulf %738, %698 : vector<16x32xf32>
    %740 = arith.addf %736, %739 : vector<16x32xf32>
    %741 = arith.truncf %735 : vector<16x32xf32> to vector<16x32xbf16>
    %cst_326 = arith.constant dense<0.000000e+00> : vector<16x256xf32>
    %742 = tpu.matmul %741, %528, %cst_326 {dimension_numbers = #tpu.dot_dimension_numbers<[1], [0], [0], [1], [0, 0, 1, 1], [], []>} : vector<16x32xbf16>, vector<32x256xbf16>, vector<16x256xf32> -> vector<16x256xf32>
    %743 = vector.extract_strided_slice %742 {offsets = [0, 0], sizes = [8, 128], strides = [1, 1]} : vector<16x256xf32> to vector<8x128xf32>
    %c40_327 = arith.constant 40 : index
    %c0_328 = arith.constant 0 : index
    %744 = vector.load %arg6[%c40_327, %c0_328] : memref<64x256xf32, #tpu.memory_space<vmem>>, vector<8x128xf32>
    %745 = arith.addf %743, %744 : vector<8x128xf32>
    %746 = vector.extract_strided_slice %742 {offsets = [8, 128], sizes = [8, 128], strides = [1, 1]} : vector<16x256xf32> to vector<8x128xf32>
    %c16_329 = arith.constant 16 : index
    %c128_330 = arith.constant 128 : index
    %747 = vector.load %arg6[%c16_329, %c128_330] : memref<64x256xf32, #tpu.memory_space<vmem>>, vector<8x128xf32>
    %748 = arith.addf %746, %747 : vector<8x128xf32>
    %749 = tpu.concatenate %745, %748 in 0 : vector<8x128xf32>, vector<8x128xf32> -> vector<16x128xf32>
    %750 = math.tanh %749 : vector<16x128xf32>
    %751 = vector.extract_strided_slice %750 {offsets = [0, 0], sizes = [16, 32], strides = [1, 1]} : vector<16x128xf32> to vector<16x32xf32>
    %cst_331 = arith.constant 5.000000e-01 : f32
    %752 = vector.broadcast %cst_331 : f32 to vector<16x32xf32>
    %753 = arith.mulf %752, %751 : vector<16x32xf32>
    %cst_332 = arith.constant 5.000000e-01 : f32
    %754 = vector.broadcast %cst_332 : f32 to vector<16x32xf32>
    %755 = arith.addf %753, %754 : vector<16x32xf32>
    %756 = vector.extract_strided_slice %750 {offsets = [0, 32], sizes = [16, 32], strides = [1, 1]} : vector<16x128xf32> to vector<16x32xf32>
    %cst_333 = arith.constant 5.000000e-01 : f32
    %757 = vector.broadcast %cst_333 : f32 to vector<16x32xf32>
    %758 = arith.mulf %757, %756 : vector<16x32xf32>
    %cst_334 = arith.constant 5.000000e-01 : f32
    %759 = vector.broadcast %cst_334 : f32 to vector<16x32xf32>
    %760 = arith.addf %758, %759 : vector<16x32xf32>
    %761 = vector.extract_strided_slice %750 {offsets = [0, 64], sizes = [16, 32], strides = [1, 1]} : vector<16x128xf32> to vector<16x32xf32>
    %762 = vector.extract_strided_slice %750 {offsets = [0, 96], sizes = [16, 32], strides = [1, 1]} : vector<16x128xf32> to vector<16x32xf32>
    %cst_335 = arith.constant 5.000000e-01 : f32
    %763 = vector.broadcast %cst_335 : f32 to vector<16x32xf32>
    %764 = arith.mulf %763, %762 : vector<16x32xf32>
    %cst_336 = arith.constant 5.000000e-01 : f32
    %765 = vector.broadcast %cst_336 : f32 to vector<16x32xf32>
    %766 = arith.addf %764, %765 : vector<16x32xf32>
    %767 = arith.mulf %760, %740 : vector<16x32xf32>
    %768 = arith.mulf %755, %761 : vector<16x32xf32>
    %769 = arith.addf %767, %768 : vector<16x32xf32>
    %770 = math.tanh %769 : vector<16x32xf32>
    %771 = arith.mulf %766, %770 : vector<16x32xf32>
    %c80_337 = arith.constant 80 : index
    %c0_338 = arith.constant 0 : index
    %772 = vector.load %arg8[%c80_337, %c0_338] : memref<128x32xf32, #tpu.memory_space<vmem>>, vector<16x32xf32>
    %773 = arith.mulf %772, %771 : vector<16x32xf32>
    %cst_339 = arith.constant 1.000000e+00 : f32
    %774 = vector.broadcast %cst_339 : f32 to vector<16x32xf32>
    %775 = arith.subf %774, %772 : vector<16x32xf32>
    %776 = arith.mulf %775, %735 : vector<16x32xf32>
    %777 = arith.addf %773, %776 : vector<16x32xf32>
    %778 = arith.mulf %772, %769 : vector<16x32xf32>
    %cst_340 = arith.constant 1.000000e+00 : f32
    %779 = vector.broadcast %cst_340 : f32 to vector<16x32xf32>
    %780 = arith.subf %779, %772 : vector<16x32xf32>
    %781 = arith.mulf %780, %740 : vector<16x32xf32>
    %782 = arith.addf %778, %781 : vector<16x32xf32>
    %783 = arith.truncf %777 : vector<16x32xf32> to vector<16x32xbf16>
    %cst_341 = arith.constant dense<0.000000e+00> : vector<16x256xf32>
    %784 = tpu.matmul %783, %528, %cst_341 {dimension_numbers = #tpu.dot_dimension_numbers<[1], [0], [0], [1], [0, 0, 1, 1], [], []>} : vector<16x32xbf16>, vector<32x256xbf16>, vector<16x256xf32> -> vector<16x256xf32>
    %785 = vector.extract_strided_slice %784 {offsets = [0, 0], sizes = [8, 128], strides = [1, 1]} : vector<16x256xf32> to vector<8x128xf32>
    %c48_342 = arith.constant 48 : index
    %c0_343 = arith.constant 0 : index
    %786 = vector.load %arg6[%c48_342, %c0_343] : memref<64x256xf32, #tpu.memory_space<vmem>>, vector<8x128xf32>
    %787 = arith.addf %785, %786 : vector<8x128xf32>
    %788 = vector.extract_strided_slice %784 {offsets = [8, 128], sizes = [8, 128], strides = [1, 1]} : vector<16x256xf32> to vector<8x128xf32>
    %c8_344 = arith.constant 8 : index
    %c128_345 = arith.constant 128 : index
    %789 = vector.load %arg6[%c8_344, %c128_345] : memref<64x256xf32, #tpu.memory_space<vmem>>, vector<8x128xf32>
    %790 = arith.addf %788, %789 : vector<8x128xf32>
    %791 = tpu.concatenate %787, %790 in 0 : vector<8x128xf32>, vector<8x128xf32> -> vector<16x128xf32>
    %792 = math.tanh %791 : vector<16x128xf32>
    %793 = vector.extract_strided_slice %792 {offsets = [0, 0], sizes = [16, 32], strides = [1, 1]} : vector<16x128xf32> to vector<16x32xf32>
    %cst_346 = arith.constant 5.000000e-01 : f32
    %794 = vector.broadcast %cst_346 : f32 to vector<16x32xf32>
    %795 = arith.mulf %794, %793 : vector<16x32xf32>
    %cst_347 = arith.constant 5.000000e-01 : f32
    %796 = vector.broadcast %cst_347 : f32 to vector<16x32xf32>
    %797 = arith.addf %795, %796 : vector<16x32xf32>
    %798 = vector.extract_strided_slice %792 {offsets = [0, 32], sizes = [16, 32], strides = [1, 1]} : vector<16x128xf32> to vector<16x32xf32>
    %cst_348 = arith.constant 5.000000e-01 : f32
    %799 = vector.broadcast %cst_348 : f32 to vector<16x32xf32>
    %800 = arith.mulf %799, %798 : vector<16x32xf32>
    %cst_349 = arith.constant 5.000000e-01 : f32
    %801 = vector.broadcast %cst_349 : f32 to vector<16x32xf32>
    %802 = arith.addf %800, %801 : vector<16x32xf32>
    %803 = vector.extract_strided_slice %792 {offsets = [0, 64], sizes = [16, 32], strides = [1, 1]} : vector<16x128xf32> to vector<16x32xf32>
    %804 = vector.extract_strided_slice %792 {offsets = [0, 96], sizes = [16, 32], strides = [1, 1]} : vector<16x128xf32> to vector<16x32xf32>
    %cst_350 = arith.constant 5.000000e-01 : f32
    %805 = vector.broadcast %cst_350 : f32 to vector<16x32xf32>
    %806 = arith.mulf %805, %804 : vector<16x32xf32>
    %cst_351 = arith.constant 5.000000e-01 : f32
    %807 = vector.broadcast %cst_351 : f32 to vector<16x32xf32>
    %808 = arith.addf %806, %807 : vector<16x32xf32>
    %809 = arith.mulf %802, %782 : vector<16x32xf32>
    %810 = arith.mulf %797, %803 : vector<16x32xf32>
    %811 = arith.addf %809, %810 : vector<16x32xf32>
    %812 = math.tanh %811 : vector<16x32xf32>
    %813 = arith.mulf %808, %812 : vector<16x32xf32>
    %c96_352 = arith.constant 96 : index
    %c0_353 = arith.constant 0 : index
    %814 = vector.load %arg8[%c96_352, %c0_353] : memref<128x32xf32, #tpu.memory_space<vmem>>, vector<16x32xf32>
    %815 = arith.mulf %814, %813 : vector<16x32xf32>
    %cst_354 = arith.constant 1.000000e+00 : f32
    %816 = vector.broadcast %cst_354 : f32 to vector<16x32xf32>
    %817 = arith.subf %816, %814 : vector<16x32xf32>
    %818 = arith.mulf %817, %777 : vector<16x32xf32>
    %819 = arith.addf %815, %818 : vector<16x32xf32>
    %820 = arith.mulf %814, %811 : vector<16x32xf32>
    %cst_355 = arith.constant 1.000000e+00 : f32
    %821 = vector.broadcast %cst_355 : f32 to vector<16x32xf32>
    %822 = arith.subf %821, %814 : vector<16x32xf32>
    %823 = arith.mulf %822, %782 : vector<16x32xf32>
    %824 = arith.addf %820, %823 : vector<16x32xf32>
    %825 = arith.truncf %819 : vector<16x32xf32> to vector<16x32xbf16>
    %cst_356 = arith.constant dense<0.000000e+00> : vector<16x256xf32>
    %826 = tpu.matmul %825, %528, %cst_356 {dimension_numbers = #tpu.dot_dimension_numbers<[1], [0], [0], [1], [0, 0, 1, 1], [], []>} : vector<16x32xbf16>, vector<32x256xbf16>, vector<16x256xf32> -> vector<16x256xf32>
    %827 = vector.extract_strided_slice %826 {offsets = [0, 0], sizes = [8, 128], strides = [1, 1]} : vector<16x256xf32> to vector<8x128xf32>
    %c56_357 = arith.constant 56 : index
    %c0_358 = arith.constant 0 : index
    %828 = vector.load %arg6[%c56_357, %c0_358] : memref<64x256xf32, #tpu.memory_space<vmem>>, vector<8x128xf32>
    %829 = arith.addf %827, %828 : vector<8x128xf32>
    %830 = vector.extract_strided_slice %826 {offsets = [8, 128], sizes = [8, 128], strides = [1, 1]} : vector<16x256xf32> to vector<8x128xf32>
    %c0_359 = arith.constant 0 : index
    %c128_360 = arith.constant 128 : index
    %831 = vector.load %arg6[%c0_359, %c128_360] : memref<64x256xf32, #tpu.memory_space<vmem>>, vector<8x128xf32>
    %832 = arith.addf %830, %831 : vector<8x128xf32>
    %833 = tpu.concatenate %829, %832 in 0 : vector<8x128xf32>, vector<8x128xf32> -> vector<16x128xf32>
    %834 = math.tanh %833 : vector<16x128xf32>
    %835 = vector.extract_strided_slice %834 {offsets = [0, 0], sizes = [16, 32], strides = [1, 1]} : vector<16x128xf32> to vector<16x32xf32>
    %cst_361 = arith.constant 5.000000e-01 : f32
    %836 = vector.broadcast %cst_361 : f32 to vector<16x32xf32>
    %837 = arith.mulf %836, %835 : vector<16x32xf32>
    %cst_362 = arith.constant 5.000000e-01 : f32
    %838 = vector.broadcast %cst_362 : f32 to vector<16x32xf32>
    %839 = arith.addf %837, %838 : vector<16x32xf32>
    %840 = vector.extract_strided_slice %834 {offsets = [0, 32], sizes = [16, 32], strides = [1, 1]} : vector<16x128xf32> to vector<16x32xf32>
    %cst_363 = arith.constant 5.000000e-01 : f32
    %841 = vector.broadcast %cst_363 : f32 to vector<16x32xf32>
    %842 = arith.mulf %841, %840 : vector<16x32xf32>
    %cst_364 = arith.constant 5.000000e-01 : f32
    %843 = vector.broadcast %cst_364 : f32 to vector<16x32xf32>
    %844 = arith.addf %842, %843 : vector<16x32xf32>
    %845 = vector.extract_strided_slice %834 {offsets = [0, 64], sizes = [16, 32], strides = [1, 1]} : vector<16x128xf32> to vector<16x32xf32>
    %846 = vector.extract_strided_slice %834 {offsets = [0, 96], sizes = [16, 32], strides = [1, 1]} : vector<16x128xf32> to vector<16x32xf32>
    %cst_365 = arith.constant 5.000000e-01 : f32
    %847 = vector.broadcast %cst_365 : f32 to vector<16x32xf32>
    %848 = arith.mulf %847, %846 : vector<16x32xf32>
    %cst_366 = arith.constant 5.000000e-01 : f32
    %849 = vector.broadcast %cst_366 : f32 to vector<16x32xf32>
    %850 = arith.addf %848, %849 : vector<16x32xf32>
    %851 = arith.mulf %844, %824 : vector<16x32xf32>
    %852 = arith.mulf %839, %845 : vector<16x32xf32>
    %853 = arith.addf %851, %852 : vector<16x32xf32>
    %854 = math.tanh %853 : vector<16x32xf32>
    %855 = arith.mulf %850, %854 : vector<16x32xf32>
    %c112_367 = arith.constant 112 : index
    %c0_368 = arith.constant 0 : index
    %856 = vector.load %arg8[%c112_367, %c0_368] : memref<128x32xf32, #tpu.memory_space<vmem>>, vector<16x32xf32>
    %857 = arith.mulf %856, %855 : vector<16x32xf32>
    %cst_369 = arith.constant 1.000000e+00 : f32
    %858 = vector.broadcast %cst_369 : f32 to vector<16x32xf32>
    %859 = arith.subf %858, %856 : vector<16x32xf32>
    %860 = arith.mulf %859, %819 : vector<16x32xf32>
    %861 = arith.addf %857, %860 : vector<16x32xf32>
    %862 = vector.extract_strided_slice %861 {offsets = [0, 0], sizes = [8, 32], strides = [1, 1]} : vector<16x32xf32> to vector<8x32xf32>
    %c0_370 = arith.constant 0 : index
    %c0_371 = arith.constant 0 : index
    %863 = vector.load %arg4[%c0_370, %c0_371] : memref<64x8xf32, #tpu.memory_space<vmem>>, vector<32x1xf32>
    %cst_372 = arith.constant dense<0.000000e+00> : vector<8x1xf32>
    %864 = tpu.matmul %862, %863, %cst_372 {dimension_numbers = #tpu.dot_dimension_numbers<[1], [0], [0], [1], [0, 0, 1, 1], [], []>} : vector<8x32xf32>, vector<32x1xf32>, vector<8x1xf32> -> vector<8x1xf32>
    %865 = vector.extract_strided_slice %861 {offsets = [8, 0], sizes = [8, 32], strides = [1, 1]} : vector<16x32xf32> to vector<8x32xf32>
    %c32_373 = arith.constant 32 : index
    %c0_374 = arith.constant 0 : index
    %866 = vector.load %arg4[%c32_373, %c0_374] : memref<64x8xf32, #tpu.memory_space<vmem>>, vector<32x1xf32>
    %cst_375 = arith.constant dense<0.000000e+00> : vector<8x1xf32>
    %867 = tpu.matmul %865, %866, %cst_375 {dimension_numbers = #tpu.dot_dimension_numbers<[1], [0], [0], [1], [0, 0, 1, 1], [], []>} : vector<8x32xf32>, vector<32x1xf32>, vector<8x1xf32> -> vector<8x1xf32>
    %868 = arith.addf %864, %867 : vector<8x1xf32>
    %c0_376 = arith.constant 0 : index
    %c1_377 = arith.constant 1 : index
    %869 = vector.load %arg4[%c0_376, %c1_377] : memref<64x8xf32, #tpu.memory_space<vmem>>, vector<1x1xf32>
    %870 = vector.broadcast %869 : vector<1x1xf32> to vector<8x1xf32>
    %871 = arith.addf %868, %870 : vector<8x1xf32>
    %872 = arith.negf %871 : vector<8x1xf32>
    %873 = math.exp %872 : vector<8x1xf32>
    %cst_378 = arith.constant 1.000000e+00 : f32
    %874 = vector.broadcast %cst_378 : f32 to vector<8x1xf32>
    %875 = arith.addf %874, %873 : vector<8x1xf32>
    %876 = arith.divf %874, %875 : vector<8x1xf32>
    %c0_379 = arith.constant 0 : index
    %c0_380 = arith.constant 0 : index
    %877 = vector.load %arg5[%c0_379, %c0_380] : memref<8x1xf32, #tpu.memory_space<vmem>>, vector<8x1xf32>
    tpu.vector_store %arg5[%c0_379, %c0_380], %876 {strides = array<i32>} : memref<8x1xf32, #tpu.memory_space<vmem>>, vector<8x1xf32>,
    return
  }
}

</mosaic_0001>

<llo_original>
// kernel: text_classifier_lstm_forward.1
$region0: #{text_classifier_lstm_forward.1}
  #allocation0 [shape = 'u32[]', space=smem, size = 0x4, offset = 0x4, fixed_abs, tag = 'smem constant byte address 0x4 - core index']
  #allocation1 [shape = 'u32[144,128]{1,0:T(1,128)}', space=vmem, size = 0x12000, scoped, tag = 'internal scratch']
  #allocation2 [shape = 'f32[64,256]{1,0:T(8,128)}', space=vmem, size = 0x10000, scoped, tag = 'scratch operand']
  #allocation3 [shape = 'f32[64,64]{1,0:T(8,128)}', space=vmem, size = 0x8000, scoped, tag = 'scratch operand']
  #allocation4 [shape = 'f32[128,32]{1,0:T(8,128)}', space=vmem, size = 0x10000, scoped, tag = 'scratch operand']
  %s0 = inlined_call_operand.vmem [shape: s32[2,8], index: 0, kind: input, shape index: {}]
  %s1 = inlined_call_operand.vmem [shape: s32[2], index: 1, kind: input, shape index: {}]
  %s2 = inlined_call_operand.hbm [shape: bf16[128,256], index: 2, kind: input, shape index: {}]
  %s3 = inlined_call_operand.hbm [shape: f32[72,256], index: 3, kind: input, shape index: {}]
  %s4 = inlined_call_operand.vmem [shape: f32[64,8], index: 4, kind: input, shape index: {}]
  %s5 = inlined_call_operand.vmem [shape: f32[8,1], index: 5, kind: output, shape index: {}]
  %s6 = sld [smem:[#allocation0]]
  $region46: #{text_classifier_lstm_forward.1} parent=0
    _
  %s8 = ssub.s32 1, %s6
  %s9 = scalar_select 0, %s8, %s6
  $region1: #{text_classifier_lstm_forward.1} parent=0
    #allocation5 [shape = 'u8[1024]{0}', space=smem, size = 0x400, scoped, tag = 'input window, operand 0, single buffered']
    #allocation6 [shape = 's32[1]{0}', space=sflag, size = 0x4, scoped, tag = 'scoped memory for text_classifier_lstm_forward.1']
    #allocation7 [shape = 's32[1]{0}', space=sflag, size = 0x4, scoped, tag = 'scoped memory for text_classifier_lstm_forward.1']
    #allocation8 [shape = 'u8[512]{0}', space=smem, size = 0x200, scoped, tag = 'input window, operand 1, single buffered']
    #allocation9 [shape = 's32[1]{0}', space=sflag, size = 0x4, scoped, tag = 'scoped memory for text_classifier_lstm_forward.1']
    #allocation10 [shape = 'u8[65536]{0}', space=vmem, size = 0x10000, scoped, tag = 'input window, operand 2, single buffered']
    #allocation11 [shape = 'u8[73728]{0}', space=vmem, size = 0x12000, scoped, tag = 'input window, operand 3, single buffered']
    #allocation12 [shape = 's32[1]{0}', space=sflag, size = 0x4, scoped, tag = 'scoped memory for text_classifier_lstm_forward.1']
    %10 = vsyncpa [#allocation7], 0
    %11 = vsyncpa [#allocation9], 0
    %12 = vsyncpa [#allocation6], 0
    %13 = vsyncpa [#allocation12], 0
    // Predicated region
    $region2: #{text_classifier_lstm_forward.1} parent=1 // pred_check
      _
    $region3: #{text_classifier_lstm_forward.1} parent=1 // pred_check_branch
      %15 = sbr.rel (0) target = $region5
    $region4: #{text_classifier_lstm_forward.1} parent=1 // pred_region
      %s17 = ssub.s32 32, 32
      %18 = vsyncadd [#allocation7], %s17
      %s20 = sshll.u32 %s0, 4
      %s21 = int_to_ptr.vmem [resolvable:$true] %s20
      %23 = dma.vmem_to_smem %s21, 32, [#allocation5], [#allocation7]
    $region5: #{text_classifier_lstm_forward.1} parent=1 // pred_fallthru
      _
    // Predicated region
    $region6: #{text_classifier_lstm_forward.1} parent=1 // pred_check
      _
    $region7: #{text_classifier_lstm_forward.1} parent=1 // pred_check_branch
      %25 = sbr.rel (0) target = $region9
    $region8: #{text_classifier_lstm_forward.1} parent=1 // pred_region
      %s27 = ssub.s32 16, 16
      %28 = vsyncadd [#allocation9], %s27
      %s30 = sshll.u32 %s1, 4
      %s31 = int_to_ptr.vmem [resolvable:$true] %s30
      %33 = dma.vmem_to_smem %s31, 16, [#allocation8], [#allocation9]
    $region9: #{text_classifier_lstm_forward.1} parent=1 // pred_fallthru
      _
    // Predicated region
    $region10: #{text_classifier_lstm_forward.1} parent=1 // pred_check
      _
    $region11: #{text_classifier_lstm_forward.1} parent=1 // pred_check_branch
      %35 = sbr.rel (0) target = $region13
    $region12: #{text_classifier_lstm_forward.1} parent=1 // pred_region
      %s37 = ssub.s32 2048, 2048
      %38 = vsyncadd [#allocation6], %s37
      %s39 = sshll.u32 [#allocation10], 4
      %s40 = int_to_ptr.vmem [resolvable:$true] %s39
      %45 = dma.hbm_to_vmem [thread:$0]  %s2, 2048, %s40, [#allocation6], 128, 128, 8
    $region13: #{text_classifier_lstm_forward.1} parent=1 // pred_fallthru
      _
    // Predicated region
    $region14: #{text_classifier_lstm_forward.1} parent=1 // pred_check
      _
    $region15: #{text_classifier_lstm_forward.1} parent=1 // pred_check_branch
      %47 = sbr.rel (0) target = $region17
    $region16: #{text_classifier_lstm_forward.1} parent=1 // pred_region
      %s49 = ssub.s32 2304, 2304
      %50 = vsyncadd [#allocation12], %s49
      %s51 = sshll.u32 [#allocation11], 4
      %s52 = int_to_ptr.vmem [resolvable:$true] %s51
      %57 = dma.hbm_to_vmem [thread:$0]  %s3, 2304, %s52, [#allocation12], 256, 256, 16
    $region17: #{text_classifier_lstm_forward.1} parent=1 // pred_fallthru
      _
    // Predicated region
    $region18: #{text_classifier_lstm_forward.1} parent=1 // pred_check
      _
    $region19: #{text_classifier_lstm_forward.1} parent=1 // pred_check_branch
      %59 = sbr.rel (0) target = $region21
    $region20: #{text_classifier_lstm_forward.1} parent=1 // pred_region
      _
    $region21: #{text_classifier_lstm_forward.1} parent=1 // pred_fallthru
      _
    // Predicated region
    $region22: #{text_classifier_lstm_forward.1} parent=1 // pred_check
      _
    $region23: #{text_classifier_lstm_forward.1} parent=1 // pred_check_branch
      %61 = sbr.rel (0) target = $region25
    $region24: #{text_classifier_lstm_forward.1} parent=1 // pred_region
      %62 = dma.done [#allocation7], 32
    $region25: #{text_classifier_lstm_forward.1} parent=1 // pred_fallthru
      _
    // Predicated region
    $region26: #{text_classifier_lstm_forward.1} parent=1 // pred_check
      _
    $region27: #{text_classifier_lstm_forward.1} parent=1 // pred_check_branch
      %64 = sbr.rel (0) target = $region29
    $region28: #{text_classifier_lstm_forward.1} parent=1 // pred_region
      %65 = dma.done [#allocation9], 16
    $region29: #{text_classifier_lstm_forward.1} parent=1 // pred_fallthru
      _
    // Predicated region
    $region30: #{text_classifier_lstm_forward.1} parent=1 // pred_check
      _
    $region31: #{text_classifier_lstm_forward.1} parent=1 // pred_check_branch
      %67 = sbr.rel (0) target = $region33
    $region32: #{text_classifier_lstm_forward.1} parent=1 // pred_region
      %68 = dma.done [#allocation6], 2048
    $region33: #{text_classifier_lstm_forward.1} parent=1 // pred_fallthru
      _
    // Predicated region
    $region34: #{text_classifier_lstm_forward.1} parent=1 // pred_check
      _
    $region35: #{text_classifier_lstm_forward.1} parent=1 // pred_check_branch
      %70 = sbr.rel (0) target = $region37
    $region36: #{text_classifier_lstm_forward.1} parent=1 // pred_region
      %71 = dma.done [#allocation12], 2304
    $region37: #{text_classifier_lstm_forward.1} parent=1 // pred_fallthru
      _
    %72 = sfence
    %v74 = vlaneseq
    %v75 = vshrl.u32 %v74, 7
    %vm76 = vcmp.eq.s32.totalorder %v75, 0
    %s77 = sld [smem:[#allocation8]]
    %v78 = vstv %s77
    %v79 = vsel %vm76, %v78, 0
    %vm80 = vcmp.eq.s32.totalorder %v75, 1
    %s81 = sld [smem:[#allocation8 + $0x1]]
    %v82 = vstv %s81
    %v83 = vsel %vm80, %v82, %v79
    %vm84 = vcmp.gt.s32.totalorder %v83, 0
    %v85 = vsel %vm84, 1, 0
    %v86 = vcvt.s32.f32 %v85
    %vm87 = vcmp.gt.s32.totalorder %v83, 7
    %v88 = vsel %vm87, 1, 0
    %v89 = vcvt.s32.f32 %v88
    %vm90 = vcmask 261120
    %91 = vst.msk [vmem:[#allocation4] sm:$0xff] %vm90, %v86
    %92 = vst.msk [vmem:[#allocation4 + $0x8] sm:$0xff] %vm90, %v89
    %vm93 = vcmp.gt.s32.totalorder %v83, 1
    %v94 = vsel %vm93, 1, 0
    %v95 = vcvt.s32.f32 %v94
    %vm96 = vcmp.gt.s32.totalorder %v83, 6
    %v97 = vsel %vm96, 1, 0
    %v98 = vcvt.s32.f32 %v97
    %99 = vst.msk [vmem:[#allocation4 + $0x10] sm:$0xff] %vm90, %v95
    %100 = vst.msk [vmem:[#allocation4 + $0x18] sm:$0xff] %vm90, %v98
    %vm101 = vcmp.gt.s32.totalorder %v83, 2
    %v102 = vsel %vm101, 1, 0
    %v103 = vcvt.s32.f32 %v102
    %vm104 = vcmp.gt.s32.totalorder %v83, 5
    %v105 = vsel %vm104, 1, 0
    %v106 = vcvt.s32.f32 %v105
    %107 = vst.msk [vmem:[#allocation4 + $0x20] sm:$0xff] %vm90, %v103
    %108 = vst.msk [vmem:[#allocation4 + $0x28] sm:$0xff] %vm90, %v106
    %vm109 = vcmp.gt.s32.totalorder %v83, 3
    %v110 = vsel %vm109, 1, 0
    %v111 = vcvt.s32.f32 %v110
    %vm112 = vcmp.gt.s32.totalorder %v83, 4
    %v113 = vsel %vm112, 1, 0
    %v114 = vcvt.s32.f32 %v113
    %115 = vst.msk [vmem:[#allocation4 + $0x30] sm:$0xff] %vm90, %v111
    %116 = vst.msk [vmem:[#allocation4 + $0x38] sm:$0xff] %vm90, %v114
    %117 = vst.msk [vmem:[#allocation4 + $0x40] sm:$0xff] %vm90, %v114
    %118 = vst.msk [vmem:[#allocation4 + $0x48] sm:$0xff] %vm90, %v111
    %119 = vst.msk [vmem:[#allocation4 + $0x50] sm:$0xff] %vm90, %v106
    %120 = vst.msk [vmem:[#allocation4 + $0x58] sm:$0xff] %vm90, %v103
    %121 = vst.msk [vmem:[#allocation4 + $0x60] sm:$0xff] %vm90, %v98
    %122 = vst.msk [vmem:[#allocation4 + $0x68] sm:$0xff] %vm90, %v95
    %123 = vst.msk [vmem:[#allocation4 + $0x70] sm:$0xff] %vm90, %v89
    %124 = vst.msk [vmem:[#allocation4 + $0x78] sm:$0xff] %vm90, %v86
    %125 = vst [vmem:[#allocation2] sm:$0xff] 0.0
    %126 = vst [vmem:[#allocation2 + $0x8] sm:$0xff] 0.0
    %127 = vst [vmem:[#allocation2 + $0x10] sm:$0xff] 0.0
    %128 = vst [vmem:[#allocation2 + $0x18] sm:$0xff] 0.0
    %129 = vst [vmem:[#allocation2 + $0x20] sm:$0xff] 0.0
    %130 = vst [vmem:[#allocation2 + $0x28] sm:$0xff] 0.0
    %131 = vst [vmem:[#allocation2 + $0x30] sm:$0xff] 0.0
    %132 = vst [vmem:[#allocation2 + $0x38] sm:$0xff] 0.0
    %133 = vst [vmem:[#allocation2 + $0x40] sm:$0xff] 0.0
    %134 = vst [vmem:[#allocation2 + $0x48] sm:$0xff] 0.0
    %135 = vst [vmem:[#allocation2 + $0x50] sm:$0xff] 0.0
    %136 = vst [vmem:[#allocation2 + $0x58] sm:$0xff] 0.0
    %137 = vst [vmem:[#allocation2 + $0x60] sm:$0xff] 0.0
    %138 = vst [vmem:[#allocation2 + $0x68] sm:$0xff] 0.0
    %139 = vst [vmem:[#allocation2 + $0x70] sm:$0xff] 0.0
    %140 = vst [vmem:[#allocation2 + $0x78] sm:$0xff] 0.0
    %s141 = sld [smem:[#allocation5]]
    %s142 = sshra.s32 %s141, 3
    %s143 = sand.u32 %s141, 7
    %s144 = sshra.s32 %s141, 3
    %s145 = sand.u32 %s141, 7
    %s146 = smul.u32 %s142, 2
    %s147 = smul.u32 %s146, 8
    %s148 = sadd.s32 %s147, %s145
    %s149 = scalar_lea.vmem [#allocation11], %s148
    %v150 = vld [vmem:[%s149] ss:$8 sm:$0x3]
    %v151 = vlaneseq
    %vm152 = vcmp.ge.s32.totalorder %v151, 0
    %vm153 = vcmp.lt.s32.totalorder %v151, 256
    %vm154 = vmand %vm152, %vm153
    %155 = vst.msk [vmem:[#allocation2] ss:$8 sm:$0x3] %vm154, %v150
    %156 = vst.msk [vmem:[#allocation2] ss:$8 sm:$0x0] %vm154, %v150
    %s157 = sld [smem:[#allocation5 + $0x80]]
    %s158 = sshra.s32 %s157, 3
    %s159 = sand.u32 %s157, 7
    %s160 = sshra.s32 %s157, 3
    %s161 = sand.u32 %s157, 7
    %s162 = smul.u32 %s158, 2
    %s163 = smul.u32 %s162, 8
    %s164 = sadd.s32 %s163, %s161
    %s165 = scalar_lea.vmem [#allocation11], %s164
    %v166 = vld [vmem:[%s165] ss:$8 sm:$0x3]
    %s167 = scalar_lea.vmem [#allocation2], 1
    %168 = vst.msk [vmem:[%s167] ss:$8 sm:$0x3] %vm154, %v166
    %169 = vst.msk [vmem:[%s167] ss:$8 sm:$0x0] %vm154, %v166
    %s170 = sld [smem:[#allocation5 + $0x1]]
    %s171 = sshra.s32 %s170, 3
    %s172 = sand.u32 %s170, 7
    %s173 = sshra.s32 %s170, 3
    %s174 = sand.u32 %s170, 7
    %s175 = smul.u32 %s171, 2
    %s176 = smul.u32 %s175, 8
    %s177 = sadd.s32 %s176, %s174
    %s178 = scalar_lea.vmem [#allocation11], %s177
    %v179 = vld [vmem:[%s178] ss:$8 sm:$0x3]
    %s180 = scalar_lea.vmem [#allocation2], 16
    %181 = vst.msk [vmem:[%s180] ss:$8 sm:$0x3] %vm154, %v179
    %182 = vst.msk [vmem:[%s180] ss:$8 sm:$0x0] %vm154, %v179
    %s183 = sld [smem:[#allocation5 + $0x81]]
    %s184 = sshra.s32 %s183, 3
    %s185 = sand.u32 %s183, 7
    %s186 = sshra.s32 %s183, 3
    %s187 = sand.u32 %s183, 7
    %s188 = smul.u32 %s184, 2
    %s189 = smul.u32 %s188, 8
    %s190 = sadd.s32 %s189, %s187
    %s191 = scalar_lea.vmem [#allocation11], %s190
    %v192 = vld [vmem:[%s191] ss:$8 sm:$0x3]
    %s193 = scalar_lea.vmem [#allocation2], 17
    %194 = vst.msk [vmem:[%s193] ss:$8 sm:$0x3] %vm154, %v192
    %195 = vst.msk [vmem:[%s193] ss:$8 sm:$0x0] %vm154, %v192
    %s196 = sld [smem:[#allocation5 + $0x2]]
    %s197 = sshra.s32 %s196, 3
    %s198 = sand.u32 %s196, 7
    %s199 = sshra.s32 %s196, 3
    %s200 = sand.u32 %s196, 7
    %s201 = smul.u32 %s197, 2
    %s202 = smul.u32 %s201, 8
    %s203 = sadd.s32 %s202, %s200
    %s204 = scalar_lea.vmem [#allocation11], %s203
    %v205 = vld [vmem:[%s204] ss:$8 sm:$0x3]
    %s206 = scalar_lea.vmem [#allocation2], 32
    %207 = vst.msk [vmem:[%s206] ss:$8 sm:$0x3] %vm154, %v205
    %208 = vst.msk [vmem:[%s206] ss:$8 sm:$0x0] %vm154, %v205
    %s209 = sld [smem:[#allocation5 + $0x82]]
    %s210 = sshra.s32 %s209, 3
    %s211 = sand.u32 %s209, 7
    %s212 = sshra.s32 %s209, 3
    %s213 = sand.u32 %s209, 7
    %s214 = smul.u32 %s210, 2
    %s215 = smul.u32 %s214, 8
    %s216 = sadd.s32 %s215, %s213
    %s217 = scalar_lea.vmem [#allocation11], %s216
    %v218 = vld [vmem:[%s217] ss:$8 sm:$0x3]
    %s219 = scalar_lea.vmem [#allocation2], 33
    %220 = vst.msk [vmem:[%s219] ss:$8 sm:$0x3] %vm154, %v218
    %221 = vst.msk [vmem:[%s219] ss:$8 sm:$0x0] %vm154, %v218
    %s222 = sld [smem:[#allocation5 + $0x3]]
    %s223 = sshra.s32 %s222, 3
    %s224 = sand.u32 %s222, 7
    %s225 = sshra.s32 %s222, 3
    %s226 = sand.u32 %s222, 7
    %s227 = smul.u32 %s223, 2
    %s228 = smul.u32 %s227, 8
    %s229 = sadd.s32 %s228, %s226
    %s230 = scalar_lea.vmem [#allocation11], %s229
    %v231 = vld [vmem:[%s230] ss:$8 sm:$0x3]
    %s232 = scalar_lea.vmem [#allocation2], 48
    %233 = vst.msk [vmem:[%s232] ss:$8 sm:$0x3] %vm154, %v231
    %234 = vst.msk [vmem:[%s232] ss:$8 sm:$0x0] %vm154, %v231
    %s235 = sld [smem:[#allocation5 + $0x83]]
    %s236 = sshra.s32 %s235, 3
    %s237 = sand.u32 %s235, 7
    %s238 = sshra.s32 %s235, 3
    %s239 = sand.u32 %s235, 7
    %s240 = smul.u32 %s236, 2
    %s241 = smul.u32 %s240, 8
    %s242 = sadd.s32 %s241, %s239
    %s243 = scalar_lea.vmem [#allocation11], %s242
    %v244 = vld [vmem:[%s243] ss:$8 sm:$0x3]
    %s245 = scalar_lea.vmem [#allocation2], 49
    %246 = vst.msk [vmem:[%s245] ss:$8 sm:$0x3] %vm154, %v244
    %247 = vst.msk [vmem:[%s245] ss:$8 sm:$0x0] %vm154, %v244
    %s248 = sld [smem:[#allocation5 + $0x4]]
    %s249 = sshra.s32 %s248, 3
    %s250 = sand.u32 %s248, 7
    %s251 = sshra.s32 %s248, 3
    %s252 = sand.u32 %s248, 7
    %s253 = smul.u32 %s249, 2
    %s254 = smul.u32 %s253, 8
    %s255 = sadd.s32 %s254, %s252
    %s256 = scalar_lea.vmem [#allocation11], %s255
    %v257 = vld [vmem:[%s256] ss:$8 sm:$0x3]
    %s258 = scalar_lea.vmem [#allocation2], 64
    %259 = vst.msk [vmem:[%s258] ss:$8 sm:$0x3] %vm154, %v257
    %260 = vst.msk [vmem:[%s258] ss:$8 sm:$0x0] %vm154, %v257
    %s261 = sld [smem:[#allocation5 + $0x84]]
    %s262 = sshra.s32 %s261, 3
    %s263 = sand.u32 %s261, 7
    %s264 = sshra.s32 %s261, 3
    %s265 = sand.u32 %s261, 7
    %s266 = smul.u32 %s262, 2
    %s267 = smul.u32 %s266, 8
    %s268 = sadd.s32 %s267, %s265
    %s269 = scalar_lea.vmem [#allocation11], %s268
    %v270 = vld [vmem:[%s269] ss:$8 sm:$0x3]
    %s271 = scalar_lea.vmem [#allocation2], 65
    %272 = vst.msk [vmem:[%s271] ss:$8 sm:$0x3] %vm154, %v270
    %273 = vst.msk [vmem:[%s271] ss:$8 sm:$0x0] %vm154, %v270
    %s274 = sld [smem:[#allocation5 + $0x5]]
    %s275 = sshra.s32 %s274, 3
    %s276 = sand.u32 %s274, 7
    %s277 = sshra.s32 %s274, 3
    %s278 = sand.u32 %s274, 7
    %s279 = smul.u32 %s275, 2
    %s280 = smul.u32 %s279, 8
    %s281 = sadd.s32 %s280, %s278
    %s282 = scalar_lea.vmem [#allocation11], %s281
    %v283 = vld [vmem:[%s282] ss:$8 sm:$0x3]
    %s284 = scalar_lea.vmem [#allocation2], 80
    %285 = vst.msk [vmem:[%s284] ss:$8 sm:$0x3] %vm154, %v283
    %286 = vst.msk [vmem:[%s284] ss:$8 sm:$0x0] %vm154, %v283
    %s287 = sld [smem:[#allocation5 + $0x85]]
    %s288 = sshra.s32 %s287, 3
    %s289 = sand.u32 %s287, 7
    %s290 = sshra.s32 %s287, 3
    %s291 = sand.u32 %s287, 7
    %s292 = smul.u32 %s288, 2
    %s293 = smul.u32 %s292, 8
    %s294 = sadd.s32 %s293, %s291
    %s295 = scalar_lea.vmem [#allocation11], %s294
    %v296 = vld [vmem:[%s295] ss:$8 sm:$0x3]
    %s297 = scalar_lea.vmem [#allocation2], 81
    %298 = vst.msk [vmem:[%s297] ss:$8 sm:$0x3] %vm154, %v296
    %299 = vst.msk [vmem:[%s297] ss:$8 sm:$0x0] %vm154, %v296
    %s300 = sld [smem:[#allocation5 + $0x6]]
    %s301 = sshra.s32 %s300, 3
    %s302 = sand.u32 %s300, 7
    %s303 = sshra.s32 %s300, 3
    %s304 = sand.u32 %s300, 7
    %s305 = smul.u32 %s301, 2
    %s306 = smul.u32 %s305, 8
    %s307 = sadd.s32 %s306, %s304
    %s308 = scalar_lea.vmem [#allocation11], %s307
    %v309 = vld [vmem:[%s308] ss:$8 sm:$0x3]
    %s310 = scalar_lea.vmem [#allocation2], 96
    %311 = vst.msk [vmem:[%s310] ss:$8 sm:$0x3] %vm154, %v309
    %312 = vst.msk [vmem:[%s310] ss:$8 sm:$0x0] %vm154, %v309
    %s313 = sld [smem:[#allocation5 + $0x86]]
    %s314 = sshra.s32 %s313, 3
    %s315 = sand.u32 %s313, 7
    %s316 = sshra.s32 %s313, 3
    %s317 = sand.u32 %s313, 7
    %s318 = smul.u32 %s314, 2
    %s319 = smul.u32 %s318, 8
    %s320 = sadd.s32 %s319, %s317
    %s321 = scalar_lea.vmem [#allocation11], %s320
    %v322 = vld [vmem:[%s321] ss:$8 sm:$0x3]
    %s323 = scalar_lea.vmem [#allocation2], 97
    %324 = vst.msk [vmem:[%s323] ss:$8 sm:$0x3] %vm154, %v322
    %325 = vst.msk [vmem:[%s323] ss:$8 sm:$0x0] %vm154, %v322
    %s326 = sld [smem:[#allocation5 + $0x7]]
    %s327 = sshra.s32 %s326, 3
    %s328 = sand.u32 %s326, 7
    %s329 = sshra.s32 %s326, 3
    %s330 = sand.u32 %s326, 7
    %s331 = smul.u32 %s327, 2
    %s332 = smul.u32 %s331, 8
    %s333 = sadd.s32 %s332, %s330
    %s334 = scalar_lea.vmem [#allocation11], %s333
    %v335 = vld [vmem:[%s334] ss:$8 sm:$0x3]
    %s336 = scalar_lea.vmem [#allocation2], 112
    %337 = vst.msk [vmem:[%s336] ss:$8 sm:$0x3] %vm154, %v335
    %338 = vst.msk [vmem:[%s336] ss:$8 sm:$0x0] %vm154, %v335
    %s339 = sld [smem:[#allocation5 + $0x87]]
    %s340 = sshra.s32 %s339, 3
    %s341 = sand.u32 %s339, 7
    %s342 = sshra.s32 %s339, 3
    %s343 = sand.u32 %s339, 7
    %s344 = smul.u32 %s340, 2
    %s345 = smul.u32 %s344, 8
    %s346 = sadd.s32 %s345, %s343
    %s347 = scalar_lea.vmem [#allocation11], %s346
    %v348 = vld [vmem:[%s347] ss:$8 sm:$0x3]
    %s349 = scalar_lea.vmem [#allocation2], 113
    %350 = vst.msk [vmem:[%s349] ss:$8 sm:$0x3] %vm154, %v348
    %351 = vst.msk [vmem:[%s349] ss:$8 sm:$0x0] %vm154, %v348
    %v352 = vld [vmem:[#allocation10] sm:$0xff]
    %v353 = vld [vmem:[#allocation10 + $0x8] sm:$0xff]
    %v354 = vld [vmem:[#allocation10 + $0x10] sm:$0xff]
    %v355 = vld [vmem:[#allocation10 + $0x18] sm:$0xff]
    %v360 = vunpack.c.l.b16 %v352
    %v361 = vunpack.c.h.b16 %v352
    %v362 = vunpack.c.l.b16 %v353
    %v363 = vunpack.c.h.b16 %v353
    %v364 = vunpack.c.l.b16 %v354
    %v365 = vunpack.c.h.b16 %v354
    %v366 = vunpack.c.l.b16 %v355
    %v367 = vunpack.c.h.b16 %v355
    %v368 = vpack.c.b16 %v362, %v360
    %v369 = vpack.c.b16 %v363, %v361
    %v370 = vpack.c.b16 %v366, %v364
    %v371 = vpack.c.b16 %v367, %v365
    %v377 = vsel %vm90, 0, 0
    %379 = vmatprep.subr.bf16.mxu0 0
    %380 = vmatpush1.bf16.msra.mxu0 0
    %381 = vmatprep.subr.bf16.mxu0 0
    %382 = vmatpush1.bf16.msra.mxu0 0
    %383 = vmatprep.subr.bf16.mxu0 0
    %384 = vmatpush1.bf16.msra.mxu0 0
    %385 = vmatprep.subr.bf16.mxu0 0
    %386 = vmatpush1.bf16.msra.mxu0 0
    %387 = vmatprep.subr.bf16.mxu0 0
    %388 = vmatpush1.bf16.msra.mxu0 0
    %389 = vmatprep.subr.bf16.mxu0 0
    %390 = vmatpush1.bf16.msra.mxu0 0
    %391 = vmatprep.subr.bf16.mxu0 %v371
    %392 = vmatpush1.bf16.msra.mxu0 %v370
    %393 = vmatprep.subr.bf16.mxu0 %v369
    %394 = vmatpush1.bf16.msra.mxu0 %v368
    %395 = vmatprep.subr.bf16.mxu0 0
    %396 = vmatpush2.bf16.msra.mxu0 0
    %397 = vmatprep.subr.bf16.mxu0 0
    %398 = vmatpush2.bf16.msra.mxu0 0
    %399 = vmatprep.subr.bf16.mxu0 0
    %400 = vmatpush2.bf16.msra.mxu0 0
    %401 = vmatprep.subr.bf16.mxu0 0
    %402 = vmatpush2.bf16.msra.mxu0 0
    %403 = vmatprep.subr.bf16.mxu0 0
    %404 = vmatpush2.bf16.msra.mxu0 0
    %405 = vmatprep.subr.bf16.mxu0 0
    %406 = vmatpush2.bf16.msra.mxu0 0
    %407 = vmatprep.subr.bf16.mxu0 0
    %408 = vmatpush2.bf16.msra.mxu0 0
    %409 = vmatprep.subr.bf16.mxu0 0
    %410 = vmatpush2.bf16.msra.mxu0 0
    %411 = vmatprep.mubr.bf16.mxu0 0
    %412 = vmatmul.mubr.bf16.gmra.mxu0 %v377
    %v413 = vpop.f32.mrf.mxu0
    %v414 = vadd.f32 0.0, %v413
    %v415 = vpop.f32.mrf.mxu0
    %v416 = vpop.f32.mrf.mxu0
    %v417 = vpop.f32.mrf.mxu0
    %v418 = vadd.f32 0.0, %v417
    %419 = vdwg.mxu0
    %v420 = vld [vmem:[#allocation2] sm:$0xff]
    %v421 = vadd.f32 %v414, %v420
    %v422 = vld [vmem:[#allocation2 + $0x78] sm:$0xff]
    %v423 = vadd.f32 %v418, %v422
    %v424 = vtanh.pop %v421
    %v425 = vtanh.pop %v423
    %v426 = vmul.f32 %v424, 0.5
    %v427 = vmul.f32 %v425, 0.5
    %v428 = vadd.f32 %v426, 0.5
    %v429 = vadd.f32 %v427, 0.5
    %v430 = vmul.f32 %v428, 0.0
    %v431 = vmul.f32 %v429, 0.0
    %434 = vrot.lane.b32.xlu0 %v424, 64
    %v435 = vpop.permute.xlu0 %434
    %436 = vrot.lane.b32.xlu0 %v425, 64
    %v437 = vpop.permute.xlu0 %436
    %v440 = vmul.f32 %v428, %v435
    %v441 = vmul.f32 %v429, %v437
    %444 = vrot.lane.b32.xlu0 %v440, 32
    %v445 = vpop.permute.xlu0 %444
    %446 = vrot.lane.b32.xlu0 %v441, 32
    %v447 = vpop.permute.xlu0 %446
    %v450 = vadd.f32 %v430, %v445
    %v451 = vadd.f32 %v431, %v447
    %v452 = vtanh.pop %v450
    %v453 = vtanh.pop %v451
    %456 = vrot.lane.b32.xlu0 %v452, 64
    %v457 = vpop.permute.xlu0 %456
    %458 = vrot.lane.b32.xlu0 %v453, 64
    %v459 = vpop.permute.xlu0 %458
    %v462 = vmul.f32 %v428, %v457
    %v463 = vmul.f32 %v429, %v459
    %v464 = vld [vmem:[#allocation4] sm:$0xff]
    %v465 = vld [vmem:[#allocation4 + $0x8] sm:$0xff]
    %468 = vrot.lane.b32.xlu0 %v462, 32
    %v469 = vpop.permute.xlu0 %468
    %470 = vrot.lane.b32.xlu0 %v463, 32
    %v471 = vpop.permute.xlu0 %470
    %v474 = vmul.f32 %v464, %v469
    %v475 = vmul.f32 %v465, %v471
    %v476 = vsub.f32 1.0, %v464
    %v477 = vsub.f32 1.0, %v465
    %v478 = vmul.f32 %v476, 0.0
    %v479 = vmul.f32 %v477, 0.0
    %v480 = vadd.f32 %v474, %v478
    %v481 = vadd.f32 %v475, %v479
    %484 = vrot.lane.b32.xlu0 %v450, 96
    %v485 = vpop.permute.xlu0 %484
    %486 = vrot.lane.b32.xlu0 %v451, 96
    %v487 = vpop.permute.xlu0 %486
    %v490 = vmul.f32 %v464, %v485
    %v491 = vmul.f32 %v465, %v487
    %v492 = vadd.f32 %v490, %v478
    %v493 = vadd.f32 %v491, %v479
    %494 = vst.msk [vmem:[#allocation3] sm:$0xff] %vm90, %v474
    %496 = vrot.lane.b32.xlu0 %v475, 32
    %v497 = vpop.permute.xlu0 %496
    %vm499 = vcmask 523520
    %500 = vst.msk [vmem:[#allocation3 + $0x38] sm:$0xff] %vm499, %v497
    %v501 = vpack.c.bf16 %v481, %v480
    %v503 = vsel %vm90, %v501, 0
    %505 = vmatprep.subr.bf16.mxu0 0
    %506 = vmatpush1.bf16.msra.mxu0 0
    %507 = vmatprep.subr.bf16.mxu0 0
    %508 = vmatpush1.bf16.msra.mxu0 0
    %509 = vmatprep.subr.bf16.mxu0 0
    %510 = vmatpush1.bf16.msra.mxu0 0
    %511 = vmatprep.subr.bf16.mxu0 0
    %512 = vmatpush1.bf16.msra.mxu0 0
    %513 = vmatprep.subr.bf16.mxu0 0
    %514 = vmatpush1.bf16.msra.mxu0 0
    %515 = vmatprep.subr.bf16.mxu0 0
    %516 = vmatpush1.bf16.msra.mxu0 0
    %517 = vmatprep.subr.bf16.mxu0 %v371
    %518 = vmatpush1.bf16.msra.mxu0 %v370
    %519 = vmatprep.subr.bf16.mxu0 %v369
    %520 = vmatpush1.bf16.msra.mxu0 %v368
    %521 = vmatprep.subr.bf16.mxu0 0
    %522 = vmatpush2.bf16.msra.mxu0 0
    %523 = vmatprep.subr.bf16.mxu0 0
    %524 = vmatpush2.bf16.msra.mxu0 0
    %525 = vmatprep.subr.bf16.mxu0 0
    %526 = vmatpush2.bf16.msra.mxu0 0
    %527 = vmatprep.subr.bf16.mxu0 0
    %528 = vmatpush2.bf16.msra.mxu0 0
    %529 = vmatprep.subr.bf16.mxu0 0
    %530 = vmatpush2.bf16.msra.mxu0 0
    %531 = vmatprep.subr.bf16.mxu0 0
    %532 = vmatpush2.bf16.msra.mxu0 0
    %533 = vmatprep.subr.bf16.mxu0 0
    %534 = vmatpush2.bf16.msra.mxu0 0
    %535 = vmatprep.subr.bf16.mxu0 0
    %536 = vmatpush2.bf16.msra.mxu0 0
    %537 = vmatprep.mubr.bf16.mxu0 0
    %538 = vmatmul.mubr.bf16.gmra.mxu0 %v503
    %v539 = vpop.f32.mrf.mxu0
    %v540 = vadd.f32 0.0, %v539
    %v541 = vpop.f32.mrf.mxu0
    %v542 = vpop.f32.mrf.mxu0
    %v543 = vpop.f32.mrf.mxu0
    %v544 = vadd.f32 0.0, %v543
    %545 = vdwg.mxu0
    %v546 = vld [vmem:[#allocation2 + $0x10] sm:$0xff]
    %v547 = vadd.f32 %v540, %v546
    %v548 = vld [vmem:[#allocation2 + $0x68] sm:$0xff]
    %v549 = vadd.f32 %v544, %v548
    %v550 = vtanh.pop %v547
    %v551 = vtanh.pop %v549
    %v552 = vmul.f32 %v550, 0.5
    %v553 = vmul.f32 %v551, 0.5
    %v554 = vadd.f32 %v552, 0.5
    %v555 = vadd.f32 %v553, 0.5
    %558 = vrot.lane.b32.xlu0 %v492, 32
    %v559 = vpop.permute.xlu0 %558
    %560 = vrot.lane.b32.xlu0 %v493, 32
    %v561 = vpop.permute.xlu0 %560
    %v564 = vmul.f32 %v554, %v559
    %v565 = vmul.f32 %v555, %v561
    %568 = vrot.lane.b32.xlu0 %v550, 64
    %v569 = vpop.permute.xlu0 %568
    %570 = vrot.lane.b32.xlu0 %v551, 64
    %v571 = vpop.permute.xlu0 %570
    %v574 = vmul.f32 %v554, %v569
    %v575 = vmul.f32 %v555, %v571
    %578 = vrot.lane.b32.xlu0 %v574, 32
    %v579 = vpop.permute.xlu0 %578
    %580 = vrot.lane.b32.xlu0 %v575, 32
    %v581 = vpop.permute.xlu0 %580
    %v584 = vadd.f32 %v564, %v579
    %v585 = vadd.f32 %v565, %v581
    %v586 = vtanh.pop %v584
    %v587 = vtanh.pop %v585
    %590 = vrot.lane.b32.xlu0 %v586, 64
    %v591 = vpop.permute.xlu0 %590
    %592 = vrot.lane.b32.xlu0 %v587, 64
    %v593 = vpop.permute.xlu0 %592
    %v596 = vmul.f32 %v554, %v591
    %v597 = vmul.f32 %v555, %v593
    %v598 = vld [vmem:[#allocation4 + $0x10] sm:$0xff]
    %v599 = vld [vmem:[#allocation4 + $0x18] sm:$0xff]
    %602 = vrot.lane.b32.xlu0 %v596, 32
    %v603 = vpop.permute.xlu0 %602
    %604 = vrot.lane.b32.xlu0 %v597, 32
    %v605 = vpop.permute.xlu0 %604
    %v608 = vmul.f32 %v598, %v603
    %v609 = vmul.f32 %v599, %v605
    %v610 = vsub.f32 1.0, %v598
    %v611 = vsub.f32 1.0, %v599
    %v612 = vmul.f32 %v610, %v480
    %v613 = vmul.f32 %v611, %v481
    %v614 = vadd.f32 %v608, %v612
    %v615 = vadd.f32 %v609, %v613
    %618 = vrot.lane.b32.xlu0 %v584, 96
    %v619 = vpop.permute.xlu0 %618
    %620 = vrot.lane.b32.xlu0 %v585, 96
    %v621 = vpop.permute.xlu0 %620
    %v624 = vmul.f32 %v598, %v619
    %v625 = vmul.f32 %v599, %v621
    %v626 = vmul.f32 %v610, %v492
    %v627 = vmul.f32 %v611, %v493
    %v628 = vadd.f32 %v624, %v626
    %v629 = vadd.f32 %v625, %v627
    %630 = vst.msk [vmem:[#allocation3 + $0x8] sm:$0xff] %vm90, %v608
    %632 = vrot.lane.b32.xlu0 %v609, 32
    %v633 = vpop.permute.xlu0 %632
    %635 = vst.msk [vmem:[#allocation3 + $0x30] sm:$0xff] %vm499, %v633
    %v636 = vpack.c.bf16 %v615, %v614
    %v638 = vsel %vm90, %v636, 0
    %640 = vmatprep.subr.bf16.mxu0 0
    %641 = vmatpush1.bf16.msra.mxu0 0
    %642 = vmatprep.subr.bf16.mxu0 0
    %643 = vmatpush1.bf16.msra.mxu0 0
    %644 = vmatprep.subr.bf16.mxu0 0
    %645 = vmatpush1.bf16.msra.mxu0 0
    %646 = vmatprep.subr.bf16.mxu0 0
    %647 = vmatpush1.bf16.msra.mxu0 0
    %648 = vmatprep.subr.bf16.mxu0 0
    %649 = vmatpush1.bf16.msra.mxu0 0
    %650 = vmatprep.subr.bf16.mxu0 0
    %651 = vmatpush1.bf16.msra.mxu0 0
    %652 = vmatprep.subr.bf16.mxu0 %v371
    %653 = vmatpush1.bf16.msra.mxu0 %v370
    %654 = vmatprep.subr.bf16.mxu0 %v369
    %655 = vmatpush1.bf16.msra.mxu0 %v368
    %656 = vmatprep.subr.bf16.mxu0 0
    %657 = vmatpush2.bf16.msra.mxu0 0
    %658 = vmatprep.subr.bf16.mxu0 0
    %659 = vmatpush2.bf16.msra.mxu0 0
    %660 = vmatprep.subr.bf16.mxu0 0
    %661 = vmatpush2.bf16.msra.mxu0 0
    %662 = vmatprep.subr.bf16.mxu0 0
    %663 = vmatpush2.bf16.msra.mxu0 0
    %664 = vmatprep.subr.bf16.mxu0 0
    %665 = vmatpush2.bf16.msra.mxu0 0
    %666 = vmatprep.subr.bf16.mxu0 0
    %667 = vmatpush2.bf16.msra.mxu0 0
    %668 = vmatprep.subr.bf16.mxu0 0
    %669 = vmatpush2.bf16.msra.mxu0 0
    %670 = vmatprep.subr.bf16.mxu0 0
    %671 = vmatpush2.bf16.msra.mxu0 0
    %672 = vmatprep.mubr.bf16.mxu0 0
    %673 = vmatmul.mubr.bf16.gmra.mxu0 %v638
    %v674 = vpop.f32.mrf.mxu0
    %v675 = vadd.f32 0.0, %v674
    %v676 = vpop.f32.mrf.mxu0
    %v677 = vpop.f32.mrf.mxu0
    %v678 = vpop.f32.mrf.mxu0
    %v679 = vadd.f32 0.0, %v678
    %680 = vdwg.mxu0
    %v681 = vld [vmem:[#allocation2 + $0x20] sm:$0xff]
    %v682 = vadd.f32 %v675, %v681
    %v683 = vld [vmem:[#allocation2 + $0x58] sm:$0xff]
    %v684 = vadd.f32 %v679, %v683
    %v685 = vtanh.pop %v682
    %v686 = vtanh.pop %v684
    %v687 = vmul.f32 %v685, 0.5
    %v688 = vmul.f32 %v686, 0.5
    %v689 = vadd.f32 %v687, 0.5
    %v690 = vadd.f32 %v688, 0.5
    %693 = vrot.lane.b32.xlu0 %v628, 32
    %v694 = vpop.permute.xlu0 %693
    %695 = vrot.lane.b32.xlu0 %v629, 32
    %v696 = vpop.permute.xlu0 %695
    %v699 = vmul.f32 %v689, %v694
    %v700 = vmul.f32 %v690, %v696
    %703 = vrot.lane.b32.xlu0 %v685, 64
    %v704 = vpop.permute.xlu0 %703
    %705 = vrot.lane.b32.xlu0 %v686, 64
    %v706 = vpop.permute.xlu0 %705
    %v709 = vmul.f32 %v689, %v704
    %v710 = vmul.f32 %v690, %v706
    %713 = vrot.lane.b32.xlu0 %v709, 32
    %v714 = vpop.permute.xlu0 %713
    %715 = vrot.lane.b32.xlu0 %v710, 32
    %v716 = vpop.permute.xlu0 %715
    %v719 = vadd.f32 %v699, %v714
    %v720 = vadd.f32 %v700, %v716
    %v721 = vtanh.pop %v719
    %v722 = vtanh.pop %v720
    %725 = vrot.lane.b32.xlu0 %v721, 64
    %v726 = vpop.permute.xlu0 %725
    %727 = vrot.lane.b32.xlu0 %v722, 64
    %v728 = vpop.permute.xlu0 %727
    %v731 = vmul.f32 %v689, %v726
    %v732 = vmul.f32 %v690, %v728
    %v733 = vld [vmem:[#allocation4 + $0x20] sm:$0xff]
    %v734 = vld [vmem:[#allocation4 + $0x28] sm:$0xff]
    %737 = vrot.lane.b32.xlu0 %v731, 32
    %v738 = vpop.permute.xlu0 %737
    %739 = vrot.lane.b32.xlu0 %v732, 32
    %v740 = vpop.permute.xlu0 %739
    %v743 = vmul.f32 %v733, %v738
    %v744 = vmul.f32 %v734, %v740
    %v745 = vsub.f32 1.0, %v733
    %v746 = vsub.f32 1.0, %v734
    %v747 = vmul.f32 %v745, %v614
    %v748 = vmul.f32 %v746, %v615
    %v749 = vadd.f32 %v743, %v747
    %v750 = vadd.f32 %v744, %v748
    %753 = vrot.lane.b32.xlu0 %v719, 96
    %v754 = vpop.permute.xlu0 %753
    %755 = vrot.lane.b32.xlu0 %v720, 96
    %v756 = vpop.permute.xlu0 %755
    %v759 = vmul.f32 %v733, %v754
    %v760 = vmul.f32 %v734, %v756
    %v761 = vmul.f32 %v745, %v628
    %v762 = vmul.f32 %v746, %v629
    %v763 = vadd.f32 %v759, %v761
    %v764 = vadd.f32 %v760, %v762
    %765 = vst.msk [vmem:[#allocation3 + $0x10] sm:$0xff] %vm90, %v743
    %767 = vrot.lane.b32.xlu0 %v744, 32
    %v768 = vpop.permute.xlu0 %767
    %770 = vst.msk [vmem:[#allocation3 + $0x28] sm:$0xff] %vm499, %v768
    %v771 = vpack.c.bf16 %v750, %v749
    %v773 = vsel %vm90, %v771, 0
    %775 = vmatprep.subr.bf16.mxu0 0
    %776 = vmatpush1.bf16.msra.mxu0 0
    %777 = vmatprep.subr.bf16.mxu0 0
    %778 = vmatpush1.bf16.msra.mxu0 0
    %779 = vmatprep.subr.bf16.mxu0 0
    %780 = vmatpush1.bf16.msra.mxu0 0
    %781 = vmatprep.subr.bf16.mxu0 0
    %782 = vmatpush1.bf16.msra.mxu0 0
    %783 = vmatprep.subr.bf16.mxu0 0
    %784 = vmatpush1.bf16.msra.mxu0 0
    %785 = vmatprep.subr.bf16.mxu0 0
    %786 = vmatpush1.bf16.msra.mxu0 0
    %787 = vmatprep.subr.bf16.mxu0 %v371
    %788 = vmatpush1.bf16.msra.mxu0 %v370
    %789 = vmatprep.subr.bf16.mxu0 %v369
    %790 = vmatpush1.bf16.msra.mxu0 %v368
    %791 = vmatprep.subr.bf16.mxu0 0
    %792 = vmatpush2.bf16.msra.mxu0 0
    %793 = vmatprep.subr.bf16.mxu0 0
    %794 = vmatpush2.bf16.msra.mxu0 0
    %795 = vmatprep.subr.bf16.mxu0 0
    %796 = vmatpush2.bf16.msra.mxu0 0
    %797 = vmatprep.subr.bf16.mxu0 0
    %798 = vmatpush2.bf16.msra.mxu0 0
    %799 = vmatprep.subr.bf16.mxu0 0
    %800 = vmatpush2.bf16.msra.mxu0 0
    %801 = vmatprep.subr.bf16.mxu0 0
    %802 = vmatpush2.bf16.msra.mxu0 0
    %803 = vmatprep.subr.bf16.mxu0 0
    %804 = vmatpush2.bf16.msra.mxu0 0
    %805 = vmatprep.subr.bf16.mxu0 0
    %806 = vmatpush2.bf16.msra.mxu0 0
    %807 = vmatprep.mubr.bf16.mxu0 0
    %808 = vmatmul.mubr.bf16.gmra.mxu0 %v773
    %v809 = vpop.f32.mrf.mxu0
    %v810 = vadd.f32 0.0, %v809
    %v811 = vpop.f32.mrf.mxu0
    %v812 = vpop.f32.mrf.mxu0
    %v813 = vpop.f32.mrf.mxu0
    %v814 = vadd.f32 0.0, %v813
    %815 = vdwg.mxu0
    %v816 = vld [vmem:[#allocation2 + $0x30] sm:$0xff]
    %v817 = vadd.f32 %v810, %v816
    %v818 = vld [vmem:[#allocation2 + $0x48] sm:$0xff]
    %v819 = vadd.f32 %v814, %v818
    %v820 = vtanh.pop %v817
    %v821 = vtanh.pop %v819
    %v822 = vmul.f32 %v820, 0.5
    %v823 = vmul.f32 %v821, 0.5
    %v824 = vadd.f32 %v822, 0.5
    %v825 = vadd.f32 %v823, 0.5
    %828 = vrot.lane.b32.xlu0 %v763, 32
    %v829 = vpop.permute.xlu0 %828
    %830 = vrot.lane.b32.xlu0 %v764, 32
    %v831 = vpop.permute.xlu0 %830
    %v834 = vmul.f32 %v824, %v829
    %v835 = vmul.f32 %v825, %v831
    %838 = vrot.lane.b32.xlu0 %v820, 64
    %v839 = vpop.permute.xlu0 %838
    %840 = vrot.lane.b32.xlu0 %v821, 64
    %v841 = vpop.permute.xlu0 %840
    %v844 = vmul.f32 %v824, %v839
    %v845 = vmul.f32 %v825, %v841
    %848 = vrot.lane.b32.xlu0 %v844, 32
    %v849 = vpop.permute.xlu0 %848
    %850 = vrot.lane.b32.xlu0 %v845, 32
    %v851 = vpop.permute.xlu0 %850
    %v854 = vadd.f32 %v834, %v849
    %v855 = vadd.f32 %v835, %v851
    %v856 = vtanh.pop %v854
    %v857 = vtanh.pop %v855
    %860 = vrot.lane.b32.xlu0 %v856, 64
    %v861 = vpop.permute.xlu0 %860
    %862 = vrot.lane.b32.xlu0 %v857, 64
    %v863 = vpop.permute.xlu0 %862
    %v866 = vmul.f32 %v824, %v861
    %v867 = vmul.f32 %v825, %v863
    %v868 = vld [vmem:[#allocation4 + $0x30] sm:$0xff]
    %v869 = vld [vmem:[#allocation4 + $0x38] sm:$0xff]
    %872 = vrot.lane.b32.xlu0 %v866, 32
    %v873 = vpop.permute.xlu0 %872
    %874 = vrot.lane.b32.xlu0 %v867, 32
    %v875 = vpop.permute.xlu0 %874
    %v878 = vmul.f32 %v868, %v873
    %v879 = vmul.f32 %v869, %v875
    %v880 = vsub.f32 1.0, %v868
    %v881 = vsub.f32 1.0, %v869
    %v882 = vmul.f32 %v880, %v749
    %v883 = vmul.f32 %v881, %v750
    %v884 = vadd.f32 %v878, %v882
    %v885 = vadd.f32 %v879, %v883
    %888 = vrot.lane.b32.xlu0 %v854, 96
    %v889 = vpop.permute.xlu0 %888
    %890 = vrot.lane.b32.xlu0 %v855, 96
    %v891 = vpop.permute.xlu0 %890
    %v894 = vmul.f32 %v868, %v889
    %v895 = vmul.f32 %v869, %v891
    %v896 = vmul.f32 %v880, %v763
    %v897 = vmul.f32 %v881, %v764
    %v898 = vadd.f32 %v894, %v896
    %v899 = vadd.f32 %v895, %v897
    %900 = vst.msk [vmem:[#allocation3 + $0x18] sm:$0xff] %vm90, %v878
    %902 = vrot.lane.b32.xlu0 %v879, 32
    %v903 = vpop.permute.xlu0 %902
    %905 = vst.msk [vmem:[#allocation3 + $0x20] sm:$0xff] %vm499, %v903
    %v906 = vpack.c.bf16 %v885, %v884
    %v908 = vsel %vm90, %v906, 0
    %910 = vmatprep.subr.bf16.mxu0 0
    %911 = vmatpush1.bf16.msra.mxu0 0
    %912 = vmatprep.subr.bf16.mxu0 0
    %913 = vmatpush1.bf16.msra.mxu0 0
    %914 = vmatprep.subr.bf16.mxu0 0
    %915 = vmatpush1.bf16.msra.mxu0 0
    %916 = vmatprep.subr.bf16.mxu0 0
    %917 = vmatpush1.bf16.msra.mxu0 0
    %918 = vmatprep.subr.bf16.mxu0 0
    %919 = vmatpush1.bf16.msra.mxu0 0
    %920 = vmatprep.subr.bf16.mxu0 0
    %921 = vmatpush1.bf16.msra.mxu0 0
    %922 = vmatprep.subr.bf16.mxu0 %v371
    %923 = vmatpush1.bf16.msra.mxu0 %v370
    %924 = vmatprep.subr.bf16.mxu0 %v369
    %925 = vmatpush1.bf16.msra.mxu0 %v368
    %926 = vmatprep.subr.bf16.mxu0 0
    %927 = vmatpush2.bf16.msra.mxu0 0
    %928 = vmatprep.subr.bf16.mxu0 0
    %929 = vmatpush2.bf16.msra.mxu0 0
    %930 = vmatprep.subr.bf16.mxu0 0
    %931 = vmatpush2.bf16.msra.mxu0 0
    %932 = vmatprep.subr.bf16.mxu0 0
    %933 = vmatpush2.bf16.msra.mxu0 0
    %934 = vmatprep.subr.bf16.mxu0 0
    %935 = vmatpush2.bf16.msra.mxu0 0
    %936 = vmatprep.subr.bf16.mxu0 0
    %937 = vmatpush2.bf16.msra.mxu0 0
    %938 = vmatprep.subr.bf16.mxu0 0
    %939 = vmatpush2.bf16.msra.mxu0 0
    %940 = vmatprep.subr.bf16.mxu0 0
    %941 = vmatpush2.bf16.msra.mxu0 0
    %942 = vmatprep.mubr.bf16.mxu0 0
    %943 = vmatmul.mubr.bf16.gmra.mxu0 %v908
    %v944 = vpop.f32.mrf.mxu0
    %v945 = vadd.f32 0.0, %v944
    %v946 = vpop.f32.mrf.mxu0
    %v947 = vpop.f32.mrf.mxu0
    %v948 = vpop.f32.mrf.mxu0
    %v949 = vadd.f32 0.0, %v948
    %950 = vdwg.mxu0
    %v951 = vld [vmem:[#allocation2 + $0x40] sm:$0xff]
    %v952 = vadd.f32 %v945, %v951
    %v953 = vld [vmem:[#allocation2 + $0x38] sm:$0xff]
    %v954 = vadd.f32 %v949, %v953
    %v955 = vtanh.pop %v952
    %v956 = vtanh.pop %v954
    %v957 = vmul.f32 %v955, 0.5
    %v958 = vmul.f32 %v956, 0.5
    %v959 = vadd.f32 %v957, 0.5
    %v960 = vadd.f32 %v958, 0.5
    %963 = vrot.lane.b32.xlu0 %v898, 32
    %v964 = vpop.permute.xlu0 %963
    %965 = vrot.lane.b32.xlu0 %v899, 32
    %v966 = vpop.permute.xlu0 %965
    %v969 = vmul.f32 %v959, %v964
    %v970 = vmul.f32 %v960, %v966
    %973 = vrot.lane.b32.xlu0 %v955, 64
    %v974 = vpop.permute.xlu0 %973
    %975 = vrot.lane.b32.xlu0 %v956, 64
    %v976 = vpop.permute.xlu0 %975
    %v979 = vmul.f32 %v959, %v974
    %v980 = vmul.f32 %v960, %v976
    %983 = vrot.lane.b32.xlu0 %v979, 32
    %v984 = vpop.permute.xlu0 %983
    %985 = vrot.lane.b32.xlu0 %v980, 32
    %v986 = vpop.permute.xlu0 %985
    %v989 = vadd.f32 %v969, %v984
    %v990 = vadd.f32 %v970, %v986
    %v991 = vtanh.pop %v989
    %v992 = vtanh.pop %v990
    %995 = vrot.lane.b32.xlu0 %v991, 64
    %v996 = vpop.permute.xlu0 %995
    %997 = vrot.lane.b32.xlu0 %v992, 64
    %v998 = vpop.permute.xlu0 %997
    %v1001 = vmul.f32 %v959, %v996
    %v1002 = vmul.f32 %v960, %v998
    %v1003 = vld [vmem:[#allocation4 + $0x40] sm:$0xff]
    %v1004 = vld [vmem:[#allocation4 + $0x48] sm:$0xff]
    %1007 = vrot.lane.b32.xlu0 %v1001, 32
    %v1008 = vpop.permute.xlu0 %1007
    %1009 = vrot.lane.b32.xlu0 %v1002, 32
    %v1010 = vpop.permute.xlu0 %1009
    %v1013 = vmul.f32 %v1003, %v1008
    %v1014 = vmul.f32 %v1004, %v1010
    %v1015 = vsub.f32 1.0, %v1003
    %v1016 = vsub.f32 1.0, %v1004
    %v1017 = vmul.f32 %v1015, %v884
    %v1018 = vmul.f32 %v1016, %v885
    %v1019 = vadd.f32 %v1013, %v1017
    %v1020 = vadd.f32 %v1014, %v1018
    %1023 = vrot.lane.b32.xlu0 %v989, 96
    %v1024 = vpop.permute.xlu0 %1023
    %1025 = vrot.lane.b32.xlu0 %v990, 96
    %v1026 = vpop.permute.xlu0 %1025
    %v1029 = vmul.f32 %v1003, %v1024
    %v1030 = vmul.f32 %v1004, %v1026
    %v1031 = vmul.f32 %v1015, %v898
    %v1032 = vmul.f32 %v1016, %v899
    %v1033 = vadd.f32 %v1029, %v1031
    %v1034 = vadd.f32 %v1030, %v1032
    %1035 = vst.msk [vmem:[#allocation3 + $0x20] sm:$0xff] %vm90, %v1013
    %1037 = vrot.lane.b32.xlu0 %v1014, 32
    %v1038 = vpop.permute.xlu0 %1037
    %1040 = vst.msk [vmem:[#allocation3 + $0x18] sm:$0xff] %vm499, %v1038
    %v1041 = vpack.c.bf16 %v1020, %v1019
    %v1043 = vsel %vm90, %v1041, 0
    %1045 = vmatprep.subr.bf16.mxu0 0
    %1046 = vmatpush1.bf16.msra.mxu0 0
    %1047 = vmatprep.subr.bf16.mxu0 0
    %1048 = vmatpush1.bf16.msra.mxu0 0
    %1049 = vmatprep.subr.bf16.mxu0 0
    %1050 = vmatpush1.bf16.msra.mxu0 0
    %1051 = vmatprep.subr.bf16.mxu0 0
    %1052 = vmatpush1.bf16.msra.mxu0 0
    %1053 = vmatprep.subr.bf16.mxu0 0
    %1054 = vmatpush1.bf16.msra.mxu0 0
    %1055 = vmatprep.subr.bf16.mxu0 0
    %1056 = vmatpush1.bf16.msra.mxu0 0
    %1057 = vmatprep.subr.bf16.mxu0 %v371
    %1058 = vmatpush1.bf16.msra.mxu0 %v370
    %1059 = vmatprep.subr.bf16.mxu0 %v369
    %1060 = vmatpush1.bf16.msra.mxu0 %v368
    %1061 = vmatprep.subr.bf16.mxu0 0
    %1062 = vmatpush2.bf16.msra.mxu0 0
    %1063 = vmatprep.subr.bf16.mxu0 0
    %1064 = vmatpush2.bf16.msra.mxu0 0
    %1065 = vmatprep.subr.bf16.mxu0 0
    %1066 = vmatpush2.bf16.msra.mxu0 0
    %1067 = vmatprep.subr.bf16.mxu0 0
    %1068 = vmatpush2.bf16.msra.mxu0 0
    %1069 = vmatprep.subr.bf16.mxu0 0
    %1070 = vmatpush2.bf16.msra.mxu0 0
    %1071 = vmatprep.subr.bf16.mxu0 0
    %1072 = vmatpush2.bf16.msra.mxu0 0
    %1073 = vmatprep.subr.bf16.mxu0 0
    %1074 = vmatpush2.bf16.msra.mxu0 0
    %1075 = vmatprep.subr.bf16.mxu0 0
    %1076 = vmatpush2.bf16.msra.mxu0 0
    %1077 = vmatprep.mubr.bf16.mxu0 0
    %1078 = vmatmul.mubr.bf16.gmra.mxu0 %v1043
    %v1079 = vpop.f32.mrf.mxu0
    %v1080 = vadd.f32 0.0, %v1079
    %v1081 = vpop.f32.mrf.mxu0
    %v1082 = vpop.f32.mrf.mxu0
    %v1083 = vpop.f32.mrf.mxu0
    %v1084 = vadd.f32 0.0, %v1083
    %1085 = vdwg.mxu0
    %v1086 = vld [vmem:[#allocation2 + $0x50] sm:$0xff]
    %v1087 = vadd.f32 %v1080, %v1086
    %v1088 = vld [vmem:[#allocation2 + $0x28] sm:$0xff]
    %v1089 = vadd.f32 %v1084, %v1088
    %v1090 = vtanh.pop %v1087
    %v1091 = vtanh.pop %v1089
    %v1092 = vmul.f32 %v1090, 0.5
    %v1093 = vmul.f32 %v1091, 0.5
    %v1094 = vadd.f32 %v1092, 0.5
    %v1095 = vadd.f32 %v1093, 0.5
    %1098 = vrot.lane.b32.xlu0 %v1033, 32
    %v1099 = vpop.permute.xlu0 %1098
    %1100 = vrot.lane.b32.xlu0 %v1034, 32
    %v1101 = vpop.permute.xlu0 %1100
    %v1104 = vmul.f32 %v1094, %v1099
    %v1105 = vmul.f32 %v1095, %v1101
    %1108 = vrot.lane.b32.xlu0 %v1090, 64
    %v1109 = vpop.permute.xlu0 %1108
    %1110 = vrot.lane.b32.xlu0 %v1091, 64
    %v1111 = vpop.permute.xlu0 %1110
    %v1114 = vmul.f32 %v1094, %v1109
    %v1115 = vmul.f32 %v1095, %v1111
    %1118 = vrot.lane.b32.xlu0 %v1114, 32
    %v1119 = vpop.permute.xlu0 %1118
    %1120 = vrot.lane.b32.xlu0 %v1115, 32
    %v1121 = vpop.permute.xlu0 %1120
    %v1124 = vadd.f32 %v1104, %v1119
    %v1125 = vadd.f32 %v1105, %v1121
    %v1126 = vtanh.pop %v1124
    %v1127 = vtanh.pop %v1125
    %1130 = vrot.lane.b32.xlu0 %v1126, 64
    %v1131 = vpop.permute.xlu0 %1130
    %1132 = vrot.lane.b32.xlu0 %v1127, 64
    %v1133 = vpop.permute.xlu0 %1132
    %v1136 = vmul.f32 %v1094, %v1131
    %v1137 = vmul.f32 %v1095, %v1133
    %v1138 = vld [vmem:[#allocation4 + $0x50] sm:$0xff]
    %v1139 = vld [vmem:[#allocation4 + $0x58] sm:$0xff]
    %1142 = vrot.lane.b32.xlu0 %v1136, 32
    %v1143 = vpop.permute.xlu0 %1142
    %1144 = vrot.lane.b32.xlu0 %v1137, 32
    %v1145 = vpop.permute.xlu0 %1144
    %v1148 = vmul.f32 %v1138, %v1143
    %v1149 = vmul.f32 %v1139, %v1145
    %v1150 = vsub.f32 1.0, %v1138
    %v1151 = vsub.f32 1.0, %v1139
    %v1152 = vmul.f32 %v1150, %v1019
    %v1153 = vmul.f32 %v1151, %v1020
    %v1154 = vadd.f32 %v1148, %v1152
    %v1155 = vadd.f32 %v1149, %v1153
    %1158 = vrot.lane.b32.xlu0 %v1124, 96
    %v1159 = vpop.permute.xlu0 %1158
    %1160 = vrot.lane.b32.xlu0 %v1125, 96
    %v1161 = vpop.permute.xlu0 %1160
    %v1164 = vmul.f32 %v1138, %v1159
    %v1165 = vmul.f32 %v1139, %v1161
    %v1166 = vmul.f32 %v1150, %v1033
    %v1167 = vmul.f32 %v1151, %v1034
    %v1168 = vadd.f32 %v1164, %v1166
    %v1169 = vadd.f32 %v1165, %v1167
    %1170 = vst.msk [vmem:[#allocation3 + $0x28] sm:$0xff] %vm90, %v1148
    %1172 = vrot.lane.b32.xlu0 %v1149, 32
    %v1173 = vpop.permute.xlu0 %1172
    %1175 = vst.msk [vmem:[#allocation3 + $0x10] sm:$0xff] %vm499, %v1173
    %v1176 = vpack.c.bf16 %v1155, %v1154
    %v1178 = vsel %vm90, %v1176, 0
    %1180 = vmatprep.subr.bf16.mxu0 0
    %1181 = vmatpush1.bf16.msra.mxu0 0
    %1182 = vmatprep.subr.bf16.mxu0 0
    %1183 = vmatpush1.bf16.msra.mxu0 0
    %1184 = vmatprep.subr.bf16.mxu0 0
    %1185 = vmatpush1.bf16.msra.mxu0 0
    %1186 = vmatprep.subr.bf16.mxu0 0
    %1187 = vmatpush1.bf16.msra.mxu0 0
    %1188 = vmatprep.subr.bf16.mxu0 0
    %1189 = vmatpush1.bf16.msra.mxu0 0
    %1190 = vmatprep.subr.bf16.mxu0 0
    %1191 = vmatpush1.bf16.msra.mxu0 0
    %1192 = vmatprep.subr.bf16.mxu0 %v371
    %1193 = vmatpush1.bf16.msra.mxu0 %v370
    %1194 = vmatprep.subr.bf16.mxu0 %v369
    %1195 = vmatpush1.bf16.msra.mxu0 %v368
    %1196 = vmatprep.subr.bf16.mxu0 0
    %1197 = vmatpush2.bf16.msra.mxu0 0
    %1198 = vmatprep.subr.bf16.mxu0 0
    %1199 = vmatpush2.bf16.msra.mxu0 0
    %1200 = vmatprep.subr.bf16.mxu0 0
    %1201 = vmatpush2.bf16.msra.mxu0 0
    %1202 = vmatprep.subr.bf16.mxu0 0
    %1203 = vmatpush2.bf16.msra.mxu0 0
    %1204 = vmatprep.subr.bf16.mxu0 0
    %1205 = vmatpush2.bf16.msra.mxu0 0
    %1206 = vmatprep.subr.bf16.mxu0 0
    %1207 = vmatpush2.bf16.msra.mxu0 0
    %1208 = vmatprep.subr.bf16.mxu0 0
    %1209 = vmatpush2.bf16.msra.mxu0 0
    %1210 = vmatprep.subr.bf16.mxu0 0
    %1211 = vmatpush2.bf16.msra.mxu0 0
    %1212 = vmatprep.mubr.bf16.mxu0 0
    %1213 = vmatmul.mubr.bf16.gmra.mxu0 %v1178
    %v1214 = vpop.f32.mrf.mxu0
    %v1215 = vadd.f32 0.0, %v1214
    %v1216 = vpop.f32.mrf.mxu0
    %v1217 = vpop.f32.mrf.mxu0
    %v1218 = vpop.f32.mrf.mxu0
    %v1219 = vadd.f32 0.0, %v1218
    %1220 = vdwg.mxu0
    %v1221 = vld [vmem:[#allocation2 + $0x60] sm:$0xff]
    %v1222 = vadd.f32 %v1215, %v1221
    %v1223 = vld [vmem:[#allocation2 + $0x18] sm:$0xff]
    %v1224 = vadd.f32 %v1219, %v1223
    %v1225 = vtanh.pop %v1222
    %v1226 = vtanh.pop %v1224
    %v1227 = vmul.f32 %v1225, 0.5
    %v1228 = vmul.f32 %v1226, 0.5
    %v1229 = vadd.f32 %v1227, 0.5
    %v1230 = vadd.f32 %v1228, 0.5
    %1233 = vrot.lane.b32.xlu0 %v1168, 32
    %v1234 = vpop.permute.xlu0 %1233
    %1235 = vrot.lane.b32.xlu0 %v1169, 32
    %v1236 = vpop.permute.xlu0 %1235
    %v1239 = vmul.f32 %v1229, %v1234
    %v1240 = vmul.f32 %v1230, %v1236
    %1243 = vrot.lane.b32.xlu0 %v1225, 64
    %v1244 = vpop.permute.xlu0 %1243
    %1245 = vrot.lane.b32.xlu0 %v1226, 64
    %v1246 = vpop.permute.xlu0 %1245
    %v1249 = vmul.f32 %v1229, %v1244
    %v1250 = vmul.f32 %v1230, %v1246
    %1253 = vrot.lane.b32.xlu0 %v1249, 32
    %v1254 = vpop.permute.xlu0 %1253
    %1255 = vrot.lane.b32.xlu0 %v1250, 32
    %v1256 = vpop.permute.xlu0 %1255
    %v1259 = vadd.f32 %v1239, %v1254
    %v1260 = vadd.f32 %v1240, %v1256
    %v1261 = vtanh.pop %v1259
    %v1262 = vtanh.pop %v1260
    %1265 = vrot.lane.b32.xlu0 %v1261, 64
    %v1266 = vpop.permute.xlu0 %1265
    %1267 = vrot.lane.b32.xlu0 %v1262, 64
    %v1268 = vpop.permute.xlu0 %1267
    %v1271 = vmul.f32 %v1229, %v1266
    %v1272 = vmul.f32 %v1230, %v1268
    %v1273 = vld [vmem:[#allocation4 + $0x60] sm:$0xff]
    %v1274 = vld [vmem:[#allocation4 + $0x68] sm:$0xff]
    %1277 = vrot.lane.b32.xlu0 %v1271, 32
    %v1278 = vpop.permute.xlu0 %1277
    %1279 = vrot.lane.b32.xlu0 %v1272, 32
    %v1280 = vpop.permute.xlu0 %1279
    %v1283 = vmul.f32 %v1273, %v1278
    %v1284 = vmul.f32 %v1274, %v1280
    %v1285 = vsub.f32 1.0, %v1273
    %v1286 = vsub.f32 1.0, %v1274
    %v1287 = vmul.f32 %v1285, %v1154
    %v1288 = vmul.f32 %v1286, %v1155
    %v1289 = vadd.f32 %v1283, %v1287
    %v1290 = vadd.f32 %v1284, %v1288
    %1293 = vrot.lane.b32.xlu0 %v1259, 96
    %v1294 = vpop.permute.xlu0 %1293
    %1295 = vrot.lane.b32.xlu0 %v1260, 96
    %v1296 = vpop.permute.xlu0 %1295
    %v1299 = vmul.f32 %v1273, %v1294
    %v1300 = vmul.f32 %v1274, %v1296
    %v1301 = vmul.f32 %v1285, %v1168
    %v1302 = vmul.f32 %v1286, %v1169
    %v1303 = vadd.f32 %v1299, %v1301
    %v1304 = vadd.f32 %v1300, %v1302
    %1305 = vst.msk [vmem:[#allocation3 + $0x30] sm:$0xff] %vm90, %v1283
    %1307 = vrot.lane.b32.xlu0 %v1284, 32
    %v1308 = vpop.permute.xlu0 %1307
    %1310 = vst.msk [vmem:[#allocation3 + $0x8] sm:$0xff] %vm499, %v1308
    %v1311 = vpack.c.bf16 %v1290, %v1289
    %v1313 = vsel %vm90, %v1311, 0
    %1315 = vmatprep.subr.bf16.mxu0 0
    %1316 = vmatpush1.bf16.msra.mxu0 0
    %1317 = vmatprep.subr.bf16.mxu0 0
    %1318 = vmatpush1.bf16.msra.mxu0 0
    %1319 = vmatprep.subr.bf16.mxu0 0
    %1320 = vmatpush1.bf16.msra.mxu0 0
    %1321 = vmatprep.subr.bf16.mxu0 0
    %1322 = vmatpush1.bf16.msra.mxu0 0
    %1323 = vmatprep.subr.bf16.mxu0 0
    %1324 = vmatpush1.bf16.msra.mxu0 0
    %1325 = vmatprep.subr.bf16.mxu0 0
    %1326 = vmatpush1.bf16.msra.mxu0 0
    %1327 = vmatprep.subr.bf16.mxu0 %v371
    %1328 = vmatpush1.bf16.msra.mxu0 %v370
    %1329 = vmatprep.subr.bf16.mxu0 %v369
    %1330 = vmatpush1.bf16.msra.mxu0 %v368
    %1331 = vmatprep.subr.bf16.mxu0 0
    %1332 = vmatpush2.bf16.msra.mxu0 0
    %1333 = vmatprep.subr.bf16.mxu0 0
    %1334 = vmatpush2.bf16.msra.mxu0 0
    %1335 = vmatprep.subr.bf16.mxu0 0
    %1336 = vmatpush2.bf16.msra.mxu0 0
    %1337 = vmatprep.subr.bf16.mxu0 0
    %1338 = vmatpush2.bf16.msra.mxu0 0
    %1339 = vmatprep.subr.bf16.mxu0 0
    %1340 = vmatpush2.bf16.msra.mxu0 0
    %1341 = vmatprep.subr.bf16.mxu0 0
    %1342 = vmatpush2.bf16.msra.mxu0 0
    %1343 = vmatprep.subr.bf16.mxu0 0
    %1344 = vmatpush2.bf16.msra.mxu0 0
    %1345 = vmatprep.subr.bf16.mxu0 0
    %1346 = vmatpush2.bf16.msra.mxu0 0
    %1347 = vmatprep.mubr.bf16.mxu0 0
    %1348 = vmatmul.mubr.bf16.gmra.mxu0 %v1313
    %v1349 = vpop.f32.mrf.mxu0
    %v1350 = vadd.f32 0.0, %v1349
    %v1351 = vpop.f32.mrf.mxu0
    %v1352 = vpop.f32.mrf.mxu0
    %v1353 = vpop.f32.mrf.mxu0
    %v1354 = vadd.f32 0.0, %v1353
    %1355 = vdwg.mxu0
    %v1356 = vld [vmem:[#allocation2 + $0x70] sm:$0xff]
    %v1357 = vadd.f32 %v1350, %v1356
    %v1358 = vld [vmem:[#allocation2 + $0x8] sm:$0xff]
    %v1359 = vadd.f32 %v1354, %v1358
    %v1360 = vtanh.pop %v1357
    %v1361 = vtanh.pop %v1359
    %v1362 = vmul.f32 %v1360, 0.5
    %v1363 = vmul.f32 %v1361, 0.5
    %v1364 = vadd.f32 %v1362, 0.5
    %v1365 = vadd.f32 %v1363, 0.5
    %1368 = vrot.lane.b32.xlu0 %v1303, 32
    %v1369 = vpop.permute.xlu0 %1368
    %1370 = vrot.lane.b32.xlu0 %v1304, 32
    %v1371 = vpop.permute.xlu0 %1370
    %v1374 = vmul.f32 %v1364, %v1369
    %v1375 = vmul.f32 %v1365, %v1371
    %1378 = vrot.lane.b32.xlu0 %v1360, 64
    %v1379 = vpop.permute.xlu0 %1378
    %1380 = vrot.lane.b32.xlu0 %v1361, 64
    %v1381 = vpop.permute.xlu0 %1380
    %v1384 = vmul.f32 %v1364, %v1379
    %v1385 = vmul.f32 %v1365, %v1381
    %1388 = vrot.lane.b32.xlu0 %v1384, 32
    %v1389 = vpop.permute.xlu0 %1388
    %1390 = vrot.lane.b32.xlu0 %v1385, 32
    %v1391 = vpop.permute.xlu0 %1390
    %v1394 = vadd.f32 %v1374, %v1389
    %v1395 = vadd.f32 %v1375, %v1391
    %v1396 = vtanh.pop %v1394
    %v1397 = vtanh.pop %v1395
    %1400 = vrot.lane.b32.xlu0 %v1396, 64
    %v1401 = vpop.permute.xlu0 %1400
    %1402 = vrot.lane.b32.xlu0 %v1397, 64
    %v1403 = vpop.permute.xlu0 %1402
    %v1406 = vmul.f32 %v1364, %v1401
    %v1407 = vmul.f32 %v1365, %v1403
    %v1408 = vld [vmem:[#allocation4 + $0x70] sm:$0xff]
    %v1409 = vld [vmem:[#allocation4 + $0x78] sm:$0xff]
    %1412 = vrot.lane.b32.xlu0 %v1406, 32
    %v1413 = vpop.permute.xlu0 %1412
    %1414 = vrot.lane.b32.xlu0 %v1407, 32
    %v1415 = vpop.permute.xlu0 %1414
    %v1418 = vmul.f32 %v1408, %v1413
    %v1419 = vmul.f32 %v1409, %v1415
    %1420 = vst.msk [vmem:[#allocation3 + $0x38] sm:$0xff] %vm90, %v1418
    %1422 = vrot.lane.b32.xlu0 %v1419, 32
    %v1423 = vpop.permute.xlu0 %1422
    %1425 = vst.msk [vmem:[#allocation3] sm:$0xff] %vm499, %v1423
    %v1426 = vld [vmem:[#allocation3] sm:$0xff]
    %v1427 = vld [vmem:[#allocation3 + $0x8] sm:$0xff]
    %v1428 = vld [vmem:[#allocation3 + $0x10] sm:$0xff]
    %v1429 = vld [vmem:[#allocation3 + $0x18] sm:$0xff]
    %v1430 = vld [vmem:[#allocation3 + $0x20] sm:$0xff]
    %v1431 = vld [vmem:[#allocation3 + $0x28] sm:$0xff]
    %v1432 = vld [vmem:[#allocation3 + $0x30] sm:$0xff]
    %v1433 = vld [vmem:[#allocation3 + $0x38] sm:$0xff]
    %v1434 = vpack.c.bf16 %v1427, %v1426
    %v1435 = vpack.c.bf16 %v1429, %v1428
    %v1436 = vpack.c.bf16 %v1431, %v1430
    %v1437 = vpack.c.bf16 %v1433, %v1432
    %v1438 = vld [vmem:[#allocation10 + $0x20] sm:$0xff]
    %v1439 = vld [vmem:[#allocation10 + $0x28] sm:$0xff]
    %v1440 = vld [vmem:[#allocation10 + $0x30] sm:$0xff]
    %v1441 = vld [vmem:[#allocation10 + $0x38] sm:$0xff]
    %v1442 = vld [vmem:[#allocation10 + $0x40] sm:$0xff]
    %v1443 = vld [vmem:[#allocation10 + $0x48] sm:$0xff]
    %v1444 = vld [vmem:[#allocation10 + $0x50] sm:$0xff]
    %v1445 = vld [vmem:[#allocation10 + $0x58] sm:$0xff]
    %s1446 = scalar_lea.vmem [#allocation11], 128
    %v1447 = vld [vmem:[%s1446] ss:$8 sm:$0x3]
    %v1449 = vlaneseq
    %v1450 = vshrl.u32 %v1449, 7
    %v1451 = vsub.s32 0, %v1450
    %v1452 = vrot.slane %v1447, %v1451
    %v1453 = vlaneseq
    %v1454 = vshrl.u32 %v1453, 7
    %v1455 = vsub.s32 1, %v1454
    %v1456 = vrot.slane %v1447, %v1455
    %v1467 = vunpack.c.l.b16 %v1438
    %v1468 = vunpack.c.h.b16 %v1438
    %v1469 = vunpack.c.l.b16 %v1439
    %v1470 = vunpack.c.h.b16 %v1439
    %v1471 = vunpack.c.l.b16 %v1440
    %v1472 = vunpack.c.h.b16 %v1440
    %v1473 = vunpack.c.l.b16 %v1441
    %v1474 = vunpack.c.h.b16 %v1441
    %v1475 = vunpack.c.l.b16 %v1442
    %v1476 = vunpack.c.h.b16 %v1442
    %v1477 = vunpack.c.l.b16 %v1443
    %v1478 = vunpack.c.h.b16 %v1443
    %v1479 = vunpack.c.l.b16 %v1444
    %v1480 = vunpack.c.h.b16 %v1444
    %v1481 = vunpack.c.l.b16 %v1445
    %v1482 = vunpack.c.h.b16 %v1445
    %v1483 = vpack.c.b16 %v1469, %v1467
    %v1484 = vpack.c.b16 %v1470, %v1468
    %v1485 = vpack.c.b16 %v1473, %v1471
    %v1486 = vpack.c.b16 %v1474, %v1472
    %v1487 = vpack.c.b16 %v1477, %v1475
    %v1488 = vpack.c.b16 %v1478, %v1476
    %v1489 = vpack.c.b16 %v1481, %v1479
    %v1490 = vpack.c.b16 %v1482, %v1480
    %vm1499 = vcmask 523264
    %v1501 = vsel %vm1499, %v1434, 0
    %v1504 = vsel %vm1499, %v1435, 0
    %v1507 = vsel %vm1499, %v1436, 0
    %v1510 = vsel %vm1499, %v1437, 0
    %1512 = vmatprep.subr.bf16.mxu0 0
    %1513 = vmatpush1.bf16.msra.mxu0 0
    %1514 = vmatprep.subr.bf16.mxu0 0
    %1515 = vmatpush1.bf16.msra.mxu0 0
    %1516 = vmatprep.subr.bf16.mxu0 0
    %1517 = vmatpush1.bf16.msra.mxu0 0
    %1518 = vmatprep.subr.bf16.mxu0 0
    %1519 = vmatpush1.bf16.msra.mxu0 0
    %1520 = vmatprep.subr.bf16.mxu0 %v1490
    %1521 = vmatpush1.bf16.msra.mxu0 %v1489
    %1522 = vmatprep.subr.bf16.mxu0 %v1488
    %1523 = vmatpush1.bf16.msra.mxu0 %v1487
    %1524 = vmatprep.subr.bf16.mxu0 %v1486
    %1525 = vmatpush1.bf16.msra.mxu0 %v1485
    %1526 = vmatprep.subr.bf16.mxu0 %v1484
    %1527 = vmatpush1.bf16.msra.mxu0 %v1483
    %1528 = vmatprep.subr.bf16.mxu0 0
    %1529 = vmatpush2.bf16.msra.mxu0 0
    %1530 = vmatprep.subr.bf16.mxu0 0
    %1531 = vmatpush2.bf16.msra.mxu0 0
    %1532 = vmatprep.subr.bf16.mxu0 0
    %1533 = vmatpush2.bf16.msra.mxu0 0
    %1534 = vmatprep.subr.bf16.mxu0 0
    %1535 = vmatpush2.bf16.msra.mxu0 0
    %1536 = vmatprep.subr.bf16.mxu0 0
    %1537 = vmatpush2.bf16.msra.mxu0 0
    %1538 = vmatprep.subr.bf16.mxu0 0
    %1539 = vmatpush2.bf16.msra.mxu0 0
    %1540 = vmatprep.subr.bf16.mxu0 0
    %1541 = vmatpush2.bf16.msra.mxu0 0
    %1542 = vmatprep.subr.bf16.mxu0 0
    %1543 = vmatpush2.bf16.msra.mxu0 0
    %1544 = vmatprep.mubr.bf16.mxu0 0
    %1545 = vmatmul.mubr.bf16.gmra.mxu0 %v1501
    %v1546 = vpop.f32.mrf.mxu0
    %v1547 = vadd.f32 %v1452, %v1546
    %v1548 = vpop.f32.mrf.mxu0
    %v1549 = vadd.f32 %v1456, %v1548
    %v1550 = vpop.f32.mrf.mxu0
    %v1551 = vadd.f32 %v1452, %v1550
    %v1552 = vpop.f32.mrf.mxu0
    %v1553 = vadd.f32 %v1456, %v1552
    %1554 = vmatprep.mubr.bf16.mxu0 0
    %1555 = vmatmul.mubr.bf16.gmra.mxu0 %v1504
    %v1556 = vpop.f32.mrf.mxu0
    %v1557 = vadd.f32 %v1452, %v1556
    %v1558 = vpop.f32.mrf.mxu0
    %v1559 = vadd.f32 %v1456, %v1558
    %v1560 = vpop.f32.mrf.mxu0
    %v1561 = vadd.f32 %v1452, %v1560
    %v1562 = vpop.f32.mrf.mxu0
    %v1563 = vadd.f32 %v1456, %v1562
    %1564 = vmatprep.mubr.bf16.mxu0 0
    %1565 = vmatmul.mubr.bf16.gmra.mxu0 %v1507
    %v1566 = vpop.f32.mrf.mxu0
    %v1567 = vadd.f32 %v1452, %v1566
    %v1568 = vpop.f32.mrf.mxu0
    %v1569 = vadd.f32 %v1456, %v1568
    %v1570 = vpop.f32.mrf.mxu0
    %v1571 = vadd.f32 %v1452, %v1570
    %v1572 = vpop.f32.mrf.mxu0
    %v1573 = vadd.f32 %v1456, %v1572
    %1574 = vmatprep.mubr.bf16.mxu0 0
    %1575 = vmatmul.mubr.bf16.gmra.mxu0 %v1510
    %v1576 = vpop.f32.mrf.mxu0
    %v1577 = vadd.f32 %v1452, %v1576
    %v1578 = vpop.f32.mrf.mxu0
    %v1579 = vadd.f32 %v1456, %v1578
    %v1580 = vpop.f32.mrf.mxu0
    %v1581 = vadd.f32 %v1452, %v1580
    %v1582 = vpop.f32.mrf.mxu0
    %v1583 = vadd.f32 %v1456, %v1582
    %1584 = vdwg.mxu0
    %1585 = vst [vmem:[#allocation2] sm:$0xff] %v1547
    %1586 = vst [vmem:[#allocation2 + $0x8] sm:$0xff] %v1549
    %1587 = vst [vmem:[#allocation2 + $0x10] sm:$0xff] %v1551
    %1588 = vst [vmem:[#allocation2 + $0x18] sm:$0xff] %v1553
    %1589 = vst [vmem:[#allocation2 + $0x20] sm:$0xff] %v1557
    %1590 = vst [vmem:[#allocation2 + $0x28] sm:$0xff] %v1559
    %1591 = vst [vmem:[#allocation2 + $0x30] sm:$0xff] %v1561
    %1592 = vst [vmem:[#allocation2 + $0x38] sm:$0xff] %v1563
    %1593 = vst [vmem:[#allocation2 + $0x40] sm:$0xff] %v1567
    %1594 = vst [vmem:[#allocation2 + $0x48] sm:$0xff] %v1569
    %1595 = vst [vmem:[#allocation2 + $0x50] sm:$0xff] %v1571
    %1596 = vst [vmem:[#allocation2 + $0x58] sm:$0xff] %v1573
    %1597 = vst [vmem:[#allocation2 + $0x60] sm:$0xff] %v1577
    %1598 = vst [vmem:[#allocation2 + $0x68] sm:$0xff] %v1579
    %1599 = vst [vmem:[#allocation2 + $0x70] sm:$0xff] %v1581
    %1600 = vst [vmem:[#allocation2 + $0x78] sm:$0xff] %v1583
    %v1601 = vld [vmem:[#allocation10 + $0x60] sm:$0xff]
    %v1602 = vld [vmem:[#allocation10 + $0x68] sm:$0xff]
    %v1603 = vld [vmem:[#allocation10 + $0x70] sm:$0xff]
    %v1604 = vld [vmem:[#allocation10 + $0x78] sm:$0xff]
    %v1609 = vunpack.c.l.b16 %v1601
    %v1610 = vunpack.c.h.b16 %v1601
    %v1611 = vunpack.c.l.b16 %v1602
    %v1612 = vunpack.c.h.b16 %v1602
    %v1613 = vunpack.c.l.b16 %v1603
    %v1614 = vunpack.c.h.b16 %v1603
    %v1615 = vunpack.c.l.b16 %v1604
    %v1616 = vunpack.c.h.b16 %v1604
    %v1617 = vpack.c.b16 %v1611, %v1609
    %v1618 = vpack.c.b16 %v1612, %v1610
    %v1619 = vpack.c.b16 %v1615, %v1613
    %v1620 = vpack.c.b16 %v1616, %v1614
    %1625 = vmatprep.subr.bf16.mxu0 0
    %1626 = vmatpush1.bf16.msra.mxu0 0
    %1627 = vmatprep.subr.bf16.mxu0 0
    %1628 = vmatpush1.bf16.msra.mxu0 0
    %1629 = vmatprep.subr.bf16.mxu0 0
    %1630 = vmatpush1.bf16.msra.mxu0 0
    %1631 = vmatprep.subr.bf16.mxu0 0
    %1632 = vmatpush1.bf16.msra.mxu0 0
    %1633 = vmatprep.subr.bf16.mxu0 0
    %1634 = vmatpush1.bf16.msra.mxu0 0
    %1635 = vmatprep.subr.bf16.mxu0 0
    %1636 = vmatpush1.bf16.msra.mxu0 0
    %1637 = vmatprep.subr.bf16.mxu0 %v1620
    %1638 = vmatpush1.bf16.msra.mxu0 %v1619
    %1639 = vmatprep.subr.bf16.mxu0 %v1618
    %1640 = vmatpush1.bf16.msra.mxu0 %v1617
    %1641 = vmatprep.subr.bf16.mxu0 0
    %1642 = vmatpush2.bf16.msra.mxu0 0
    %1643 = vmatprep.subr.bf16.mxu0 0
    %1644 = vmatpush2.bf16.msra.mxu0 0
    %1645 = vmatprep.subr.bf16.mxu0 0
    %1646 = vmatpush2.bf16.msra.mxu0 0
    %1647 = vmatprep.subr.bf16.mxu0 0
    %1648 = vmatpush2.bf16.msra.mxu0 0
    %1649 = vmatprep.subr.bf16.mxu0 0
    %1650 = vmatpush2.bf16.msra.mxu0 0
    %1651 = vmatprep.subr.bf16.mxu0 0
    %1652 = vmatpush2.bf16.msra.mxu0 0
    %1653 = vmatprep.subr.bf16.mxu0 0
    %1654 = vmatpush2.bf16.msra.mxu0 0
    %1655 = vmatprep.subr.bf16.mxu0 0
    %1656 = vmatpush2.bf16.msra.mxu0 0
    %1657 = vmatprep.mubr.bf16.mxu0 0
    %1658 = vmatmul.mubr.bf16.gmra.mxu0 %v377
    %v1659 = vpop.f32.mrf.mxu0
    %v1660 = vadd.f32 0.0, %v1659
    %v1661 = vpop.f32.mrf.mxu0
    %v1662 = vpop.f32.mrf.mxu0
    %v1663 = vpop.f32.mrf.mxu0
    %v1664 = vadd.f32 0.0, %v1663
    %1665 = vdwg.mxu0
    %v1666 = vld [vmem:[#allocation2] sm:$0xff]
    %v1667 = vadd.f32 %v1660, %v1666
    %v1668 = vld [vmem:[#allocation2 + $0x78] sm:$0xff]
    %v1669 = vadd.f32 %v1664, %v1668
    %v1670 = vtanh.pop %v1667
    %v1671 = vtanh.pop %v1669
    %v1672 = vmul.f32 %v1670, 0.5
    %v1673 = vmul.f32 %v1671, 0.5
    %v1674 = vadd.f32 %v1672, 0.5
    %v1675 = vadd.f32 %v1673, 0.5
    %v1676 = vmul.f32 %v1674, 0.0
    %v1677 = vmul.f32 %v1675, 0.0
    %1680 = vrot.lane.b32.xlu0 %v1670, 64
    %v1681 = vpop.permute.xlu0 %1680
    %1682 = vrot.lane.b32.xlu0 %v1671, 64
    %v1683 = vpop.permute.xlu0 %1682
    %v1686 = vmul.f32 %v1674, %v1681
    %v1687 = vmul.f32 %v1675, %v1683
    %1690 = vrot.lane.b32.xlu0 %v1686, 32
    %v1691 = vpop.permute.xlu0 %1690
    %1692 = vrot.lane.b32.xlu0 %v1687, 32
    %v1693 = vpop.permute.xlu0 %1692
    %v1696 = vadd.f32 %v1676, %v1691
    %v1697 = vadd.f32 %v1677, %v1693
    %v1698 = vtanh.pop %v1696
    %v1699 = vtanh.pop %v1697
    %1702 = vrot.lane.b32.xlu0 %v1698, 64
    %v1703 = vpop.permute.xlu0 %1702
    %1704 = vrot.lane.b32.xlu0 %v1699, 64
    %v1705 = vpop.permute.xlu0 %1704
    %v1708 = vmul.f32 %v1674, %v1703
    %v1709 = vmul.f32 %v1675, %v1705
    %v1710 = vld [vmem:[#allocation4] sm:$0xff]
    %v1711 = vld [vmem:[#allocation4 + $0x8] sm:$0xff]
    %1714 = vrot.lane.b32.xlu0 %v1708, 32
    %v1715 = vpop.permute.xlu0 %1714
    %1716 = vrot.lane.b32.xlu0 %v1709, 32
    %v1717 = vpop.permute.xlu0 %1716
    %v1720 = vmul.f32 %v1710, %v1715
    %v1721 = vmul.f32 %v1711, %v1717
    %v1722 = vsub.f32 1.0, %v1710
    %v1723 = vsub.f32 1.0, %v1711
    %v1724 = vmul.f32 %v1722, 0.0
    %v1725 = vmul.f32 %v1723, 0.0
    %v1726 = vadd.f32 %v1720, %v1724
    %v1727 = vadd.f32 %v1721, %v1725
    %1730 = vrot.lane.b32.xlu0 %v1696, 96
    %v1731 = vpop.permute.xlu0 %1730
    %1732 = vrot.lane.b32.xlu0 %v1697, 96
    %v1733 = vpop.permute.xlu0 %1732
    %v1736 = vmul.f32 %v1710, %v1731
    %v1737 = vmul.f32 %v1711, %v1733
    %v1738 = vadd.f32 %v1736, %v1724
    %v1739 = vadd.f32 %v1737, %v1725
    %v1740 = vpack.c.bf16 %v1727, %v1726
    %v1742 = vsel %vm90, %v1740, 0
    %1744 = vmatprep.subr.bf16.mxu0 0
    %1745 = vmatpush1.bf16.msra.mxu0 0
    %1746 = vmatprep.subr.bf16.mxu0 0
    %1747 = vmatpush1.bf16.msra.mxu0 0
    %1748 = vmatprep.subr.bf16.mxu0 0
    %1749 = vmatpush1.bf16.msra.mxu0 0
    %1750 = vmatprep.subr.bf16.mxu0 0
    %1751 = vmatpush1.bf16.msra.mxu0 0
    %1752 = vmatprep.subr.bf16.mxu0 0
    %1753 = vmatpush1.bf16.msra.mxu0 0
    %1754 = vmatprep.subr.bf16.mxu0 0
    %1755 = vmatpush1.bf16.msra.mxu0 0
    %1756 = vmatprep.subr.bf16.mxu0 %v1620
    %1757 = vmatpush1.bf16.msra.mxu0 %v1619
    %1758 = vmatprep.subr.bf16.mxu0 %v1618
    %1759 = vmatpush1.bf16.msra.mxu0 %v1617
    %1760 = vmatprep.subr.bf16.mxu0 0
    %1761 = vmatpush2.bf16.msra.mxu0 0
    %1762 = vmatprep.subr.bf16.mxu0 0
    %1763 = vmatpush2.bf16.msra.mxu0 0
    %1764 = vmatprep.subr.bf16.mxu0 0
    %1765 = vmatpush2.bf16.msra.mxu0 0
    %1766 = vmatprep.subr.bf16.mxu0 0
    %1767 = vmatpush2.bf16.msra.mxu0 0
    %1768 = vmatprep.subr.bf16.mxu0 0
    %1769 = vmatpush2.bf16.msra.mxu0 0
    %1770 = vmatprep.subr.bf16.mxu0 0
    %1771 = vmatpush2.bf16.msra.mxu0 0
    %1772 = vmatprep.subr.bf16.mxu0 0
    %1773 = vmatpush2.bf16.msra.mxu0 0
    %1774 = vmatprep.subr.bf16.mxu0 0
    %1775 = vmatpush2.bf16.msra.mxu0 0
    %1776 = vmatprep.mubr.bf16.mxu0 0
    %1777 = vmatmul.mubr.bf16.gmra.mxu0 %v1742
    %v1778 = vpop.f32.mrf.mxu0
    %v1779 = vadd.f32 0.0, %v1778
    %v1780 = vpop.f32.mrf.mxu0
    %v1781 = vpop.f32.mrf.mxu0
    %v1782 = vpop.f32.mrf.mxu0
    %v1783 = vadd.f32 0.0, %v1782
    %1784 = vdwg.mxu0
    %v1785 = vld [vmem:[#allocation2 + $0x10] sm:$0xff]
    %v1786 = vadd.f32 %v1779, %v1785
    %v1787 = vld [vmem:[#allocation2 + $0x68] sm:$0xff]
    %v1788 = vadd.f32 %v1783, %v1787
    %v1789 = vtanh.pop %v1786
    %v1790 = vtanh.pop %v1788
    %v1791 = vmul.f32 %v1789, 0.5
    %v1792 = vmul.f32 %v1790, 0.5
    %v1793 = vadd.f32 %v1791, 0.5
    %v1794 = vadd.f32 %v1792, 0.5
    %1797 = vrot.lane.b32.xlu0 %v1738, 32
    %v1798 = vpop.permute.xlu0 %1797
    %1799 = vrot.lane.b32.xlu0 %v1739, 32
    %v1800 = vpop.permute.xlu0 %1799
    %v1803 = vmul.f32 %v1793, %v1798
    %v1804 = vmul.f32 %v1794, %v1800
    %1807 = vrot.lane.b32.xlu0 %v1789, 64
    %v1808 = vpop.permute.xlu0 %1807
    %1809 = vrot.lane.b32.xlu0 %v1790, 64
    %v1810 = vpop.permute.xlu0 %1809
    %v1813 = vmul.f32 %v1793, %v1808
    %v1814 = vmul.f32 %v1794, %v1810
    %1817 = vrot.lane.b32.xlu0 %v1813, 32
    %v1818 = vpop.permute.xlu0 %1817
    %1819 = vrot.lane.b32.xlu0 %v1814, 32
    %v1820 = vpop.permute.xlu0 %1819
    %v1823 = vadd.f32 %v1803, %v1818
    %v1824 = vadd.f32 %v1804, %v1820
    %v1825 = vtanh.pop %v1823
    %v1826 = vtanh.pop %v1824
    %1829 = vrot.lane.b32.xlu0 %v1825, 64
    %v1830 = vpop.permute.xlu0 %1829
    %1831 = vrot.lane.b32.xlu0 %v1826, 64
    %v1832 = vpop.permute.xlu0 %1831
    %v1835 = vmul.f32 %v1793, %v1830
    %v1836 = vmul.f32 %v1794, %v1832
    %v1837 = vld [vmem:[#allocation4 + $0x10] sm:$0xff]
    %v1838 = vld [vmem:[#allocation4 + $0x18] sm:$0xff]
    %1841 = vrot.lane.b32.xlu0 %v1835, 32
    %v1842 = vpop.permute.xlu0 %1841
    %1843 = vrot.lane.b32.xlu0 %v1836, 32
    %v1844 = vpop.permute.xlu0 %1843
    %v1847 = vmul.f32 %v1837, %v1842
    %v1848 = vmul.f32 %v1838, %v1844
    %v1849 = vsub.f32 1.0, %v1837
    %v1850 = vsub.f32 1.0, %v1838
    %v1851 = vmul.f32 %v1849, %v1726
    %v1852 = vmul.f32 %v1850, %v1727
    %v1853 = vadd.f32 %v1847, %v1851
    %v1854 = vadd.f32 %v1848, %v1852
    %1857 = vrot.lane.b32.xlu0 %v1823, 96
    %v1858 = vpop.permute.xlu0 %1857
    %1859 = vrot.lane.b32.xlu0 %v1824, 96
    %v1860 = vpop.permute.xlu0 %1859
    %v1863 = vmul.f32 %v1837, %v1858
    %v1864 = vmul.f32 %v1838, %v1860
    %v1865 = vmul.f32 %v1849, %v1738
    %v1866 = vmul.f32 %v1850, %v1739
    %v1867 = vadd.f32 %v1863, %v1865
    %v1868 = vadd.f32 %v1864, %v1866
    %v1869 = vpack.c.bf16 %v1854, %v1853
    %v1871 = vsel %vm90, %v1869, 0
    %1873 = vmatprep.subr.bf16.mxu0 0
    %1874 = vmatpush1.bf16.msra.mxu0 0
    %1875 = vmatprep.subr.bf16.mxu0 0
    %1876 = vmatpush1.bf16.msra.mxu0 0
    %1877 = vmatprep.subr.bf16.mxu0 0
    %1878 = vmatpush1.bf16.msra.mxu0 0
    %1879 = vmatprep.subr.bf16.mxu0 0
    %1880 = vmatpush1.bf16.msra.mxu0 0
    %1881 = vmatprep.subr.bf16.mxu0 0
    %1882 = vmatpush1.bf16.msra.mxu0 0
    %1883 = vmatprep.subr.bf16.mxu0 0
    %1884 = vmatpush1.bf16.msra.mxu0 0
    %1885 = vmatprep.subr.bf16.mxu0 %v1620
    %1886 = vmatpush1.bf16.msra.mxu0 %v1619
    %1887 = vmatprep.subr.bf16.mxu0 %v1618
    %1888 = vmatpush1.bf16.msra.mxu0 %v1617
    %1889 = vmatprep.subr.bf16.mxu0 0
    %1890 = vmatpush2.bf16.msra.mxu0 0
    %1891 = vmatprep.subr.bf16.mxu0 0
    %1892 = vmatpush2.bf16.msra.mxu0 0
    %1893 = vmatprep.subr.bf16.mxu0 0
    %1894 = vmatpush2.bf16.msra.mxu0 0
    %1895 = vmatprep.subr.bf16.mxu0 0
    %1896 = vmatpush2.bf16.msra.mxu0 0
    %1897 = vmatprep.subr.bf16.mxu0 0
    %1898 = vmatpush2.bf16.msra.mxu0 0
    %1899 = vmatprep.subr.bf16.mxu0 0
    %1900 = vmatpush2.bf16.msra.mxu0 0
    %1901 = vmatprep.subr.bf16.mxu0 0
    %1902 = vmatpush2.bf16.msra.mxu0 0
    %1903 = vmatprep.subr.bf16.mxu0 0
    %1904 = vmatpush2.bf16.msra.mxu0 0
    %1905 = vmatprep.mubr.bf16.mxu0 0
    %1906 = vmatmul.mubr.bf16.gmra.mxu0 %v1871
    %v1907 = vpop.f32.mrf.mxu0
    %v1908 = vadd.f32 0.0, %v1907
    %v1909 = vpop.f32.mrf.mxu0
    %v1910 = vpop.f32.mrf.mxu0
    %v1911 = vpop.f32.mrf.mxu0
    %v1912 = vadd.f32 0.0, %v1911
    %1913 = vdwg.mxu0
    %v1914 = vld [vmem:[#allocation2 + $0x20] sm:$0xff]
    %v1915 = vadd.f32 %v1908, %v1914
    %v1916 = vld [vmem:[#allocation2 + $0x58] sm:$0xff]
    %v1917 = vadd.f32 %v1912, %v1916
    %v1918 = vtanh.pop %v1915
    %v1919 = vtanh.pop %v1917
    %v1920 = vmul.f32 %v1918, 0.5
    %v1921 = vmul.f32 %v1919, 0.5
    %v1922 = vadd.f32 %v1920, 0.5
    %v1923 = vadd.f32 %v1921, 0.5
    %1926 = vrot.lane.b32.xlu0 %v1867, 32
    %v1927 = vpop.permute.xlu0 %1926
    %1928 = vrot.lane.b32.xlu0 %v1868, 32
    %v1929 = vpop.permute.xlu0 %1928
    %v1932 = vmul.f32 %v1922, %v1927
    %v1933 = vmul.f32 %v1923, %v1929
    %1936 = vrot.lane.b32.xlu0 %v1918, 64
    %v1937 = vpop.permute.xlu0 %1936
    %1938 = vrot.lane.b32.xlu0 %v1919, 64
    %v1939 = vpop.permute.xlu0 %1938
    %v1942 = vmul.f32 %v1922, %v1937
    %v1943 = vmul.f32 %v1923, %v1939
    %1946 = vrot.lane.b32.xlu0 %v1942, 32
    %v1947 = vpop.permute.xlu0 %1946
    %1948 = vrot.lane.b32.xlu0 %v1943, 32
    %v1949 = vpop.permute.xlu0 %1948
    %v1952 = vadd.f32 %v1932, %v1947
    %v1953 = vadd.f32 %v1933, %v1949
    %v1954 = vtanh.pop %v1952
    %v1955 = vtanh.pop %v1953
    %1958 = vrot.lane.b32.xlu0 %v1954, 64
    %v1959 = vpop.permute.xlu0 %1958
    %1960 = vrot.lane.b32.xlu0 %v1955, 64
    %v1961 = vpop.permute.xlu0 %1960
    %v1964 = vmul.f32 %v1922, %v1959
    %v1965 = vmul.f32 %v1923, %v1961
    %v1966 = vld [vmem:[#allocation4 + $0x20] sm:$0xff]
    %v1967 = vld [vmem:[#allocation4 + $0x28] sm:$0xff]
    %1970 = vrot.lane.b32.xlu0 %v1964, 32
    %v1971 = vpop.permute.xlu0 %1970
    %1972 = vrot.lane.b32.xlu0 %v1965, 32
    %v1973 = vpop.permute.xlu0 %1972
    %v1976 = vmul.f32 %v1966, %v1971
    %v1977 = vmul.f32 %v1967, %v1973
    %v1978 = vsub.f32 1.0, %v1966
    %v1979 = vsub.f32 1.0, %v1967
    %v1980 = vmul.f32 %v1978, %v1853
    %v1981 = vmul.f32 %v1979, %v1854
    %v1982 = vadd.f32 %v1976, %v1980
    %v1983 = vadd.f32 %v1977, %v1981
    %1986 = vrot.lane.b32.xlu0 %v1952, 96
    %v1987 = vpop.permute.xlu0 %1986
    %1988 = vrot.lane.b32.xlu0 %v1953, 96
    %v1989 = vpop.permute.xlu0 %1988
    %v1992 = vmul.f32 %v1966, %v1987
    %v1993 = vmul.f32 %v1967, %v1989
    %v1994 = vmul.f32 %v1978, %v1867
    %v1995 = vmul.f32 %v1979, %v1868
    %v1996 = vadd.f32 %v1992, %v1994
    %v1997 = vadd.f32 %v1993, %v1995
    %v1998 = vpack.c.bf16 %v1983, %v1982
    %v2000 = vsel %vm90, %v1998, 0
    %2002 = vmatprep.subr.bf16.mxu0 0
    %2003 = vmatpush1.bf16.msra.mxu0 0
    %2004 = vmatprep.subr.bf16.mxu0 0
    %2005 = vmatpush1.bf16.msra.mxu0 0
    %2006 = vmatprep.subr.bf16.mxu0 0
    %2007 = vmatpush1.bf16.msra.mxu0 0
    %2008 = vmatprep.subr.bf16.mxu0 0
    %2009 = vmatpush1.bf16.msra.mxu0 0
    %2010 = vmatprep.subr.bf16.mxu0 0
    %2011 = vmatpush1.bf16.msra.mxu0 0
    %2012 = vmatprep.subr.bf16.mxu0 0
    %2013 = vmatpush1.bf16.msra.mxu0 0
    %2014 = vmatprep.subr.bf16.mxu0 %v1620
    %2015 = vmatpush1.bf16.msra.mxu0 %v1619
    %2016 = vmatprep.subr.bf16.mxu0 %v1618
    %2017 = vmatpush1.bf16.msra.mxu0 %v1617
    %2018 = vmatprep.subr.bf16.mxu0 0
    %2019 = vmatpush2.bf16.msra.mxu0 0
    %2020 = vmatprep.subr.bf16.mxu0 0
    %2021 = vmatpush2.bf16.msra.mxu0 0
    %2022 = vmatprep.subr.bf16.mxu0 0
    %2023 = vmatpush2.bf16.msra.mxu0 0
    %2024 = vmatprep.subr.bf16.mxu0 0
    %2025 = vmatpush2.bf16.msra.mxu0 0
    %2026 = vmatprep.subr.bf16.mxu0 0
    %2027 = vmatpush2.bf16.msra.mxu0 0
    %2028 = vmatprep.subr.bf16.mxu0 0
    %2029 = vmatpush2.bf16.msra.mxu0 0
    %2030 = vmatprep.subr.bf16.mxu0 0
    %2031 = vmatpush2.bf16.msra.mxu0 0
    %2032 = vmatprep.subr.bf16.mxu0 0
    %2033 = vmatpush2.bf16.msra.mxu0 0
    %2034 = vmatprep.mubr.bf16.mxu0 0
    %2035 = vmatmul.mubr.bf16.gmra.mxu0 %v2000
    %v2036 = vpop.f32.mrf.mxu0
    %v2037 = vadd.f32 0.0, %v2036
    %v2038 = vpop.f32.mrf.mxu0
    %v2039 = vpop.f32.mrf.mxu0
    %v2040 = vpop.f32.mrf.mxu0
    %v2041 = vadd.f32 0.0, %v2040
    %2042 = vdwg.mxu0
    %v2043 = vld [vmem:[#allocation2 + $0x30] sm:$0xff]
    %v2044 = vadd.f32 %v2037, %v2043
    %v2045 = vld [vmem:[#allocation2 + $0x48] sm:$0xff]
    %v2046 = vadd.f32 %v2041, %v2045
    %v2047 = vtanh.pop %v2044
    %v2048 = vtanh.pop %v2046
    %v2049 = vmul.f32 %v2047, 0.5
    %v2050 = vmul.f32 %v2048, 0.5
    %v2051 = vadd.f32 %v2049, 0.5
    %v2052 = vadd.f32 %v2050, 0.5
    %2055 = vrot.lane.b32.xlu0 %v1996, 32
    %v2056 = vpop.permute.xlu0 %2055
    %2057 = vrot.lane.b32.xlu0 %v1997, 32
    %v2058 = vpop.permute.xlu0 %2057
    %v2061 = vmul.f32 %v2051, %v2056
    %v2062 = vmul.f32 %v2052, %v2058
    %2065 = vrot.lane.b32.xlu0 %v2047, 64
    %v2066 = vpop.permute.xlu0 %2065
    %2067 = vrot.lane.b32.xlu0 %v2048, 64
    %v2068 = vpop.permute.xlu0 %2067
    %v2071 = vmul.f32 %v2051, %v2066
    %v2072 = vmul.f32 %v2052, %v2068
    %2075 = vrot.lane.b32.xlu0 %v2071, 32
    %v2076 = vpop.permute.xlu0 %2075
    %2077 = vrot.lane.b32.xlu0 %v2072, 32
    %v2078 = vpop.permute.xlu0 %2077
    %v2081 = vadd.f32 %v2061, %v2076
    %v2082 = vadd.f32 %v2062, %v2078
    %v2083 = vtanh.pop %v2081
    %v2084 = vtanh.pop %v2082
    %2087 = vrot.lane.b32.xlu0 %v2083, 64
    %v2088 = vpop.permute.xlu0 %2087
    %2089 = vrot.lane.b32.xlu0 %v2084, 64
    %v2090 = vpop.permute.xlu0 %2089
    %v2093 = vmul.f32 %v2051, %v2088
    %v2094 = vmul.f32 %v2052, %v2090
    %v2095 = vld [vmem:[#allocation4 + $0x30] sm:$0xff]
    %v2096 = vld [vmem:[#allocation4 + $0x38] sm:$0xff]
    %2099 = vrot.lane.b32.xlu0 %v2093, 32
    %v2100 = vpop.permute.xlu0 %2099
    %2101 = vrot.lane.b32.xlu0 %v2094, 32
    %v2102 = vpop.permute.xlu0 %2101
    %v2105 = vmul.f32 %v2095, %v2100
    %v2106 = vmul.f32 %v2096, %v2102
    %v2107 = vsub.f32 1.0, %v2095
    %v2108 = vsub.f32 1.0, %v2096
    %v2109 = vmul.f32 %v2107, %v1982
    %v2110 = vmul.f32 %v2108, %v1983
    %v2111 = vadd.f32 %v2105, %v2109
    %v2112 = vadd.f32 %v2106, %v2110
    %2115 = vrot.lane.b32.xlu0 %v2081, 96
    %v2116 = vpop.permute.xlu0 %2115
    %2117 = vrot.lane.b32.xlu0 %v2082, 96
    %v2118 = vpop.permute.xlu0 %2117
    %v2121 = vmul.f32 %v2095, %v2116
    %v2122 = vmul.f32 %v2096, %v2118
    %v2123 = vmul.f32 %v2107, %v1996
    %v2124 = vmul.f32 %v2108, %v1997
    %v2125 = vadd.f32 %v2121, %v2123
    %v2126 = vadd.f32 %v2122, %v2124
    %v2127 = vpack.c.bf16 %v2112, %v2111
    %v2129 = vsel %vm90, %v2127, 0
    %2131 = vmatprep.subr.bf16.mxu0 0
    %2132 = vmatpush1.bf16.msra.mxu0 0
    %2133 = vmatprep.subr.bf16.mxu0 0
    %2134 = vmatpush1.bf16.msra.mxu0 0
    %2135 = vmatprep.subr.bf16.mxu0 0
    %2136 = vmatpush1.bf16.msra.mxu0 0
    %2137 = vmatprep.subr.bf16.mxu0 0
    %2138 = vmatpush1.bf16.msra.mxu0 0
    %2139 = vmatprep.subr.bf16.mxu0 0
    %2140 = vmatpush1.bf16.msra.mxu0 0
    %2141 = vmatprep.subr.bf16.mxu0 0
    %2142 = vmatpush1.bf16.msra.mxu0 0
    %2143 = vmatprep.subr.bf16.mxu0 %v1620
    %2144 = vmatpush1.bf16.msra.mxu0 %v1619
    %2145 = vmatprep.subr.bf16.mxu0 %v1618
    %2146 = vmatpush1.bf16.msra.mxu0 %v1617
    %2147 = vmatprep.subr.bf16.mxu0 0
    %2148 = vmatpush2.bf16.msra.mxu0 0
    %2149 = vmatprep.subr.bf16.mxu0 0
    %2150 = vmatpush2.bf16.msra.mxu0 0
    %2151 = vmatprep.subr.bf16.mxu0 0
    %2152 = vmatpush2.bf16.msra.mxu0 0
    %2153 = vmatprep.subr.bf16.mxu0 0
    %2154 = vmatpush2.bf16.msra.mxu0 0
    %2155 = vmatprep.subr.bf16.mxu0 0
    %2156 = vmatpush2.bf16.msra.mxu0 0
    %2157 = vmatprep.subr.bf16.mxu0 0
    %2158 = vmatpush2.bf16.msra.mxu0 0
    %2159 = vmatprep.subr.bf16.mxu0 0
    %2160 = vmatpush2.bf16.msra.mxu0 0
    %2161 = vmatprep.subr.bf16.mxu0 0
    %2162 = vmatpush2.bf16.msra.mxu0 0
    %2163 = vmatprep.mubr.bf16.mxu0 0
    %2164 = vmatmul.mubr.bf16.gmra.mxu0 %v2129
    %v2165 = vpop.f32.mrf.mxu0
    %v2166 = vadd.f32 0.0, %v2165
    %v2167 = vpop.f32.mrf.mxu0
    %v2168 = vpop.f32.mrf.mxu0
    %v2169 = vpop.f32.mrf.mxu0
    %v2170 = vadd.f32 0.0, %v2169
    %2171 = vdwg.mxu0
    %v2172 = vld [vmem:[#allocation2 + $0x40] sm:$0xff]
    %v2173 = vadd.f32 %v2166, %v2172
    %v2174 = vld [vmem:[#allocation2 + $0x38] sm:$0xff]
    %v2175 = vadd.f32 %v2170, %v2174
    %v2176 = vtanh.pop %v2173
    %v2177 = vtanh.pop %v2175
    %v2178 = vmul.f32 %v2176, 0.5
    %v2179 = vmul.f32 %v2177, 0.5
    %v2180 = vadd.f32 %v2178, 0.5
    %v2181 = vadd.f32 %v2179, 0.5
    %2184 = vrot.lane.b32.xlu0 %v2125, 32
    %v2185 = vpop.permute.xlu0 %2184
    %2186 = vrot.lane.b32.xlu0 %v2126, 32
    %v2187 = vpop.permute.xlu0 %2186
    %v2190 = vmul.f32 %v2180, %v2185
    %v2191 = vmul.f32 %v2181, %v2187
    %2194 = vrot.lane.b32.xlu0 %v2176, 64
    %v2195 = vpop.permute.xlu0 %2194
    %2196 = vrot.lane.b32.xlu0 %v2177, 64
    %v2197 = vpop.permute.xlu0 %2196
    %v2200 = vmul.f32 %v2180, %v2195
    %v2201 = vmul.f32 %v2181, %v2197
    %2204 = vrot.lane.b32.xlu0 %v2200, 32
    %v2205 = vpop.permute.xlu0 %2204
    %2206 = vrot.lane.b32.xlu0 %v2201, 32
    %v2207 = vpop.permute.xlu0 %2206
    %v2210 = vadd.f32 %v2190, %v2205
    %v2211 = vadd.f32 %v2191, %v2207
    %v2212 = vtanh.pop %v2210
    %v2213 = vtanh.pop %v2211
    %2216 = vrot.lane.b32.xlu0 %v2212, 64
    %v2217 = vpop.permute.xlu0 %2216
    %2218 = vrot.lane.b32.xlu0 %v2213, 64
    %v2219 = vpop.permute.xlu0 %2218
    %v2222 = vmul.f32 %v2180, %v2217
    %v2223 = vmul.f32 %v2181, %v2219
    %v2224 = vld [vmem:[#allocation4 + $0x40] sm:$0xff]
    %v2225 = vld [vmem:[#allocation4 + $0x48] sm:$0xff]
    %2228 = vrot.lane.b32.xlu0 %v2222, 32
    %v2229 = vpop.permute.xlu0 %2228
    %2230 = vrot.lane.b32.xlu0 %v2223, 32
    %v2231 = vpop.permute.xlu0 %2230
    %v2234 = vmul.f32 %v2224, %v2229
    %v2235 = vmul.f32 %v2225, %v2231
    %v2236 = vsub.f32 1.0, %v2224
    %v2237 = vsub.f32 1.0, %v2225
    %v2238 = vmul.f32 %v2236, %v2111
    %v2239 = vmul.f32 %v2237, %v2112
    %v2240 = vadd.f32 %v2234, %v2238
    %v2241 = vadd.f32 %v2235, %v2239
    %2244 = vrot.lane.b32.xlu0 %v2210, 96
    %v2245 = vpop.permute.xlu0 %2244
    %2246 = vrot.lane.b32.xlu0 %v2211, 96
    %v2247 = vpop.permute.xlu0 %2246
    %v2250 = vmul.f32 %v2224, %v2245
    %v2251 = vmul.f32 %v2225, %v2247
    %v2252 = vmul.f32 %v2236, %v2125
    %v2253 = vmul.f32 %v2237, %v2126
    %v2254 = vadd.f32 %v2250, %v2252
    %v2255 = vadd.f32 %v2251, %v2253
    %v2256 = vpack.c.bf16 %v2241, %v2240
    %v2258 = vsel %vm90, %v2256, 0
    %2260 = vmatprep.subr.bf16.mxu0 0
    %2261 = vmatpush1.bf16.msra.mxu0 0
    %2262 = vmatprep.subr.bf16.mxu0 0
    %2263 = vmatpush1.bf16.msra.mxu0 0
    %2264 = vmatprep.subr.bf16.mxu0 0
    %2265 = vmatpush1.bf16.msra.mxu0 0
    %2266 = vmatprep.subr.bf16.mxu0 0
    %2267 = vmatpush1.bf16.msra.mxu0 0
    %2268 = vmatprep.subr.bf16.mxu0 0
    %2269 = vmatpush1.bf16.msra.mxu0 0
    %2270 = vmatprep.subr.bf16.mxu0 0
    %2271 = vmatpush1.bf16.msra.mxu0 0
    %2272 = vmatprep.subr.bf16.mxu0 %v1620
    %2273 = vmatpush1.bf16.msra.mxu0 %v1619
    %2274 = vmatprep.subr.bf16.mxu0 %v1618
    %2275 = vmatpush1.bf16.msra.mxu0 %v1617
    %2276 = vmatprep.subr.bf16.mxu0 0
    %2277 = vmatpush2.bf16.msra.mxu0 0
    %2278 = vmatprep.subr.bf16.mxu0 0
    %2279 = vmatpush2.bf16.msra.mxu0 0
    %2280 = vmatprep.subr.bf16.mxu0 0
    %2281 = vmatpush2.bf16.msra.mxu0 0
    %2282 = vmatprep.subr.bf16.mxu0 0
    %2283 = vmatpush2.bf16.msra.mxu0 0
    %2284 = vmatprep.subr.bf16.mxu0 0
    %2285 = vmatpush2.bf16.msra.mxu0 0
    %2286 = vmatprep.subr.bf16.mxu0 0
    %2287 = vmatpush2.bf16.msra.mxu0 0
    %2288 = vmatprep.subr.bf16.mxu0 0
    %2289 = vmatpush2.bf16.msra.mxu0 0
    %2290 = vmatprep.subr.bf16.mxu0 0
    %2291 = vmatpush2.bf16.msra.mxu0 0
    %2292 = vmatprep.mubr.bf16.mxu0 0
    %2293 = vmatmul.mubr.bf16.gmra.mxu0 %v2258
    %v2294 = vpop.f32.mrf.mxu0
    %v2295 = vadd.f32 0.0, %v2294
    %v2296 = vpop.f32.mrf.mxu0
    %v2297 = vpop.f32.mrf.mxu0
    %v2298 = vpop.f32.mrf.mxu0
    %v2299 = vadd.f32 0.0, %v2298
    %2300 = vdwg.mxu0
    %v2301 = vld [vmem:[#allocation2 + $0x50] sm:$0xff]
    %v2302 = vadd.f32 %v2295, %v2301
    %v2303 = vld [vmem:[#allocation2 + $0x28] sm:$0xff]
    %v2304 = vadd.f32 %v2299, %v2303
    %v2305 = vtanh.pop %v2302
    %v2306 = vtanh.pop %v2304
    %v2307 = vmul.f32 %v2305, 0.5
    %v2308 = vmul.f32 %v2306, 0.5
    %v2309 = vadd.f32 %v2307, 0.5
    %v2310 = vadd.f32 %v2308, 0.5
    %2313 = vrot.lane.b32.xlu0 %v2254, 32
    %v2314 = vpop.permute.xlu0 %2313
    %2315 = vrot.lane.b32.xlu0 %v2255, 32
    %v2316 = vpop.permute.xlu0 %2315
    %v2319 = vmul.f32 %v2309, %v2314
    %v2320 = vmul.f32 %v2310, %v2316
    %2323 = vrot.lane.b32.xlu0 %v2305, 64
    %v2324 = vpop.permute.xlu0 %2323
    %2325 = vrot.lane.b32.xlu0 %v2306, 64
    %v2326 = vpop.permute.xlu0 %2325
    %v2329 = vmul.f32 %v2309, %v2324
    %v2330 = vmul.f32 %v2310, %v2326
    %2333 = vrot.lane.b32.xlu0 %v2329, 32
    %v2334 = vpop.permute.xlu0 %2333
    %2335 = vrot.lane.b32.xlu0 %v2330, 32
    %v2336 = vpop.permute.xlu0 %2335
    %v2339 = vadd.f32 %v2319, %v2334
    %v2340 = vadd.f32 %v2320, %v2336
    %v2341 = vtanh.pop %v2339
    %v2342 = vtanh.pop %v2340
    %2345 = vrot.lane.b32.xlu0 %v2341, 64
    %v2346 = vpop.permute.xlu0 %2345
    %2347 = vrot.lane.b32.xlu0 %v2342, 64
    %v2348 = vpop.permute.xlu0 %2347
    %v2351 = vmul.f32 %v2309, %v2346
    %v2352 = vmul.f32 %v2310, %v2348
    %v2353 = vld [vmem:[#allocation4 + $0x50] sm:$0xff]
    %v2354 = vld [vmem:[#allocation4 + $0x58] sm:$0xff]
    %2357 = vrot.lane.b32.xlu0 %v2351, 32
    %v2358 = vpop.permute.xlu0 %2357
    %2359 = vrot.lane.b32.xlu0 %v2352, 32
    %v2360 = vpop.permute.xlu0 %2359
    %v2363 = vmul.f32 %v2353, %v2358
    %v2364 = vmul.f32 %v2354, %v2360
    %v2365 = vsub.f32 1.0, %v2353
    %v2366 = vsub.f32 1.0, %v2354
    %v2367 = vmul.f32 %v2365, %v2240
    %v2368 = vmul.f32 %v2366, %v2241
    %v2369 = vadd.f32 %v2363, %v2367
    %v2370 = vadd.f32 %v2364, %v2368
    %2373 = vrot.lane.b32.xlu0 %v2339, 96
    %v2374 = vpop.permute.xlu0 %2373
    %2375 = vrot.lane.b32.xlu0 %v2340, 96
    %v2376 = vpop.permute.xlu0 %2375
    %v2379 = vmul.f32 %v2353, %v2374
    %v2380 = vmul.f32 %v2354, %v2376
    %v2381 = vmul.f32 %v2365, %v2254
    %v2382 = vmul.f32 %v2366, %v2255
    %v2383 = vadd.f32 %v2379, %v2381
    %v2384 = vadd.f32 %v2380, %v2382
    %v2385 = vpack.c.bf16 %v2370, %v2369
    %v2387 = vsel %vm90, %v2385, 0
    %2389 = vmatprep.subr.bf16.mxu0 0
    %2390 = vmatpush1.bf16.msra.mxu0 0
    %2391 = vmatprep.subr.bf16.mxu0 0
    %2392 = vmatpush1.bf16.msra.mxu0 0
    %2393 = vmatprep.subr.bf16.mxu0 0
    %2394 = vmatpush1.bf16.msra.mxu0 0
    %2395 = vmatprep.subr.bf16.mxu0 0
    %2396 = vmatpush1.bf16.msra.mxu0 0
    %2397 = vmatprep.subr.bf16.mxu0 0
    %2398 = vmatpush1.bf16.msra.mxu0 0
    %2399 = vmatprep.subr.bf16.mxu0 0
    %2400 = vmatpush1.bf16.msra.mxu0 0
    %2401 = vmatprep.subr.bf16.mxu0 %v1620
    %2402 = vmatpush1.bf16.msra.mxu0 %v1619
    %2403 = vmatprep.subr.bf16.mxu0 %v1618
    %2404 = vmatpush1.bf16.msra.mxu0 %v1617
    %2405 = vmatprep.subr.bf16.mxu0 0
    %2406 = vmatpush2.bf16.msra.mxu0 0
    %2407 = vmatprep.subr.bf16.mxu0 0
    %2408 = vmatpush2.bf16.msra.mxu0 0
    %2409 = vmatprep.subr.bf16.mxu0 0
    %2410 = vmatpush2.bf16.msra.mxu0 0
    %2411 = vmatprep.subr.bf16.mxu0 0
    %2412 = vmatpush2.bf16.msra.mxu0 0
    %2413 = vmatprep.subr.bf16.mxu0 0
    %2414 = vmatpush2.bf16.msra.mxu0 0
    %2415 = vmatprep.subr.bf16.mxu0 0
    %2416 = vmatpush2.bf16.msra.mxu0 0
    %2417 = vmatprep.subr.bf16.mxu0 0
    %2418 = vmatpush2.bf16.msra.mxu0 0
    %2419 = vmatprep.subr.bf16.mxu0 0
    %2420 = vmatpush2.bf16.msra.mxu0 0
    %2421 = vmatprep.mubr.bf16.mxu0 0
    %2422 = vmatmul.mubr.bf16.gmra.mxu0 %v2387
    %v2423 = vpop.f32.mrf.mxu0
    %v2424 = vadd.f32 0.0, %v2423
    %v2425 = vpop.f32.mrf.mxu0
    %v2426 = vpop.f32.mrf.mxu0
    %v2427 = vpop.f32.mrf.mxu0
    %v2428 = vadd.f32 0.0, %v2427
    %2429 = vdwg.mxu0
    %v2430 = vld [vmem:[#allocation2 + $0x60] sm:$0xff]
    %v2431 = vadd.f32 %v2424, %v2430
    %v2432 = vld [vmem:[#allocation2 + $0x18] sm:$0xff]
    %v2433 = vadd.f32 %v2428, %v2432
    %v2434 = vtanh.pop %v2431
    %v2435 = vtanh.pop %v2433
    %v2436 = vmul.f32 %v2434, 0.5
    %v2437 = vmul.f32 %v2435, 0.5
    %v2438 = vadd.f32 %v2436, 0.5
    %v2439 = vadd.f32 %v2437, 0.5
    %2442 = vrot.lane.b32.xlu0 %v2383, 32
    %v2443 = vpop.permute.xlu0 %2442
    %2444 = vrot.lane.b32.xlu0 %v2384, 32
    %v2445 = vpop.permute.xlu0 %2444
    %v2448 = vmul.f32 %v2438, %v2443
    %v2449 = vmul.f32 %v2439, %v2445
    %2452 = vrot.lane.b32.xlu0 %v2434, 64
    %v2453 = vpop.permute.xlu0 %2452
    %2454 = vrot.lane.b32.xlu0 %v2435, 64
    %v2455 = vpop.permute.xlu0 %2454
    %v2458 = vmul.f32 %v2438, %v2453
    %v2459 = vmul.f32 %v2439, %v2455
    %2462 = vrot.lane.b32.xlu0 %v2458, 32
    %v2463 = vpop.permute.xlu0 %2462
    %2464 = vrot.lane.b32.xlu0 %v2459, 32
    %v2465 = vpop.permute.xlu0 %2464
    %v2468 = vadd.f32 %v2448, %v2463
    %v2469 = vadd.f32 %v2449, %v2465
    %v2470 = vtanh.pop %v2468
    %v2471 = vtanh.pop %v2469
    %2474 = vrot.lane.b32.xlu0 %v2470, 64
    %v2475 = vpop.permute.xlu0 %2474
    %2476 = vrot.lane.b32.xlu0 %v2471, 64
    %v2477 = vpop.permute.xlu0 %2476
    %v2480 = vmul.f32 %v2438, %v2475
    %v2481 = vmul.f32 %v2439, %v2477
    %v2482 = vld [vmem:[#allocation4 + $0x60] sm:$0xff]
    %v2483 = vld [vmem:[#allocation4 + $0x68] sm:$0xff]
    %2486 = vrot.lane.b32.xlu0 %v2480, 32
    %v2487 = vpop.permute.xlu0 %2486
    %2488 = vrot.lane.b32.xlu0 %v2481, 32
    %v2489 = vpop.permute.xlu0 %2488
    %v2492 = vmul.f32 %v2482, %v2487
    %v2493 = vmul.f32 %v2483, %v2489
    %v2494 = vsub.f32 1.0, %v2482
    %v2495 = vsub.f32 1.0, %v2483
    %v2496 = vmul.f32 %v2494, %v2369
    %v2497 = vmul.f32 %v2495, %v2370
    %v2498 = vadd.f32 %v2492, %v2496
    %v2499 = vadd.f32 %v2493, %v2497
    %2502 = vrot.lane.b32.xlu0 %v2468, 96
    %v2503 = vpop.permute.xlu0 %2502
    %2504 = vrot.lane.b32.xlu0 %v2469, 96
    %v2505 = vpop.permute.xlu0 %2504
    %v2508 = vmul.f32 %v2482, %v2503
    %v2509 = vmul.f32 %v2483, %v2505
    %v2510 = vmul.f32 %v2494, %v2383
    %v2511 = vmul.f32 %v2495, %v2384
    %v2512 = vadd.f32 %v2508, %v2510
    %v2513 = vadd.f32 %v2509, %v2511
    %v2514 = vpack.c.bf16 %v2499, %v2498
    %v2516 = vsel %vm90, %v2514, 0
    %2518 = vmatprep.subr.bf16.mxu0 0
    %2519 = vmatpush1.bf16.msra.mxu0 0
    %2520 = vmatprep.subr.bf16.mxu0 0
    %2521 = vmatpush1.bf16.msra.mxu0 0
    %2522 = vmatprep.subr.bf16.mxu0 0
    %2523 = vmatpush1.bf16.msra.mxu0 0
    %2524 = vmatprep.subr.bf16.mxu0 0
    %2525 = vmatpush1.bf16.msra.mxu0 0
    %2526 = vmatprep.subr.bf16.mxu0 0
    %2527 = vmatpush1.bf16.msra.mxu0 0
    %2528 = vmatprep.subr.bf16.mxu0 0
    %2529 = vmatpush1.bf16.msra.mxu0 0
    %2530 = vmatprep.subr.bf16.mxu0 %v1620
    %2531 = vmatpush1.bf16.msra.mxu0 %v1619
    %2532 = vmatprep.subr.bf16.mxu0 %v1618
    %2533 = vmatpush1.bf16.msra.mxu0 %v1617
    %2534 = vmatprep.subr.bf16.mxu0 0
    %2535 = vmatpush2.bf16.msra.mxu0 0
    %2536 = vmatprep.subr.bf16.mxu0 0
    %2537 = vmatpush2.bf16.msra.mxu0 0
    %2538 = vmatprep.subr.bf16.mxu0 0
    %2539 = vmatpush2.bf16.msra.mxu0 0
    %2540 = vmatprep.subr.bf16.mxu0 0
    %2541 = vmatpush2.bf16.msra.mxu0 0
    %2542 = vmatprep.subr.bf16.mxu0 0
    %2543 = vmatpush2.bf16.msra.mxu0 0
    %2544 = vmatprep.subr.bf16.mxu0 0
    %2545 = vmatpush2.bf16.msra.mxu0 0
    %2546 = vmatprep.subr.bf16.mxu0 0
    %2547 = vmatpush2.bf16.msra.mxu0 0
    %2548 = vmatprep.subr.bf16.mxu0 0
    %2549 = vmatpush2.bf16.msra.mxu0 0
    %2550 = vmatprep.mubr.bf16.mxu0 0
    %2551 = vmatmul.mubr.bf16.gmra.mxu0 %v2516
    %v2552 = vpop.f32.mrf.mxu0
    %v2553 = vadd.f32 0.0, %v2552
    %v2554 = vpop.f32.mrf.mxu0
    %v2555 = vpop.f32.mrf.mxu0
    %v2556 = vpop.f32.mrf.mxu0
    %v2557 = vadd.f32 0.0, %v2556
    %2558 = vdwg.mxu0
    %v2559 = vld [vmem:[#allocation2 + $0x70] sm:$0xff]
    %v2560 = vadd.f32 %v2553, %v2559
    %v2561 = vld [vmem:[#allocation2 + $0x8] sm:$0xff]
    %v2562 = vadd.f32 %v2557, %v2561
    %v2563 = vtanh.pop %v2560
    %v2564 = vtanh.pop %v2562
    %v2565 = vmul.f32 %v2563, 0.5
    %v2566 = vmul.f32 %v2564, 0.5
    %v2567 = vadd.f32 %v2565, 0.5
    %v2568 = vadd.f32 %v2566, 0.5
    %2571 = vrot.lane.b32.xlu0 %v2512, 32
    %v2572 = vpop.permute.xlu0 %2571
    %2573 = vrot.lane.b32.xlu0 %v2513, 32
    %v2574 = vpop.permute.xlu0 %2573
    %v2577 = vmul.f32 %v2567, %v2572
    %v2578 = vmul.f32 %v2568, %v2574
    %2581 = vrot.lane.b32.xlu0 %v2563, 64
    %v2582 = vpop.permute.xlu0 %2581
    %2583 = vrot.lane.b32.xlu0 %v2564, 64
    %v2584 = vpop.permute.xlu0 %2583
    %v2587 = vmul.f32 %v2567, %v2582
    %v2588 = vmul.f32 %v2568, %v2584
    %2591 = vrot.lane.b32.xlu0 %v2587, 32
    %v2592 = vpop.permute.xlu0 %2591
    %2593 = vrot.lane.b32.xlu0 %v2588, 32
    %v2594 = vpop.permute.xlu0 %2593
    %v2597 = vadd.f32 %v2577, %v2592
    %v2598 = vadd.f32 %v2578, %v2594
    %v2599 = vtanh.pop %v2597
    %v2600 = vtanh.pop %v2598
    %2603 = vrot.lane.b32.xlu0 %v2599, 64
    %v2604 = vpop.permute.xlu0 %2603
    %2605 = vrot.lane.b32.xlu0 %v2600, 64
    %v2606 = vpop.permute.xlu0 %2605
    %v2609 = vmul.f32 %v2567, %v2604
    %v2610 = vmul.f32 %v2568, %v2606
    %v2611 = vld [vmem:[#allocation4 + $0x70] sm:$0xff]
    %v2612 = vld [vmem:[#allocation4 + $0x78] sm:$0xff]
    %2615 = vrot.lane.b32.xlu0 %v2609, 32
    %v2616 = vpop.permute.xlu0 %2615
    %2617 = vrot.lane.b32.xlu0 %v2610, 32
    %v2618 = vpop.permute.xlu0 %2617
    %v2621 = vmul.f32 %v2611, %v2616
    %v2622 = vmul.f32 %v2612, %v2618
    %v2623 = vsub.f32 1.0, %v2611
    %v2624 = vsub.f32 1.0, %v2612
    %v2625 = vmul.f32 %v2623, %v2498
    %v2626 = vmul.f32 %v2624, %v2499
    %v2627 = vadd.f32 %v2621, %v2625
    %v2628 = vadd.f32 %v2622, %v2626
    %v2629 = vld [vmem:[%s4] sm:$0xff]
    %v2630 = vld [vmem:[%s4 + $0x8] sm:$0xff]
    %v2631 = vld [vmem:[%s4 + $0x10] sm:$0xff]
    %v2632 = vld [vmem:[%s4 + $0x18] sm:$0xff]
    %v2633 = vld [vmem:[%s4 + $0x20] sm:$0xff]
    %v2634 = vld [vmem:[%s4 + $0x28] sm:$0xff]
    %v2635 = vld [vmem:[%s4 + $0x30] sm:$0xff]
    %v2636 = vld [vmem:[%s4 + $0x38] sm:$0xff]
    %v2638 = vsel %vm90, %v2628, 0
    %2640 = vmatprep.subr.mxu0 0.0
    %2641 = vmatpush1.msra.mxu0 0.0
    %2642 = vmatprep.subr.mxu0 0.0
    %2643 = vmatpush1.msra.mxu0 0.0
    %2644 = vmatprep.subr.mxu0 0.0
    %2645 = vmatpush1.msra.mxu0 0.0
    %2646 = vmatprep.subr.mxu0 0.0
    %2647 = vmatpush1.msra.mxu0 0.0
    %2648 = vmatprep.subr.mxu0 0.0
    %2649 = vmatpush1.msra.mxu0 0.0
    %2650 = vmatprep.subr.mxu0 0.0
    %2651 = vmatpush1.msra.mxu0 0.0
    %2652 = vmatprep.subr.mxu0 0.0
    %2653 = vmatpush1.msra.mxu0 0.0
    %2654 = vmatprep.subr.mxu0 0.0
    %2655 = vmatpush1.msra.mxu0 0.0
    %2656 = vmatprep.subr.mxu0 0.0
    %2657 = vmatpush1.msra.mxu0 0.0
    %2658 = vmatprep.subr.mxu0 0.0
    %2659 = vmatpush1.msra.mxu0 0.0
    %2660 = vmatprep.subr.mxu0 0.0
    %2661 = vmatpush1.msra.mxu0 0.0
    %2662 = vmatprep.subr.mxu0 0.0
    %2663 = vmatpush1.msra.mxu0 0.0
    %2664 = vmatprep.subr.mxu0 0.0
    %2665 = vmatpush1.msra.mxu0 %v2636
    %2666 = vmatprep.subr.mxu0 0.0
    %2667 = vmatpush1.msra.mxu0 %v2635
    %2668 = vmatprep.subr.mxu0 0.0
    %2669 = vmatpush1.msra.mxu0 %v2634
    %2670 = vmatprep.subr.mxu0 0.0
    %2671 = vmatpush1.msra.mxu0 %v2633
    %2672 = vmatprep.subr.mxu0 0.0
    %2673 = vmatpush2.msra.mxu0 0.0
    %2674 = vmatprep.subr.mxu0 0.0
    %2675 = vmatpush2.msra.mxu0 0.0
    %2676 = vmatprep.subr.mxu0 0.0
    %2677 = vmatpush2.msra.mxu0 0.0
    %2678 = vmatprep.subr.mxu0 0.0
    %2679 = vmatpush2.msra.mxu0 0.0
    %2680 = vmatprep.subr.mxu0 0.0
    %2681 = vmatpush2.msra.mxu0 0.0
    %2682 = vmatprep.subr.mxu0 0.0
    %2683 = vmatpush2.msra.mxu0 0.0
    %2684 = vmatprep.subr.mxu0 0.0
    %2685 = vmatpush2.msra.mxu0 0.0
    %2686 = vmatprep.subr.mxu0 0.0
    %2687 = vmatpush2.msra.mxu0 0.0
    %2688 = vmatprep.subr.mxu0 0.0
    %2689 = vmatpush2.msra.mxu0 0.0
    %2690 = vmatprep.subr.mxu0 0.0
    %2691 = vmatpush2.msra.mxu0 0.0
    %2692 = vmatprep.subr.mxu0 0.0
    %2693 = vmatpush2.msra.mxu0 0.0
    %2694 = vmatprep.subr.mxu0 0.0
    %2695 = vmatpush2.msra.mxu0 0.0
    %2696 = vmatprep.subr.mxu0 0.0
    %2697 = vmatpush2.msra.mxu0 0.0
    %2698 = vmatprep.subr.mxu0 0.0
    %2699 = vmatpush2.msra.mxu0 0.0
    %2700 = vmatprep.subr.mxu0 0.0
    %2701 = vmatpush2.msra.mxu0 0.0
    %2702 = vmatprep.subr.mxu0 0.0
    %2703 = vmatpush2.msra.mxu0 0.0
    %2704 = vmatprep.mubr.f32.mxu0 0.0
    %2705 = vmatmul.mubr.f32.gmra.mxu0 %v2638
    %v2706 = vpop.f32.mrf.mxu0
    %v2707 = vadd.f32 0.0, %v2706
    %v2708 = vpop.f32.mrf.mxu0
    %2709 = vdwg.mxu0
    %v2711 = vsel %vm90, %v2627, 0
    %2713 = vmatprep.subr.mxu0 0.0
    %2714 = vmatpush1.msra.mxu0 0.0
    %2715 = vmatprep.subr.mxu0 0.0
    %2716 = vmatpush1.msra.mxu0 0.0
    %2717 = vmatprep.subr.mxu0 0.0
    %2718 = vmatpush1.msra.mxu0 0.0
    %2719 = vmatprep.subr.mxu0 0.0
    %2720 = vmatpush1.msra.mxu0 0.0
    %2721 = vmatprep.subr.mxu0 0.0
    %2722 = vmatpush1.msra.mxu0 0.0
    %2723 = vmatprep.subr.mxu0 0.0
    %2724 = vmatpush1.msra.mxu0 0.0
    %2725 = vmatprep.subr.mxu0 0.0
    %2726 = vmatpush1.msra.mxu0 0.0
    %2727 = vmatprep.subr.mxu0 0.0
    %2728 = vmatpush1.msra.mxu0 0.0
    %2729 = vmatprep.subr.mxu0 0.0
    %2730 = vmatpush1.msra.mxu0 0.0
    %2731 = vmatprep.subr.mxu0 0.0
    %2732 = vmatpush1.msra.mxu0 0.0
    %2733 = vmatprep.subr.mxu0 0.0
    %2734 = vmatpush1.msra.mxu0 0.0
    %2735 = vmatprep.subr.mxu0 0.0
    %2736 = vmatpush1.msra.mxu0 0.0
    %2737 = vmatprep.subr.mxu0 0.0
    %2738 = vmatpush1.msra.mxu0 %v2632
    %2739 = vmatprep.subr.mxu0 0.0
    %2740 = vmatpush1.msra.mxu0 %v2631
    %2741 = vmatprep.subr.mxu0 0.0
    %2742 = vmatpush1.msra.mxu0 %v2630
    %2743 = vmatprep.subr.mxu0 0.0
    %2744 = vmatpush1.msra.mxu0 %v2629
    %2745 = vmatprep.subr.mxu0 0.0
    %2746 = vmatpush2.msra.mxu0 0.0
    %2747 = vmatprep.subr.mxu0 0.0
    %2748 = vmatpush2.msra.mxu0 0.0
    %2749 = vmatprep.subr.mxu0 0.0
    %2750 = vmatpush2.msra.mxu0 0.0
    %2751 = vmatprep.subr.mxu0 0.0
    %2752 = vmatpush2.msra.mxu0 0.0
    %2753 = vmatprep.subr.mxu0 0.0
    %2754 = vmatpush2.msra.mxu0 0.0
    %2755 = vmatprep.subr.mxu0 0.0
    %2756 = vmatpush2.msra.mxu0 0.0
    %2757 = vmatprep.subr.mxu0 0.0
    %2758 = vmatpush2.msra.mxu0 0.0
    %2759 = vmatprep.subr.mxu0 0.0
    %2760 = vmatpush2.msra.mxu0 0.0
    %2761 = vmatprep.subr.mxu0 0.0
    %2762 = vmatpush2.msra.mxu0 0.0
    %2763 = vmatprep.subr.mxu0 0.0
    %2764 = vmatpush2.msra.mxu0 0.0
    %2765 = vmatprep.subr.mxu0 0.0
    %2766 = vmatpush2.msra.mxu0 0.0
    %2767 = vmatprep.subr.mxu0 0.0
    %2768 = vmatpush2.msra.mxu0 0.0
    %2769 = vmatprep.subr.mxu0 0.0
    %2770 = vmatpush2.msra.mxu0 0.0
    %2771 = vmatprep.subr.mxu0 0.0
    %2772 = vmatpush2.msra.mxu0 0.0
    %2773 = vmatprep.subr.mxu0 0.0
    %2774 = vmatpush2.msra.mxu0 0.0
    %2775 = vmatprep.subr.mxu0 0.0
    %2776 = vmatpush2.msra.mxu0 0.0
    %2777 = vmatprep.mubr.f32.mxu0 0.0
    %2778 = vmatmul.mubr.f32.gmra.mxu0 %v2711
    %v2779 = vpop.f32.mrf.mxu0
    %v2780 = vadd.f32 %v2707, %v2779
    %v2781 = vpop.f32.mrf.mxu0
    %2782 = vdwg.mxu0
    %v2783 = vld [vmem:[%s4] sm:$0x1]
    %v2784 = vlaneseq
    %v2785 = vshrl.u32 %v2784, 7
    %v2786 = vsub.s32 0, %v2785
    %v2787 = vrot.slane %v2783, %v2786
    %2789 = vrot.lane.b32.xlu0 %v2787, 127
    %v2790 = vpop.permute.xlu0 %2789
    %v2792 = vadd.f32 %v2780, %v2790
    %v2793 = vxor.u32 %v2792, 2147483648
    %v2794 = vmul.f32 %v2793, 1.442695
    %v2795 = vpow.pop %v2794
    %v2796 = vadd.f32 %v2795, 1.0
    %v2797 = vrcp.pop %v2796
    %v2798 = vmul.f32 1.0, %v2797
    %vm2799 = vcmask 7168
    %2800 = vst.msk [vmem:[%s5] sm:$0xff] %vm2799, %v2798
    // Predicated region
    $region38: #{text_classifier_lstm_forward.1} parent=1 // pred_check
      _
    $region39: #{text_classifier_lstm_forward.1} parent=1 // pred_check_branch
      %2802 = sbr.rel (0) target = $region41
    $region40: #{text_classifier_lstm_forward.1} parent=1 // pred_region
      _
    $region41: #{text_classifier_lstm_forward.1} parent=1 // pred_fallthru
      _
    // Predicated region
    $region42: #{text_classifier_lstm_forward.1} parent=1 // pred_check
      _
    $region43: #{text_classifier_lstm_forward.1} parent=1 // pred_check_branch
      %2804 = sbr.rel (0) target = $region45
    $region44: #{text_classifier_lstm_forward.1} parent=1 // pred_region
      _
    $region45: #{text_classifier_lstm_forward.1} parent=1 // pred_fallthru
      _
    %2805 = vsyncpa [#allocation6], 1
    %2806 = vsyncpa [#allocation12], 1
    %2807 = vsyncpa [#allocation7], 1
    %2808 = vsyncpa [#allocation9], 1

</llo_original>
